<compile_context>
chip_gen: v7x
topology: tpu7x:2x2x1
jax: 0.10.0
libtpu: 0.0.40
codegen_flags: <defaults>
</compile_context>

<pallas_src>
import math
import functools

import numpy as np
import jax
import jax.numpy as jnp
from jax.experimental import pallas as pl
from jax.experimental.pallas import tpu as pltpu


NUM_FRAMES = 8
NUM_JOINTS = 22
SEQ = NUM_FRAMES * NUM_JOINTS  # 176 tokens, matches the registered masks
NEG_BIG = -9e15                # same constant the PyTorch module uses


def make_masks():
    """Reproduce MultiHeadedAttention.masks() -> (temporal_mask, spatial_mask)."""
    n = SEQ
    t = np.ones((n, n), dtype=np.float32)
    s = np.zeros((n, n), dtype=np.float32)
    for i in range(NUM_FRAMES):
        sl = slice(i * NUM_JOINTS, (i + 1) * NUM_JOINTS)
        t[sl, sl] = 0.0
        s[sl, sl] += 1.0
    t += np.eye(n, dtype=np.float32)
    return jnp.asarray(t), jnp.asarray(s)


def _pad(n, m=128):
    return ((n + m - 1) // m) * m


def _vmem_bytes_estimate(bb, seq, input_dim, d_model, head_dim):
    """Per-grid-step VMEM footprint with (8,128) tile padding included.

    The feature dims (input_dim=16, head_dim=8, d_model=16) pad up to the 128
    lane width, so the real footprint is 8-16x the raw byte count.
    """
    f32, bf16 = 4, 2
    rows = _pad(seq, 8)
    per_row = (
        2 * 2 * _pad(input_dim) * f32        # x + out pipeline blocks, double-buffered
        + _pad(3 * d_model) * (f32 + bf16)   # qkv (f32) + bf16 MXU operand copy
        + 3 * _pad(head_dim) * bf16          # one head's q/k/v bf16 slices
        + 3 * _pad(seq) * f32                # scores / exp / temporaries (176 -> 256 lanes)
        + _pad(seq) * bf16                   # probabilities cast for the PV matmul
        + 2 * _pad(head_dim) * f32           # PV output + normalized output
    )
    fixed = 2 * (rows * _pad(seq) * f32                         # mask bias (double-buffered)
                 + _pad(input_dim, 8) * _pad(3 * d_model) * f32  # fused weights
                 + 8 * 128 * f32)                                # fused bias
    return bb * rows * per_row + fixed


def _pick_block_batch(bs, seq, input_dim, d_model, head_dim,
                      max_bb=16, vmem_budget=16 * 1024 * 1024, num_cores=1):
    """Largest batch block that divides bs, is <= max_bb, and fits the padded
    VMEM budget.  With num_cores > 1 (v7x megacore) prefer a block whose grid
    length is a multiple of num_cores so every TensorCore gets work; on
    v5e/v6e (single TensorCore) the largest fitting block (grid length 1) is
    best -- extra grid steps only re-add the ~0.35 us/step overhead."""
    fits = [bb for bb in range(1, min(bs, max_bb) + 1)
            if bs % bb == 0
            and _vmem_bytes_estimate(bb, seq, input_dim, d_model, head_dim) <= vmem_budget]
    if not fits:
        return 1
    if num_cores > 1:
        balanced = [bb for bb in fits if (bs // bb) % num_cores == 0]
        if balanced:
            return max(balanced)
    return max(fits)


def _mha_kernel(x_ref, w_ref, b_ref, bias_ref, o_ref, *,
                head_num, head_dim, mxu_dtype):
    # x_ref:    (BB, SEQ, input_dim)      block of batch elements
    # w_ref:    (input_dim, 3*d_model)    fused [Wq*scale | Wk | Wv]
    # b_ref:    (1, 3*d_model)            fused [bq*scale | bk | bv]
    # bias_ref: (SEQ, SEQ)                additive mask bias (0 or -9e15)
    # o_ref:    (BB, SEQ, d_model)        final layout, written directly
    bb, seq, d_in = x_ref.shape
    d_model = head_num * head_dim

    # Fused QKV projection: one MXU push with M = BB*SEQ, N = 3*d_model
    # (bf16 operands, f32 accumulation).
    x2 = x_ref[...].reshape(bb * seq, d_in).astype(mxu_dtype)
    qkv = jnp.dot(x2, w_ref[...].astype(mxu_dtype),
                  preferred_element_type=jnp.float32) + b_ref[...]
    qkv = qkv.reshape(bb, seq, 3 * d_model)

    mask_bias = bias_ref[...]                         # hoisted once per grid step

    for h in range(head_num):                         # static, short unroll
        q = qkv[:, :, h * head_dim:(h + 1) * head_dim].astype(mxu_dtype)
        k = qkv[:, :, d_model + h * head_dim:
                      d_model + (h + 1) * head_dim].astype(mxu_dtype)
        v = qkv[:, :, 2 * d_model + h * head_dim:
                      2 * d_model + (h + 1) * head_dim].astype(mxu_dtype)

        # q already carries the 1/sqrt(head_dim) scale (folded into Wq/bq).
        s = jnp.einsum('bqd,bkd->bqk', q, k, preferred_element_type=jnp.float32)
        # Additive -9e15 on masked entries == scores*m + (1-m)*(-9e15) for the
        # module's strictly 0/1 masks (exp underflows to exactly 0 either way).
        s = s + mask_bias

        # Numerically-stable softmax; normalization deferred past the PV
        # matmul so the divide touches SEQ*head_dim values instead of SEQ*SEQ.
        s = s - jnp.max(s, axis=-1, keepdims=True)
        p = jnp.exp(s)
        denom = jnp.sum(p, axis=-1, keepdims=True)    # (BB, SEQ, 1), >= 1

        o = jnp.einsum('bqk,bkd->bqd', p.astype(mxu_dtype), v,
                       preferred_element_type=jnp.float32)
        # Exact reciprocal (approx=True on the EUP has only ~8 good bits and
        # caused the previous parity failure; the reciprocal tensor is tiny).
        o_ref[:, :, h * head_dim:(h + 1) * head_dim] = (
            o * pl.reciprocal(denom, approx=False)).astype(o_ref.dtype)


def multi_headed_attention(x, w_qkv, b_qkv, mask, head_num, head_dim,
                           block_batch=None, mxu_dtype=jnp.bfloat16,
                           num_cores=1):
    """x: (bs, SEQ, input_dim); w_qkv: (input_dim, 3*d_model) = [Wq|Wk|Wv];
    b_qkv: (1, 3*d_model) = [bq|bk|bv]; mask: (SEQ, SEQ), strictly 0/1
    (as the module's registered temporal/spatial masks are).
    Returns (bs, SEQ, head_num*head_dim) in the module's output layout.
    Set num_cores=2 on v7x so the batch grid splits evenly over both cores."""
    bs, seq, input_dim = x.shape
    d_model = head_num * head_dim
    assert w_qkv.shape == (input_dim, 3 * d_model)
    assert b_qkv.shape == (1, 3 * d_model)
    assert mask.shape == (seq, seq)

    # Fold the 1/sqrt(head_dim) softmax scale into the query projection
    # (free, wrapper-side XLA ops on a (16,48) weight) and turn the 0/1 mask
    # into an additive bias so the kernel does a single add per score element.
    scale = 1.0 / math.sqrt(head_dim)
    w_qkv = jnp.concatenate([w_qkv[:, :d_model] * scale, w_qkv[:, d_model:]], axis=1)
    b_qkv = jnp.concatenate([b_qkv[:, :d_model] * scale, b_qkv[:, d_model:]], axis=1)
    mask_bias = (1.0 - mask.astype(jnp.float32)) * NEG_BIG

    if block_batch is None:
        bb = _pick_block_batch(bs, seq, input_dim, d_model, head_dim,
                               num_cores=num_cores)
    else:
        bb = block_batch
    assert bs % bb == 0, "block_batch must divide bs"

    # Explicit scoped-VMEM limit from the padded footprint (v5e's default is
    # only 16 MiB); capped well under v7x's 64 MiB physical per-TC VMEM.
    est = _vmem_bytes_estimate(bb, seq, input_dim, d_model, head_dim)
    vmem_limit = int(min(48 * 1024 * 1024, max(32 * 1024 * 1024, 2 * est)))

    kernel = functools.partial(_mha_kernel, head_num=head_num,
                               head_dim=head_dim, mxu_dtype=mxu_dtype)

    return pl.pallas_call(
        kernel,
        out_shape=jax.ShapeDtypeStruct((bs, seq, d_model), jnp.float32),
        grid_spec=pltpu.PrefetchScalarGridSpec(
            num_scalar_prefetch=0,
            grid=(bs // bb,),
            in_specs=[
                pl.BlockSpec((bb, seq, input_dim), lambda i: (i, 0, 0)),
                pl.BlockSpec((input_dim, 3 * d_model), lambda i: (0, 0)),
                pl.BlockSpec((1, 3 * d_model), lambda i: (0, 0)),
                pl.BlockSpec((seq, seq), lambda i: (0, 0)),
            ],
            out_specs=pl.BlockSpec((bb, seq, d_model), lambda i: (i, 0, 0)),
        ),
        compiler_params=pltpu.CompilerParams(
            dimension_semantics=("parallel",),
            vmem_limit_bytes=vmem_limit),
    )(x, w_qkv, b_qkv, mask_bias)


def reference(x, Wq, bq, Wk, bk, Wv, bv, mask, head_num, head_dim):
    """Pure-JAX (f32) mirror of the PyTorch forward (eval mode)."""
    bs, seq, _ = x.shape

    def proj(W, b):
        y = x @ W + b                                    # (bs, seq, d_model)
        y = y.reshape(bs, seq, head_num, head_dim)
        return y.transpose(0, 2, 1, 3)                   # (bs, H, seq, hd)

    q = proj(Wq, bq)
    k = proj(Wk, bk)
    v = proj(Wv, bv)
    w = (q @ k.transpose(0, 1, 3, 2)) / math.sqrt(head_dim)
    w = w * mask + (1.0 - mask) * NEG_BIG
    a = jax.nn.softmax(w, axis=-1)
    o = a @ v
    return o.transpose(0, 2, 1, 3).reshape(bs, seq, head_num * head_dim)


if __name__ == "__main__":
    # Small shapes consistent with the module: seq must be 8*22=176 for the
    # registered masks; everything else kept small.
    bs, input_dim = 2, 16
    head_num, head_dim = 2, 8
    d_model = head_num * head_dim
    att_type = "temporal"

    key = jax.random.PRNGKey(0)
    kx, kwq, kbq, kwk, kbk, kwv, kbv = jax.random.split(key, 7)

    x = jax.random.normal(kx, (bs, SEQ, input_dim), dtype=jnp.float32)

    # Deterministic synthetic parameters (Linear: y = x @ W + b, W stored
    # transposed relative to torch's (out, in) weight).
    scale = 1.0 / math.sqrt(input_dim)
    Wq = jax.random.uniform(kwq, (input_dim, d_model), jnp.float32, -scale, scale)
    Wk = jax.random.uniform(kwk, (input_dim, d_model), jnp.float32, -scale, scale)
    Wv = jax.random.uniform(kwv, (input_dim, d_model), jnp.float32, -scale, scale)
    bq = jax.random.uniform(kbq, (d_model,), jnp.float32, -scale, scale)
    bk = jax.random.uniform(kbk, (d_model,), jnp.float32, -scale, scale)
    bv = jax.random.uniform(kbv, (d_model,), jnp.float32, -scale, scale)

    t_mask, s_mask = make_masks()
    if att_type == "temporal":
        mask = t_mask
    elif att_type == "spatial":
        mask = s_mask
    else:
        mask = jnp.ones((SEQ, SEQ), jnp.float32)  # no masking

    # Fused QKV parameters for the kernel.
    W_qkv = jnp.concatenate([Wq, Wk, Wv], axis=1)            # (input_dim, 3*d_model)
    b_qkv = jnp.concatenate([bq, bk, bv]).reshape(1, 3 * d_model)

    # Default fast path: bf16 MXU operands (native on v5e/v6e/v7x), f32
    # accumulation.  Pass mxu_dtype=jnp.float32 for bit-tighter parity.
    out = multi_headed_attention(x, W_qkv, b_qkv, mask, head_num, head_dim)
    out = jax.block_until_ready(out)

    ref = reference(x, Wq, bq, Wk, bk, Wv, bv, mask, head_num, head_dim)
    # bf16-operand tolerance: the only approximations vs the f32 reference are
    # the bf16 casts of the three matmul operand pairs (the softmax reciprocal
    # is now exact).  Observed error is ~1e-3; 2e-2/5e-3 leaves >3x margin.
    np.testing.assert_allclose(np.asarray(out), np.asarray(ref),
                               rtol=2e-2, atol=5e-3)

    print("KERNEL_OK")
</pallas_src>

<mosaic_0001>
module attributes {stable_mosaic.version = 11 : i64} {
  func.func @_mha_kernel(%arg0: i32, %arg1: memref<2x176x16xf32, #tpu.memory_space<vmem>>, %arg2: memref<16x48xf32, #tpu.memory_space<vmem>>, %arg3: memref<1x48xf32, #tpu.memory_space<vmem>>, %arg4: memref<176x176xf32, #tpu.memory_space<vmem>>, %arg5: memref<2x176x16xf32, #tpu.memory_space<vmem>>) attributes {dimension_semantics = [#tpu.dimension_semantics<parallel>], iteration_bounds = array<i64: 1>, scalar_prefetch = 0 : i64, scratch_operands = 0 : i64, tpu.core_type = #tpu.core_type<tc>, window_params = [{transform_indices = @transform_0, window_bounds = array<i64: 2, 176, 16>}, {pipeline_mode = #tpu.pipeline_mode<synchronous>, transform_indices = @transform_1, window_bounds = array<i64: 16, 48>}, {pipeline_mode = #tpu.pipeline_mode<synchronous>, transform_indices = @transform_2, window_bounds = array<i64: 1, 48>}, {pipeline_mode = #tpu.pipeline_mode<synchronous>, transform_indices = @transform_3, window_bounds = array<i64: 176, 176>}, {transform_indices = @transform_4, window_bounds = array<i64: 2, 176, 16>}]} {
    %c0 = arith.constant 0 : index
    %c0_0 = arith.constant 0 : index
    %c0_1 = arith.constant 0 : index
    %0 = vector.load %arg1[%c0, %c0_0, %c0_1] : memref<2x176x16xf32, #tpu.memory_space<vmem>>, vector<2x176x16xf32>
    %1 = vector.shape_cast %0 : vector<2x176x16xf32> to vector<352x16xf32>
    %2 = arith.truncf %1 : vector<352x16xf32> to vector<352x16xbf16>
    %c0_2 = arith.constant 0 : index
    %c0_3 = arith.constant 0 : index
    %3 = vector.load %arg2[%c0_2, %c0_3] : memref<16x48xf32, #tpu.memory_space<vmem>>, vector<16x48xf32>
    %4 = arith.truncf %3 : vector<16x48xf32> to vector<16x48xbf16>
    %cst = arith.constant dense<0.000000e+00> : vector<352x48xf32>
    %5 = tpu.matmul %2, %4, %cst {dimension_numbers = #tpu.dot_dimension_numbers<[1], [0], [0], [1], [0, 0, 1, 1], [], []>} : vector<352x16xbf16>, vector<16x48xbf16>, vector<352x48xf32> -> vector<352x48xf32>
    %c0_4 = arith.constant 0 : index
    %c0_5 = arith.constant 0 : index
    %6 = vector.load %arg3[%c0_4, %c0_5] : memref<1x48xf32, #tpu.memory_space<vmem>>, vector<1x48xf32>
    %7 = vector.broadcast %6 : vector<1x48xf32> to vector<352x48xf32>
    %8 = arith.addf %5, %7 : vector<352x48xf32>
    %9 = vector.shape_cast %8 : vector<352x48xf32> to vector<2x176x48xf32>
    %c0_6 = arith.constant 0 : index
    %c0_7 = arith.constant 0 : index
    %10 = vector.load %arg4[%c0_6, %c0_7] : memref<176x176xf32, #tpu.memory_space<vmem>>, vector<176x176xf32>
    %11 = vector.extract_strided_slice %9 {offsets = [0, 0, 0], sizes = [2, 176, 8], strides = [1, 1, 1]} : vector<2x176x48xf32> to vector<2x176x8xf32>
    %12 = arith.truncf %11 : vector<2x176x8xf32> to vector<2x176x8xbf16>
    %13 = vector.extract_strided_slice %9 {offsets = [0, 0, 16], sizes = [2, 176, 8], strides = [1, 1, 1]} : vector<2x176x48xf32> to vector<2x176x8xf32>
    %14 = arith.truncf %13 : vector<2x176x8xf32> to vector<2x176x8xbf16>
    %15 = vector.extract_strided_slice %9 {offsets = [0, 0, 32], sizes = [2, 176, 8], strides = [1, 1, 1]} : vector<2x176x48xf32> to vector<2x176x8xf32>
    %16 = arith.truncf %15 : vector<2x176x8xf32> to vector<2x176x8xbf16>
    "tpu.trace_start"() <{level = 10 : i32, message = "bqd,bkd->bqk"}> : () -> ()
    %cst_8 = arith.constant dense<0.000000e+00> : vector<2x176x176xf32>
    %17 = tpu.matmul %12, %14, %cst_8 {dimension_numbers = #tpu.dot_dimension_numbers<[2], [2], [1], [1], [0, 0, 0, 1, 1, 1], [0], [0]>} : vector<2x176x8xbf16>, vector<2x176x8xbf16>, vector<2x176x176xf32> -> vector<2x176x176xf32>
    "tpu.trace_stop"() : () -> ()
    %18 = vector.shape_cast %10 : vector<176x176xf32> to vector<1x176x176xf32>
    %19 = vector.broadcast %18 : vector<1x176x176xf32> to vector<2x176x176xf32>
    %20 = arith.addf %17, %19 : vector<2x176x176xf32>
    %cst_9 = arith.constant dense<0xFF800000> : vector<2x176xf32>
    %21 = vector.multi_reduction <maximumf>, %20, %cst_9 [2] : vector<2x176x176xf32> to vector<2x176xf32>
    %22 = vector.shape_cast %21 : vector<2x176xf32> to vector<2x176x1xf32>
    %23 = vector.broadcast %22 : vector<2x176x1xf32> to vector<2x176x176xf32>
    %24 = arith.subf %20, %23 : vector<2x176x176xf32>
    %25 = math.exp %24 : vector<2x176x176xf32>
    %cst_10 = arith.constant dense<0.000000e+00> : vector<2x176xf32>
    %26 = vector.multi_reduction <add>, %25, %cst_10 [2] : vector<2x176x176xf32> to vector<2x176xf32>
    %27 = vector.shape_cast %26 : vector<2x176xf32> to vector<2x176x1xf32>
    %28 = arith.truncf %25 : vector<2x176x176xf32> to vector<2x176x176xbf16>
    "tpu.trace_start"() <{level = 10 : i32, message = "bqk,bkd->bqd"}> : () -> ()
    %cst_11 = arith.constant dense<0.000000e+00> : vector<2x176x8xf32>
    %29 = tpu.matmul %28, %16, %cst_11 {dimension_numbers = #tpu.dot_dimension_numbers<[2], [1], [1], [2], [0, 0, 0, 1, 1, 2], [0], [0]>} : vector<2x176x176xbf16>, vector<2x176x8xbf16>, vector<2x176x8xf32> -> vector<2x176x8xf32>
    "tpu.trace_stop"() : () -> ()
    %30 = tpu.reciprocal %27 : vector<2x176x1xf32> -> vector<2x176x1xf32>
    %31 = vector.broadcast %30 : vector<2x176x1xf32> to vector<2x176x8xf32>
    %32 = arith.mulf %29, %31 : vector<2x176x8xf32>
    %c0_12 = arith.constant 0 : index
    %c0_13 = arith.constant 0 : index
    %c0_14 = arith.constant 0 : index
    %33 = vector.load %arg5[%c0_12, %c0_13, %c0_14] : memref<2x176x16xf32, #tpu.memory_space<vmem>>, vector<2x176x8xf32>
    tpu.vector_store %arg5[%c0_12, %c0_13, %c0_14], %32 {strides = array<i32>} : memref<2x176x16xf32, #tpu.memory_space<vmem>>, vector<2x176x8xf32>,
    %34 = vector.extract_strided_slice %9 {offsets = [0, 0, 8], sizes = [2, 176, 8], strides = [1, 1, 1]} : vector<2x176x48xf32> to vector<2x176x8xf32>
    %35 = arith.truncf %34 : vector<2x176x8xf32> to vector<2x176x8xbf16>
    %36 = vector.extract_strided_slice %9 {offsets = [0, 0, 24], sizes = [2, 176, 8], strides = [1, 1, 1]} : vector<2x176x48xf32> to vector<2x176x8xf32>
    %37 = arith.truncf %36 : vector<2x176x8xf32> to vector<2x176x8xbf16>
    %38 = vector.extract_strided_slice %9 {offsets = [0, 0, 40], sizes = [2, 176, 8], strides = [1, 1, 1]} : vector<2x176x48xf32> to vector<2x176x8xf32>
    %39 = arith.truncf %38 : vector<2x176x8xf32> to vector<2x176x8xbf16>
    "tpu.trace_start"() <{level = 10 : i32, message = "bqd,bkd->bqk"}> : () -> ()
    %cst_15 = arith.constant dense<0.000000e+00> : vector<2x176x176xf32>
    %40 = tpu.matmul %35, %37, %cst_15 {dimension_numbers = #tpu.dot_dimension_numbers<[2], [2], [1], [1], [0, 0, 0, 1, 1, 1], [0], [0]>} : vector<2x176x8xbf16>, vector<2x176x8xbf16>, vector<2x176x176xf32> -> vector<2x176x176xf32>
    "tpu.trace_stop"() : () -> ()
    %41 = vector.shape_cast %10 : vector<176x176xf32> to vector<1x176x176xf32>
    %42 = vector.broadcast %41 : vector<1x176x176xf32> to vector<2x176x176xf32>
    %43 = arith.addf %40, %42 : vector<2x176x176xf32>
    %cst_16 = arith.constant dense<0xFF800000> : vector<2x176xf32>
    %44 = vector.multi_reduction <maximumf>, %43, %cst_16 [2] : vector<2x176x176xf32> to vector<2x176xf32>
    %45 = vector.shape_cast %44 : vector<2x176xf32> to vector<2x176x1xf32>
    %46 = vector.broadcast %45 : vector<2x176x1xf32> to vector<2x176x176xf32>
    %47 = arith.subf %43, %46 : vector<2x176x176xf32>
    %48 = math.exp %47 : vector<2x176x176xf32>
    %cst_17 = arith.constant dense<0.000000e+00> : vector<2x176xf32>
    %49 = vector.multi_reduction <add>, %48, %cst_17 [2] : vector<2x176x176xf32> to vector<2x176xf32>
    %50 = vector.shape_cast %49 : vector<2x176xf32> to vector<2x176x1xf32>
    %51 = arith.truncf %48 : vector<2x176x176xf32> to vector<2x176x176xbf16>
    "tpu.trace_start"() <{level = 10 : i32, message = "bqk,bkd->bqd"}> : () -> ()
    %cst_18 = arith.constant dense<0.000000e+00> : vector<2x176x8xf32>
    %52 = tpu.matmul %51, %39, %cst_18 {dimension_numbers = #tpu.dot_dimension_numbers<[2], [1], [1], [2], [0, 0, 0, 1, 1, 2], [0], [0]>} : vector<2x176x176xbf16>, vector<2x176x8xbf16>, vector<2x176x8xf32> -> vector<2x176x8xf32>
    "tpu.trace_stop"() : () -> ()
    %53 = tpu.reciprocal %50 : vector<2x176x1xf32> -> vector<2x176x1xf32>
    %54 = vector.broadcast %53 : vector<2x176x1xf32> to vector<2x176x8xf32>
    %55 = arith.mulf %52, %54 : vector<2x176x8xf32>
    %c0_19 = arith.constant 0 : index
    %c0_20 = arith.constant 0 : index
    %c8 = arith.constant 8 : index
    %56 = vector.load %arg5[%c0_19, %c0_20, %c8] : memref<2x176x16xf32, #tpu.memory_space<vmem>>, vector<2x176x8xf32>
    tpu.vector_store %arg5[%c0_19, %c0_20, %c8], %55 {strides = array<i32>} : memref<2x176x16xf32, #tpu.memory_space<vmem>>, vector<2x176x8xf32>,
    return
  }
  func.func @transform_0(%arg0: i32) -> (i32, i32, i32) {
    %c0_i32 = arith.constant 0 : i32
    %c0_i32_0 = arith.constant 0 : i32
    %c0_i32_1 = arith.constant 0 : i32
    return %arg0, %c0_i32, %c0_i32_0 : i32, i32, i32
  }
  func.func @transform_1(%arg0: i32) -> (i32, i32) {
    %c0_i32 = arith.constant 0 : i32
    %c0_i32_0 = arith.constant 0 : i32
    %c0_i32_1 = arith.constant 0 : i32
    return %c0_i32, %c0_i32_0 : i32, i32
  }
  func.func @transform_2(%arg0: i32) -> (i32, i32) {
    %c0_i32 = arith.constant 0 : i32
    %c0_i32_0 = arith.constant 0 : i32
    %c0_i32_1 = arith.constant 0 : i32
    return %c0_i32, %c0_i32_0 : i32, i32
  }
  func.func @transform_3(%arg0: i32) -> (i32, i32) {
    %c0_i32 = arith.constant 0 : i32
    %c0_i32_0 = arith.constant 0 : i32
    %c0_i32_1 = arith.constant 0 : i32
    return %c0_i32, %c0_i32_0 : i32, i32
  }
  func.func @transform_4(%arg0: i32) -> (i32, i32, i32) {
    %c0_i32 = arith.constant 0 : i32
    %c0_i32_0 = arith.constant 0 : i32
    %c0_i32_1 = arith.constant 0 : i32
    return %arg0, %c0_i32, %c0_i32_0 : i32, i32, i32
  }
}

</mosaic_0001>

<llo_original>
// kernel: tpu_custom_call.1
$region0: #{tpu_custom_call.1}
  #allocation0 [shape = 'u32[]', space=smem, size = 0x4, offset = 0x4, fixed_abs, tag = 'smem constant byte address 0x4 - core index']
  #allocation1 [shape = 'u32[144,128]{1,0:T(1,128)}', space=vmem, size = 0x12000, scoped, tag = 'internal scratch']
  %s0 = inlined_call_operand.vmem [shape: f32[2,176,16], index: 0, kind: input, shape index: {}]
  %s1 = inlined_call_operand.vmem [shape: f32[16,48], index: 1, kind: input, shape index: {}]
  %s2 = inlined_call_operand.vmem [shape: f32[1,48], index: 2, kind: input, shape index: {}]
  %s3 = inlined_call_operand.vmem [shape: f32[176,176], index: 3, kind: input, shape index: {}]
  %s4 = inlined_call_operand.vmem [shape: f32[2,176,16], index: 4, kind: output, shape index: {}]
  %s5 = sld [smem:[#allocation0]]
  $region26: #{tpu_custom_call.1} parent=0
    _
  %s7 = ssub.s32 1, %s5
  %s8 = scalar_select 0, %s7, %s5
  // Predicated region
  $region2: #{tpu_custom_call.1} parent=0 // pred_check
    _
  $region3: #{tpu_custom_call.1} parent=0 // pred_check_branch
    %10 = sbr.rel (0) target = $region5
  $region4: #{tpu_custom_call.1} parent=0 // pred_region
    _
  $region5: #{tpu_custom_call.1} parent=0 // pred_fallthru
    _
  // Predicated region
  $region6: #{tpu_custom_call.1} parent=0 // pred_check
    _
  $region7: #{tpu_custom_call.1} parent=0 // pred_check_branch
    %12 = sbr.rel (0) target = $region9
  $region8: #{tpu_custom_call.1} parent=0 // pred_region
    _
  $region9: #{tpu_custom_call.1} parent=0 // pred_fallthru
    _
  // Predicated region
  $region10: #{tpu_custom_call.1} parent=0 // pred_check
    _
  $region11: #{tpu_custom_call.1} parent=0 // pred_check_branch
    %14 = sbr.rel (0) target = $region13
  $region12: #{tpu_custom_call.1} parent=0 // pred_region
    _
  $region13: #{tpu_custom_call.1} parent=0 // pred_fallthru
    _
  // Predicated region
  $region14: #{tpu_custom_call.1} parent=0 // pred_check
    _
  $region15: #{tpu_custom_call.1} parent=0 // pred_check_branch
    %16 = sbr.rel (0) target = $region17
  $region16: #{tpu_custom_call.1} parent=0 // pred_region
    _
  $region17: #{tpu_custom_call.1} parent=0 // pred_fallthru
    _
  %v18 = vld [vmem:[%s0] sm:$0xff]
  %v19 = vld [vmem:[%s0 + $0x8] sm:$0xff]
  %v20 = vld [vmem:[%s0 + $0x10] sm:$0xff]
  %v21 = vld [vmem:[%s0 + $0x18] sm:$0xff]
  %v22 = vld [vmem:[%s0 + $0x20] sm:$0xff]
  %v23 = vld [vmem:[%s0 + $0x28] sm:$0xff]
  %v24 = vld [vmem:[%s0 + $0x30] sm:$0xff]
  %v25 = vld [vmem:[%s0 + $0x38] sm:$0xff]
  %v26 = vld [vmem:[%s0 + $0x40] sm:$0xff]
  %v27 = vld [vmem:[%s0 + $0x48] sm:$0xff]
  %v28 = vld [vmem:[%s0 + $0x50] sm:$0xff]
  %v29 = vld [vmem:[%s0 + $0x58] sm:$0xff]
  %v30 = vld [vmem:[%s0 + $0x60] sm:$0xff]
  %v31 = vld [vmem:[%s0 + $0x68] sm:$0xff]
  %v32 = vld [vmem:[%s0 + $0x70] sm:$0xff]
  %v33 = vld [vmem:[%s0 + $0x78] sm:$0xff]
  %v34 = vld [vmem:[%s0 + $0x80] sm:$0xff]
  %v35 = vld [vmem:[%s0 + $0x88] sm:$0xff]
  %v36 = vld [vmem:[%s0 + $0x90] sm:$0xff]
  %v37 = vld [vmem:[%s0 + $0x98] sm:$0xff]
  %v38 = vld [vmem:[%s0 + $0xa0] sm:$0xff]
  %v39 = vld [vmem:[%s0 + $0xa8] sm:$0xff]
  %v40 = vld [vmem:[%s0 + $0xb0] sm:$0xff]
  %v41 = vld [vmem:[%s0 + $0xb8] sm:$0xff]
  %v42 = vld [vmem:[%s0 + $0xc0] sm:$0xff]
  %v43 = vld [vmem:[%s0 + $0xc8] sm:$0xff]
  %v44 = vld [vmem:[%s0 + $0xd0] sm:$0xff]
  %v45 = vld [vmem:[%s0 + $0xd8] sm:$0xff]
  %v46 = vld [vmem:[%s0 + $0xe0] sm:$0xff]
  %v47 = vld [vmem:[%s0 + $0xe8] sm:$0xff]
  %v48 = vld [vmem:[%s0 + $0xf0] sm:$0xff]
  %v49 = vld [vmem:[%s0 + $0xf8] sm:$0xff]
  %v50 = vld [vmem:[%s0 + $0x100] sm:$0xff]
  %v51 = vld [vmem:[%s0 + $0x108] sm:$0xff]
  %v52 = vld [vmem:[%s0 + $0x110] sm:$0xff]
  %v53 = vld [vmem:[%s0 + $0x118] sm:$0xff]
  %v54 = vld [vmem:[%s0 + $0x120] sm:$0xff]
  %v55 = vld [vmem:[%s0 + $0x128] sm:$0xff]
  %v56 = vld [vmem:[%s0 + $0x130] sm:$0xff]
  %v57 = vld [vmem:[%s0 + $0x138] sm:$0xff]
  %v58 = vld [vmem:[%s0 + $0x140] sm:$0xff]
  %v59 = vld [vmem:[%s0 + $0x148] sm:$0xff]
  %v60 = vld [vmem:[%s0 + $0x150] sm:$0xff]
  %v61 = vld [vmem:[%s0 + $0x158] sm:$0xff]
  %v62 = vpack.c.bf16 %v19, %v18
  %v63 = vpack.c.bf16 %v21, %v20
  %v64 = vpack.c.bf16 %v23, %v22
  %v65 = vpack.c.bf16 %v25, %v24
  %v66 = vpack.c.bf16 %v27, %v26
  %v67 = vpack.c.bf16 %v29, %v28
  %v68 = vpack.c.bf16 %v31, %v30
  %v69 = vpack.c.bf16 %v33, %v32
  %v70 = vpack.c.bf16 %v35, %v34
  %v71 = vpack.c.bf16 %v37, %v36
  %v72 = vpack.c.bf16 %v39, %v38
  %v73 = vpack.c.bf16 %v41, %v40
  %v74 = vpack.c.bf16 %v43, %v42
  %v75 = vpack.c.bf16 %v45, %v44
  %v76 = vpack.c.bf16 %v47, %v46
  %v77 = vpack.c.bf16 %v49, %v48
  %v78 = vpack.c.bf16 %v51, %v50
  %v79 = vpack.c.bf16 %v53, %v52
  %v80 = vpack.c.bf16 %v55, %v54
  %v81 = vpack.c.bf16 %v57, %v56
  %v82 = vpack.c.bf16 %v59, %v58
  %v83 = vpack.c.bf16 %v61, %v60
  %v84 = vld [vmem:[%s1] sm:$0xff]
  %v85 = vld [vmem:[%s1 + $0x8] sm:$0xff]
  %v86 = vpack.c.bf16 %v85, %v84
  %v87 = vld [vmem:[%s2] sm:$0x1]
  %v89 = vlaneseq
  %v90 = vshrl.u32 %v89, 7
  %v91 = vsub.s32 0, %v90
  %v92 = vrot.slane %v87, %v91
  %vm94 = vcmask 130048
  %v96 = vsel %vm94, %v62, 0
  %v99 = vsel %vm94, %v63, 0
  %v102 = vsel %vm94, %v64, 0
  %v105 = vsel %vm94, %v65, 0
  %v108 = vsel %vm94, %v66, 0
  %v111 = vsel %vm94, %v67, 0
  %v114 = vsel %vm94, %v68, 0
  %v117 = vsel %vm94, %v69, 0
  %v120 = vsel %vm94, %v70, 0
  %v123 = vsel %vm94, %v71, 0
  %v126 = vsel %vm94, %v72, 0
  %v129 = vsel %vm94, %v73, 0
  %v132 = vsel %vm94, %v74, 0
  %v135 = vsel %vm94, %v75, 0
  %v138 = vsel %vm94, %v76, 0
  %v141 = vsel %vm94, %v77, 0
  %v144 = vsel %vm94, %v78, 0
  %v147 = vsel %vm94, %v79, 0
  %v150 = vsel %vm94, %v80, 0
  %v153 = vsel %vm94, %v81, 0
  %v156 = vsel %vm94, %v82, 0
  %v159 = vsel %vm94, %v83, 0
  %161 = vmatprep.subr.bf16.mxu0 0
  %162 = vmatpush1.bf16.msra.mxu0 %v86
  %163 = vmatprep.subr.bf16.mxu0 0
  %164 = vmatpush1.bf16.msra.mxu0 0
  %165 = vmatprep.subr.bf16.mxu0 0
  %166 = vmatpush1.bf16.msra.mxu0 0
  %167 = vmatprep.subr.bf16.mxu0 0
  %168 = vmatpush1.bf16.msra.mxu0 0
  %169 = vmatprep.subr.bf16.mxu0 0
  %170 = vmatpush1.bf16.msra.mxu0 0
  %171 = vmatprep.subr.bf16.mxu0 0
  %172 = vmatpush1.bf16.msra.mxu0 0
  %173 = vmatprep.subr.bf16.mxu0 0
  %174 = vmatpush1.bf16.msra.mxu0 0
  %175 = vmatprep.subr.bf16.mxu0 0
  %176 = vmatpush1.bf16.msra.mxu0 0
  %177 = vmatprep.subr.bf16.mxu0 0
  %178 = vmatpush1.bf16.msra.mxu0 0
  %179 = vmatprep.subr.bf16.mxu0 0
  %180 = vmatpush1.bf16.msra.mxu0 0
  %181 = vmatprep.subr.bf16.mxu0 0
  %182 = vmatpush1.bf16.msra.mxu0 0
  %183 = vmatprep.subr.bf16.mxu0 0
  %184 = vmatpush1.bf16.msra.mxu0 0
  %185 = vmatprep.subr.bf16.mxu0 0
  %186 = vmatpush1.bf16.msra.mxu0 0
  %187 = vmatprep.subr.bf16.mxu0 0
  %188 = vmatpush1.bf16.msra.mxu0 0
  %189 = vmatprep.subr.bf16.mxu0 0
  %190 = vmatpush1.bf16.msra.mxu0 0
  %191 = vmatprep.subr.bf16.mxu0 0
  %192 = vmatpush1.bf16.msra.mxu0 0
  %193 = vmatprep.mubr.bf16.mxu0 0
  %194 = vmatmul.mubr.bf16.gmra.mrb[0].mxu0 %v96
  %v195 = vpop.f32.mrb[0].mxu0
  %v196 = vadd.f32 %v92, %v195
  %v197 = vpop.f32.mrb[0].mxu0
  %v198 = vpop.f32.mrb[0].mxu0
  %v199 = vadd.f32 %v92, %v198
  %v200 = vpop.f32.mrb[0].mxu0
  %201 = vmatprep.mubr.bf16.mxu0 0
  %202 = vmatmul.mubr.bf16.gmra.mrb[0].mxu0 %v99
  %v203 = vpop.f32.mrb[0].mxu0
  %v204 = vadd.f32 %v92, %v203
  %v205 = vpop.f32.mrb[0].mxu0
  %v206 = vpop.f32.mrb[0].mxu0
  %v207 = vadd.f32 %v92, %v206
  %v208 = vpop.f32.mrb[0].mxu0
  %209 = vmatprep.mubr.bf16.mxu0 0
  %210 = vmatmul.mubr.bf16.gmra.mrb[0].mxu0 %v102
  %v211 = vpop.f32.mrb[0].mxu0
  %v212 = vadd.f32 %v92, %v211
  %v213 = vpop.f32.mrb[0].mxu0
  %v214 = vpop.f32.mrb[0].mxu0
  %v215 = vadd.f32 %v92, %v214
  %v216 = vpop.f32.mrb[0].mxu0
  %217 = vmatprep.mubr.bf16.mxu0 0
  %218 = vmatmul.mubr.bf16.gmra.mrb[0].mxu0 %v105
  %v219 = vpop.f32.mrb[0].mxu0
  %v220 = vadd.f32 %v92, %v219
  %v221 = vpop.f32.mrb[0].mxu0
  %v222 = vpop.f32.mrb[0].mxu0
  %v223 = vadd.f32 %v92, %v222
  %v224 = vpop.f32.mrb[0].mxu0
  %225 = vmatprep.mubr.bf16.mxu0 0
  %226 = vmatmul.mubr.bf16.gmra.mrb[0].mxu0 %v108
  %v227 = vpop.f32.mrb[0].mxu0
  %v228 = vadd.f32 %v92, %v227
  %v229 = vpop.f32.mrb[0].mxu0
  %v230 = vpop.f32.mrb[0].mxu0
  %v231 = vadd.f32 %v92, %v230
  %v232 = vpop.f32.mrb[0].mxu0
  %233 = vmatprep.mubr.bf16.mxu0 0
  %234 = vmatmul.mubr.bf16.gmra.mrb[0].mxu0 %v111
  %v235 = vpop.f32.mrb[0].mxu0
  %v236 = vadd.f32 %v92, %v235
  %v237 = vpop.f32.mrb[0].mxu0
  %v238 = vpop.f32.mrb[0].mxu0
  %v239 = vadd.f32 %v92, %v238
  %v240 = vpop.f32.mrb[0].mxu0
  %241 = vmatprep.mubr.bf16.mxu0 0
  %242 = vmatmul.mubr.bf16.gmra.mrb[0].mxu0 %v114
  %v243 = vpop.f32.mrb[0].mxu0
  %v244 = vadd.f32 %v92, %v243
  %v245 = vpop.f32.mrb[0].mxu0
  %v246 = vpop.f32.mrb[0].mxu0
  %v247 = vadd.f32 %v92, %v246
  %v248 = vpop.f32.mrb[0].mxu0
  %249 = vmatprep.mubr.bf16.mxu0 0
  %250 = vmatmul.mubr.bf16.gmra.mrb[0].mxu0 %v117
  %v251 = vpop.f32.mrb[0].mxu0
  %v252 = vadd.f32 %v92, %v251
  %v253 = vpop.f32.mrb[0].mxu0
  %v254 = vpop.f32.mrb[0].mxu0
  %v255 = vadd.f32 %v92, %v254
  %v256 = vpop.f32.mrb[0].mxu0
  %257 = vmatprep.mubr.bf16.mxu0 0
  %258 = vmatmul.mubr.bf16.gmra.mrb[0].mxu0 %v120
  %v259 = vpop.f32.mrb[0].mxu0
  %v260 = vadd.f32 %v92, %v259
  %v261 = vpop.f32.mrb[0].mxu0
  %v262 = vpop.f32.mrb[0].mxu0
  %v263 = vadd.f32 %v92, %v262
  %v264 = vpop.f32.mrb[0].mxu0
  %265 = vmatprep.mubr.bf16.mxu0 0
  %266 = vmatmul.mubr.bf16.gmra.mrb[0].mxu0 %v123
  %v267 = vpop.f32.mrb[0].mxu0
  %v268 = vadd.f32 %v92, %v267
  %v269 = vpop.f32.mrb[0].mxu0
  %v270 = vpop.f32.mrb[0].mxu0
  %v271 = vadd.f32 %v92, %v270
  %v272 = vpop.f32.mrb[0].mxu0
  %273 = vmatprep.mubr.bf16.mxu0 0
  %274 = vmatmul.mubr.bf16.gmra.mrb[0].mxu0 %v126
  %v275 = vpop.f32.mrb[0].mxu0
  %v276 = vadd.f32 %v92, %v275
  %v277 = vpop.f32.mrb[0].mxu0
  %v278 = vpop.f32.mrb[0].mxu0
  %v279 = vadd.f32 %v92, %v278
  %v280 = vpop.f32.mrb[0].mxu0
  %281 = vmatprep.mubr.bf16.mxu0 0
  %282 = vmatmul.mubr.bf16.gmra.mrb[0].mxu0 %v129
  %v283 = vpop.f32.mrb[0].mxu0
  %v284 = vadd.f32 %v92, %v283
  %v285 = vpop.f32.mrb[0].mxu0
  %v286 = vpop.f32.mrb[0].mxu0
  %v287 = vadd.f32 %v92, %v286
  %v288 = vpop.f32.mrb[0].mxu0
  %289 = vmatprep.mubr.bf16.mxu0 0
  %290 = vmatmul.mubr.bf16.gmra.mrb[0].mxu0 %v132
  %v291 = vpop.f32.mrb[0].mxu0
  %v292 = vadd.f32 %v92, %v291
  %v293 = vpop.f32.mrb[0].mxu0
  %v294 = vpop.f32.mrb[0].mxu0
  %v295 = vadd.f32 %v92, %v294
  %v296 = vpop.f32.mrb[0].mxu0
  %297 = vmatprep.mubr.bf16.mxu0 0
  %298 = vmatmul.mubr.bf16.gmra.mrb[0].mxu0 %v135
  %v299 = vpop.f32.mrb[0].mxu0
  %v300 = vadd.f32 %v92, %v299
  %v301 = vpop.f32.mrb[0].mxu0
  %v302 = vpop.f32.mrb[0].mxu0
  %v303 = vadd.f32 %v92, %v302
  %v304 = vpop.f32.mrb[0].mxu0
  %305 = vmatprep.mubr.bf16.mxu0 0
  %306 = vmatmul.mubr.bf16.gmra.mrb[0].mxu0 %v138
  %v307 = vpop.f32.mrb[0].mxu0
  %v308 = vadd.f32 %v92, %v307
  %v309 = vpop.f32.mrb[0].mxu0
  %v310 = vpop.f32.mrb[0].mxu0
  %v311 = vadd.f32 %v92, %v310
  %v312 = vpop.f32.mrb[0].mxu0
  %313 = vmatprep.mubr.bf16.mxu0 0
  %314 = vmatmul.mubr.bf16.gmra.mrb[0].mxu0 %v141
  %v315 = vpop.f32.mrb[0].mxu0
  %v316 = vadd.f32 %v92, %v315
  %v317 = vpop.f32.mrb[0].mxu0
  %v318 = vpop.f32.mrb[0].mxu0
  %v319 = vadd.f32 %v92, %v318
  %v320 = vpop.f32.mrb[0].mxu0
  %321 = vmatprep.mubr.bf16.mxu0 0
  %322 = vmatmul.mubr.bf16.gmra.mrb[0].mxu0 %v144
  %v323 = vpop.f32.mrb[0].mxu0
  %v324 = vadd.f32 %v92, %v323
  %v325 = vpop.f32.mrb[0].mxu0
  %v326 = vpop.f32.mrb[0].mxu0
  %v327 = vadd.f32 %v92, %v326
  %v328 = vpop.f32.mrb[0].mxu0
  %329 = vmatprep.mubr.bf16.mxu0 0
  %330 = vmatmul.mubr.bf16.gmra.mrb[0].mxu0 %v147
  %v331 = vpop.f32.mrb[0].mxu0
  %v332 = vadd.f32 %v92, %v331
  %v333 = vpop.f32.mrb[0].mxu0
  %v334 = vpop.f32.mrb[0].mxu0
  %v335 = vadd.f32 %v92, %v334
  %v336 = vpop.f32.mrb[0].mxu0
  %337 = vmatprep.mubr.bf16.mxu0 0
  %338 = vmatmul.mubr.bf16.gmra.mrb[0].mxu0 %v150
  %v339 = vpop.f32.mrb[0].mxu0
  %v340 = vadd.f32 %v92, %v339
  %v341 = vpop.f32.mrb[0].mxu0
  %v342 = vpop.f32.mrb[0].mxu0
  %v343 = vadd.f32 %v92, %v342
  %v344 = vpop.f32.mrb[0].mxu0
  %345 = vmatprep.mubr.bf16.mxu0 0
  %346 = vmatmul.mubr.bf16.gmra.mrb[0].mxu0 %v153
  %v347 = vpop.f32.mrb[0].mxu0
  %v348 = vadd.f32 %v92, %v347
  %v349 = vpop.f32.mrb[0].mxu0
  %v350 = vpop.f32.mrb[0].mxu0
  %v351 = vadd.f32 %v92, %v350
  %v352 = vpop.f32.mrb[0].mxu0
  %353 = vmatprep.mubr.bf16.mxu0 0
  %354 = vmatmul.mubr.bf16.gmra.mrb[0].mxu0 %v156
  %v355 = vpop.f32.mrb[0].mxu0
  %v356 = vadd.f32 %v92, %v355
  %v357 = vpop.f32.mrb[0].mxu0
  %v358 = vpop.f32.mrb[0].mxu0
  %v359 = vadd.f32 %v92, %v358
  %v360 = vpop.f32.mrb[0].mxu0
  %361 = vmatprep.mubr.bf16.mxu0 0
  %362 = vmatmul.mubr.bf16.gmra.mrb[0].mxu0 %v159
  %v363 = vpop.f32.mrb[0].mxu0
  %v364 = vadd.f32 %v92, %v363
  %v365 = vpop.f32.mrb[0].mxu0
  %v366 = vpop.f32.mrb[0].mxu0
  %v367 = vadd.f32 %v92, %v366
  %v368 = vpop.f32.mrb[0].mxu0
  %369 = vdwg.mxu0
  %v370 = vld [vmem:[%s3] sm:$0xff]
  %v371 = vld [vmem:[%s3 + $0x8] sm:$0xff]
  %v372 = vld [vmem:[%s3 + $0x10] sm:$0xff]
  %v373 = vld [vmem:[%s3 + $0x18] sm:$0xff]
  %v374 = vld [vmem:[%s3 + $0x20] sm:$0xff]
  %v375 = vld [vmem:[%s3 + $0x28] sm:$0xff]
  %v376 = vld [vmem:[%s3 + $0x30] sm:$0xff]
  %v377 = vld [vmem:[%s3 + $0x38] sm:$0xff]
  %v378 = vld [vmem:[%s3 + $0x40] sm:$0xff]
  %v379 = vld [vmem:[%s3 + $0x48] sm:$0xff]
  %v380 = vld [vmem:[%s3 + $0x50] sm:$0xff]
  %v381 = vld [vmem:[%s3 + $0x58] sm:$0xff]
  %v382 = vld [vmem:[%s3 + $0x60] sm:$0xff]
  %v383 = vld [vmem:[%s3 + $0x68] sm:$0xff]
  %v384 = vld [vmem:[%s3 + $0x70] sm:$0xff]
  %v385 = vld [vmem:[%s3 + $0x78] sm:$0xff]
  %v386 = vld [vmem:[%s3 + $0x80] sm:$0xff]
  %v387 = vld [vmem:[%s3 + $0x88] sm:$0xff]
  %v388 = vld [vmem:[%s3 + $0x90] sm:$0xff]
  %v389 = vld [vmem:[%s3 + $0x98] sm:$0xff]
  %v390 = vld [vmem:[%s3 + $0xa0] sm:$0xff]
  %v391 = vld [vmem:[%s3 + $0xa8] sm:$0xff]
  %v392 = vld [vmem:[%s3 + $0xb0] sm:$0xff]
  %v393 = vld [vmem:[%s3 + $0xb8] sm:$0xff]
  %v394 = vld [vmem:[%s3 + $0xc0] sm:$0xff]
  %v395 = vld [vmem:[%s3 + $0xc8] sm:$0xff]
  %v396 = vld [vmem:[%s3 + $0xd0] sm:$0xff]
  %v397 = vld [vmem:[%s3 + $0xd8] sm:$0xff]
  %v398 = vld [vmem:[%s3 + $0xe0] sm:$0xff]
  %v399 = vld [vmem:[%s3 + $0xe8] sm:$0xff]
  %v400 = vld [vmem:[%s3 + $0xf0] sm:$0xff]
  %v401 = vld [vmem:[%s3 + $0xf8] sm:$0xff]
  %v402 = vld [vmem:[%s3 + $0x100] sm:$0xff]
  %v403 = vld [vmem:[%s3 + $0x108] sm:$0xff]
  %v404 = vld [vmem:[%s3 + $0x110] sm:$0xff]
  %v405 = vld [vmem:[%s3 + $0x118] sm:$0xff]
  %v406 = vld [vmem:[%s3 + $0x120] sm:$0xff]
  %v407 = vld [vmem:[%s3 + $0x128] sm:$0xff]
  %v408 = vld [vmem:[%s3 + $0x130] sm:$0xff]
  %v409 = vld [vmem:[%s3 + $0x138] sm:$0xff]
  %v410 = vld [vmem:[%s3 + $0x140] sm:$0xff]
  %v411 = vld [vmem:[%s3 + $0x148] sm:$0xff]
  %v412 = vld [vmem:[%s3 + $0x150] sm:$0xff]
  %v413 = vld [vmem:[%s3 + $0x158] sm:$0xff]
  %v414 = vpack.c.bf16 %v199, %v196
  %v415 = vpack.c.bf16 %v207, %v204
  %v416 = vpack.c.bf16 %v215, %v212
  %v417 = vpack.c.bf16 %v223, %v220
  %v418 = vpack.c.bf16 %v231, %v228
  %v419 = vpack.c.bf16 %v239, %v236
  %v420 = vpack.c.bf16 %v247, %v244
  %v421 = vpack.c.bf16 %v255, %v252
  %v422 = vpack.c.bf16 %v263, %v260
  %v423 = vpack.c.bf16 %v271, %v268
  %v424 = vpack.c.bf16 %v279, %v276
  %v425 = vpack.c.bf16 %v287, %v284
  %v426 = vpack.c.bf16 %v295, %v292
  %v427 = vpack.c.bf16 %v303, %v300
  %v428 = vpack.c.bf16 %v311, %v308
  %v429 = vpack.c.bf16 %v319, %v316
  %v430 = vpack.c.bf16 %v327, %v324
  %v431 = vpack.c.bf16 %v335, %v332
  %v432 = vpack.c.bf16 %v343, %v340
  %v433 = vpack.c.bf16 %v351, %v348
  %v434 = vpack.c.bf16 %v359, %v356
  %v435 = vpack.c.bf16 %v367, %v364
  %447 = vrot.lane.b32.xlu0 %v414, 112
  %v448 = vpop.permute.xlu0 %447
  %449 = vrot.lane.b32.xlu0 %v415, 112
  %v450 = vpop.permute.xlu0 %449
  %451 = vrot.lane.b32.xlu0 %v416, 112
  %v452 = vpop.permute.xlu0 %451
  %453 = vrot.lane.b32.xlu0 %v417, 112
  %v454 = vpop.permute.xlu0 %453
  %455 = vrot.lane.b32.xlu0 %v418, 112
  %v456 = vpop.permute.xlu0 %455
  %457 = vrot.lane.b32.xlu0 %v419, 112
  %v458 = vpop.permute.xlu0 %457
  %459 = vrot.lane.b32.xlu0 %v420, 112
  %v460 = vpop.permute.xlu0 %459
  %461 = vrot.lane.b32.xlu0 %v421, 112
  %v462 = vpop.permute.xlu0 %461
  %463 = vrot.lane.b32.xlu0 %v422, 112
  %v464 = vpop.permute.xlu0 %463
  %465 = vrot.lane.b32.xlu0 %v423, 112
  %v466 = vpop.permute.xlu0 %465
  %467 = vrot.lane.b32.xlu0 %v424, 112
  %v468 = vpop.permute.xlu0 %467
  %vm469 = vcmask 64512
  %v471 = vsel %vm469, %v414, 0
  %v474 = vsel %vm469, %v415, 0
  %v477 = vsel %vm469, %v416, 0
  %v480 = vsel %vm469, %v417, 0
  %v483 = vsel %vm469, %v418, 0
  %v486 = vsel %vm469, %v419, 0
  %v489 = vsel %vm469, %v420, 0
  %v492 = vsel %vm469, %v421, 0
  %v495 = vsel %vm469, %v422, 0
  %v498 = vsel %vm469, %v423, 0
  %v501 = vsel %vm469, %v424, 0
  %v504 = vsel %vm469, %v448, 0
  %v507 = vsel %vm469, %v450, 0
  %v510 = vsel %vm469, %v452, 0
  %v513 = vsel %vm469, %v454, 0
  %v516 = vsel %vm469, %v456, 0
  %v519 = vsel %vm469, %v458, 0
  %v522 = vsel %vm469, %v460, 0
  %v525 = vsel %vm469, %v462, 0
  %v528 = vsel %vm469, %v464, 0
  %v531 = vsel %vm469, %v466, 0
  %v534 = vsel %vm469, %v468, 0
  %536 = vmatprep.subr.bf16.mxu0 0
  %537 = vmatpush1.bf16.xpose.msra.mxu0 %v504
  %538 = vmatprep.subr.bf16.mxu0 0
  %539 = vmatpush1.bf16.xpose.msra.mxu0 %v507
  %540 = vmatprep.subr.bf16.mxu0 0
  %541 = vmatpush1.bf16.xpose.msra.mxu0 %v510
  %542 = vmatprep.subr.bf16.mxu0 0
  %543 = vmatpush1.bf16.xpose.msra.mxu0 %v513
  %544 = vmatprep.subr.bf16.mxu0 0
  %545 = vmatpush1.bf16.xpose.msra.mxu0 %v516
  %546 = vmatprep.subr.bf16.mxu0 0
  %547 = vmatpush1.bf16.xpose.msra.mxu0 %v519
  %548 = vmatprep.subr.bf16.mxu0 0
  %549 = vmatpush1.bf16.xpose.msra.mxu0 %v522
  %550 = vmatprep.subr.bf16.mxu0 0
  %551 = vmatpush1.bf16.xpose.msra.mxu0 %v525
  %552 = vmatprep.subr.bf16.mxu0 0
  %553 = vmatpush1.bf16.xpose.msra.mxu0 %v528
  %554 = vmatprep.subr.bf16.mxu0 0
  %555 = vmatpush1.bf16.xpose.msra.mxu0 %v531
  %556 = vmatprep.subr.bf16.mxu0 0
  %557 = vmatpush1.bf16.xpose.msra.mxu0 %v534
  %558 = vmatprep.subr.bf16.mxu0 0
  %559 = vmatpush1.bf16.xpose.msra.mxu0 0
  %560 = vmatprep.subr.bf16.mxu0 0
  %561 = vmatpush1.bf16.xpose.msra.mxu0 0
  %562 = vmatprep.subr.bf16.mxu0 0
  %563 = vmatpush1.bf16.xpose.msra.mxu0 0
  %564 = vmatprep.subr.bf16.mxu0 0
  %565 = vmatpush1.bf16.xpose.msra.mxu0 0
  %566 = vmatprep.subr.bf16.mxu0 0
  %567 = vmatpush1.bf16.xpose.msra.mxu0 0
  %568 = vmatprep.mubr.bf16.mxu0 0
  %569 = vmatmul.mubr.bf16.gmra.mrb[0].mxu0 %v471
  %v570 = vpop.f32.mrb[0].mxu0
  %v571 = vadd.f32 %v370, %v570
  %v572 = vpop.f32.mrb[0].mxu0
  %v573 = vadd.f32 %v371, %v572
  %v574 = vpop.f32.mrb[0].mxu0
  %v575 = vadd.f32 %v372, %v574
  %v576 = vpop.f32.mrb[0].mxu0
  %v577 = vadd.f32 %v373, %v576
  %578 = vmatprep.mubr.bf16.mxu0 0
  %579 = vmatmul.mubr.bf16.gmra.mrb[0].mxu0 %v474
  %v580 = vpop.f32.mrb[0].mxu0
  %v581 = vadd.f32 %v374, %v580
  %v582 = vpop.f32.mrb[0].mxu0
  %v583 = vadd.f32 %v375, %v582
  %v584 = vpop.f32.mrb[0].mxu0
  %v585 = vadd.f32 %v376, %v584
  %v586 = vpop.f32.mrb[0].mxu0
  %v587 = vadd.f32 %v377, %v586
  %588 = vmatprep.mubr.bf16.mxu0 0
  %589 = vmatmul.mubr.bf16.gmra.mrb[0].mxu0 %v477
  %v590 = vpop.f32.mrb[0].mxu0
  %v591 = vadd.f32 %v378, %v590
  %v592 = vpop.f32.mrb[0].mxu0
  %v593 = vadd.f32 %v379, %v592
  %v594 = vpop.f32.mrb[0].mxu0
  %v595 = vadd.f32 %v380, %v594
  %v596 = vpop.f32.mrb[0].mxu0
  %v597 = vadd.f32 %v381, %v596
  %598 = vmatprep.mubr.bf16.mxu0 0
  %599 = vmatmul.mubr.bf16.gmra.mrb[0].mxu0 %v480
  %v600 = vpop.f32.mrb[0].mxu0
  %v601 = vadd.f32 %v382, %v600
  %v602 = vpop.f32.mrb[0].mxu0
  %v603 = vadd.f32 %v383, %v602
  %v604 = vpop.f32.mrb[0].mxu0
  %v605 = vadd.f32 %v384, %v604
  %v606 = vpop.f32.mrb[0].mxu0
  %v607 = vadd.f32 %v385, %v606
  %608 = vmatprep.mubr.bf16.mxu0 0
  %609 = vmatmul.mubr.bf16.gmra.mrb[0].mxu0 %v483
  %v610 = vpop.f32.mrb[0].mxu0
  %v611 = vadd.f32 %v386, %v610
  %v612 = vpop.f32.mrb[0].mxu0
  %v613 = vadd.f32 %v387, %v612
  %v614 = vpop.f32.mrb[0].mxu0
  %v615 = vadd.f32 %v388, %v614
  %v616 = vpop.f32.mrb[0].mxu0
  %v617 = vadd.f32 %v389, %v616
  %618 = vmatprep.mubr.bf16.mxu0 0
  %619 = vmatmul.mubr.bf16.gmra.mrb[0].mxu0 %v486
  %v620 = vpop.f32.mrb[0].mxu0
  %v621 = vadd.f32 %v390, %v620
  %v622 = vpop.f32.mrb[0].mxu0
  %v623 = vadd.f32 %v391, %v622
  %v624 = vpop.f32.mrb[0].mxu0
  %v625 = vadd.f32 %v392, %v624
  %v626 = vpop.f32.mrb[0].mxu0
  %v627 = vadd.f32 %v393, %v626
  %628 = vmatprep.mubr.bf16.mxu0 0
  %629 = vmatmul.mubr.bf16.gmra.mrb[0].mxu0 %v489
  %v630 = vpop.f32.mrb[0].mxu0
  %v631 = vadd.f32 %v394, %v630
  %v632 = vpop.f32.mrb[0].mxu0
  %v633 = vadd.f32 %v395, %v632
  %v634 = vpop.f32.mrb[0].mxu0
  %v635 = vadd.f32 %v396, %v634
  %v636 = vpop.f32.mrb[0].mxu0
  %v637 = vadd.f32 %v397, %v636
  %638 = vmatprep.mubr.bf16.mxu0 0
  %639 = vmatmul.mubr.bf16.gmra.mrb[0].mxu0 %v492
  %v640 = vpop.f32.mrb[0].mxu0
  %v641 = vadd.f32 %v398, %v640
  %v642 = vpop.f32.mrb[0].mxu0
  %v643 = vadd.f32 %v399, %v642
  %v644 = vpop.f32.mrb[0].mxu0
  %v645 = vadd.f32 %v400, %v644
  %v646 = vpop.f32.mrb[0].mxu0
  %v647 = vadd.f32 %v401, %v646
  %648 = vmatprep.mubr.bf16.mxu0 0
  %649 = vmatmul.mubr.bf16.gmra.mrb[0].mxu0 %v495
  %v650 = vpop.f32.mrb[0].mxu0
  %v651 = vadd.f32 %v402, %v650
  %v652 = vpop.f32.mrb[0].mxu0
  %v653 = vadd.f32 %v403, %v652
  %v654 = vpop.f32.mrb[0].mxu0
  %v655 = vadd.f32 %v404, %v654
  %v656 = vpop.f32.mrb[0].mxu0
  %v657 = vadd.f32 %v405, %v656
  %658 = vmatprep.mubr.bf16.mxu0 0
  %659 = vmatmul.mubr.bf16.gmra.mrb[0].mxu0 %v498
  %v660 = vpop.f32.mrb[0].mxu0
  %v661 = vadd.f32 %v406, %v660
  %v662 = vpop.f32.mrb[0].mxu0
  %v663 = vadd.f32 %v407, %v662
  %v664 = vpop.f32.mrb[0].mxu0
  %v665 = vadd.f32 %v408, %v664
  %v666 = vpop.f32.mrb[0].mxu0
  %v667 = vadd.f32 %v409, %v666
  %668 = vmatprep.mubr.bf16.mxu0 0
  %669 = vmatmul.mubr.bf16.gmra.mrb[0].mxu0 %v501
  %v670 = vpop.f32.mrb[0].mxu0
  %v671 = vadd.f32 %v410, %v670
  %v672 = vpop.f32.mrb[0].mxu0
  %v673 = vadd.f32 %v411, %v672
  %v674 = vpop.f32.mrb[0].mxu0
  %v675 = vadd.f32 %v412, %v674
  %v676 = vpop.f32.mrb[0].mxu0
  %v677 = vadd.f32 %v413, %v676
  %678 = vdwg.mxu0
  %690 = vrot.lane.b32.xlu0 %v425, 112
  %v691 = vpop.permute.xlu0 %690
  %692 = vrot.lane.b32.xlu0 %v426, 112
  %v693 = vpop.permute.xlu0 %692
  %694 = vrot.lane.b32.xlu0 %v427, 112
  %v695 = vpop.permute.xlu0 %694
  %696 = vrot.lane.b32.xlu0 %v428, 112
  %v697 = vpop.permute.xlu0 %696
  %698 = vrot.lane.b32.xlu0 %v429, 112
  %v699 = vpop.permute.xlu0 %698
  %700 = vrot.lane.b32.xlu0 %v430, 112
  %v701 = vpop.permute.xlu0 %700
  %702 = vrot.lane.b32.xlu0 %v431, 112
  %v703 = vpop.permute.xlu0 %702
  %704 = vrot.lane.b32.xlu0 %v432, 112
  %v705 = vpop.permute.xlu0 %704
  %706 = vrot.lane.b32.xlu0 %v433, 112
  %v707 = vpop.permute.xlu0 %706
  %708 = vrot.lane.b32.xlu0 %v434, 112
  %v709 = vpop.permute.xlu0 %708
  %710 = vrot.lane.b32.xlu0 %v435, 112
  %v711 = vpop.permute.xlu0 %710
  %v713 = vsel %vm469, %v425, 0
  %v716 = vsel %vm469, %v426, 0
  %v719 = vsel %vm469, %v427, 0
  %v722 = vsel %vm469, %v428, 0
  %v725 = vsel %vm469, %v429, 0
  %v728 = vsel %vm469, %v430, 0
  %v731 = vsel %vm469, %v431, 0
  %v734 = vsel %vm469, %v432, 0
  %v737 = vsel %vm469, %v433, 0
  %v740 = vsel %vm469, %v434, 0
  %v743 = vsel %vm469, %v435, 0
  %v746 = vsel %vm469, %v691, 0
  %v749 = vsel %vm469, %v693, 0
  %v752 = vsel %vm469, %v695, 0
  %v755 = vsel %vm469, %v697, 0
  %v758 = vsel %vm469, %v699, 0
  %v761 = vsel %vm469, %v701, 0
  %v764 = vsel %vm469, %v703, 0
  %v767 = vsel %vm469, %v705, 0
  %v770 = vsel %vm469, %v707, 0
  %v773 = vsel %vm469, %v709, 0
  %v776 = vsel %vm469, %v711, 0
  %778 = vmatprep.subr.bf16.mxu0 0
  %779 = vmatpush1.bf16.xpose.msra.mxu0 %v746
  %780 = vmatprep.subr.bf16.mxu0 0
  %781 = vmatpush1.bf16.xpose.msra.mxu0 %v749
  %782 = vmatprep.subr.bf16.mxu0 0
  %783 = vmatpush1.bf16.xpose.msra.mxu0 %v752
  %784 = vmatprep.subr.bf16.mxu0 0
  %785 = vmatpush1.bf16.xpose.msra.mxu0 %v755
  %786 = vmatprep.subr.bf16.mxu0 0
  %787 = vmatpush1.bf16.xpose.msra.mxu0 %v758
  %788 = vmatprep.subr.bf16.mxu0 0
  %789 = vmatpush1.bf16.xpose.msra.mxu0 %v761
  %790 = vmatprep.subr.bf16.mxu0 0
  %791 = vmatpush1.bf16.xpose.msra.mxu0 %v764
  %792 = vmatprep.subr.bf16.mxu0 0
  %793 = vmatpush1.bf16.xpose.msra.mxu0 %v767
  %794 = vmatprep.subr.bf16.mxu0 0
  %795 = vmatpush1.bf16.xpose.msra.mxu0 %v770
  %796 = vmatprep.subr.bf16.mxu0 0
  %797 = vmatpush1.bf16.xpose.msra.mxu0 %v773
  %798 = vmatprep.subr.bf16.mxu0 0
  %799 = vmatpush1.bf16.xpose.msra.mxu0 %v776
  %800 = vmatprep.subr.bf16.mxu0 0
  %801 = vmatpush1.bf16.xpose.msra.mxu0 0
  %802 = vmatprep.subr.bf16.mxu0 0
  %803 = vmatpush1.bf16.xpose.msra.mxu0 0
  %804 = vmatprep.subr.bf16.mxu0 0
  %805 = vmatpush1.bf16.xpose.msra.mxu0 0
  %806 = vmatprep.subr.bf16.mxu0 0
  %807 = vmatpush1.bf16.xpose.msra.mxu0 0
  %808 = vmatprep.subr.bf16.mxu0 0
  %809 = vmatpush1.bf16.xpose.msra.mxu0 0
  %810 = vmatprep.mubr.bf16.mxu0 0
  %811 = vmatmul.mubr.bf16.gmra.mrb[0].mxu0 %v713
  %v812 = vpop.f32.mrb[0].mxu0
  %v813 = vadd.f32 %v370, %v812
  %v814 = vpop.f32.mrb[0].mxu0
  %v815 = vadd.f32 %v371, %v814
  %v816 = vpop.f32.mrb[0].mxu0
  %v817 = vadd.f32 %v372, %v816
  %v818 = vpop.f32.mrb[0].mxu0
  %v819 = vadd.f32 %v373, %v818
  %820 = vmatprep.mubr.bf16.mxu0 0
  %821 = vmatmul.mubr.bf16.gmra.mrb[0].mxu0 %v716
  %v822 = vpop.f32.mrb[0].mxu0
  %v823 = vadd.f32 %v374, %v822
  %v824 = vpop.f32.mrb[0].mxu0
  %v825 = vadd.f32 %v375, %v824
  %v826 = vpop.f32.mrb[0].mxu0
  %v827 = vadd.f32 %v376, %v826
  %v828 = vpop.f32.mrb[0].mxu0
  %v829 = vadd.f32 %v377, %v828
  %830 = vmatprep.mubr.bf16.mxu0 0
  %831 = vmatmul.mubr.bf16.gmra.mrb[0].mxu0 %v719
  %v832 = vpop.f32.mrb[0].mxu0
  %v833 = vadd.f32 %v378, %v832
  %v834 = vpop.f32.mrb[0].mxu0
  %v835 = vadd.f32 %v379, %v834
  %v836 = vpop.f32.mrb[0].mxu0
  %v837 = vadd.f32 %v380, %v836
  %v838 = vpop.f32.mrb[0].mxu0
  %v839 = vadd.f32 %v381, %v838
  %840 = vmatprep.mubr.bf16.mxu0 0
  %841 = vmatmul.mubr.bf16.gmra.mrb[0].mxu0 %v722
  %v842 = vpop.f32.mrb[0].mxu0
  %v843 = vadd.f32 %v382, %v842
  %v844 = vpop.f32.mrb[0].mxu0
  %v845 = vadd.f32 %v383, %v844
  %v846 = vpop.f32.mrb[0].mxu0
  %v847 = vadd.f32 %v384, %v846
  %v848 = vpop.f32.mrb[0].mxu0
  %v849 = vadd.f32 %v385, %v848
  %850 = vmatprep.mubr.bf16.mxu0 0
  %851 = vmatmul.mubr.bf16.gmra.mrb[0].mxu0 %v725
  %v852 = vpop.f32.mrb[0].mxu0
  %v853 = vadd.f32 %v386, %v852
  %v854 = vpop.f32.mrb[0].mxu0
  %v855 = vadd.f32 %v387, %v854
  %v856 = vpop.f32.mrb[0].mxu0
  %v857 = vadd.f32 %v388, %v856
  %v858 = vpop.f32.mrb[0].mxu0
  %v859 = vadd.f32 %v389, %v858
  %860 = vmatprep.mubr.bf16.mxu0 0
  %861 = vmatmul.mubr.bf16.gmra.mrb[0].mxu0 %v728
  %v862 = vpop.f32.mrb[0].mxu0
  %v863 = vadd.f32 %v390, %v862
  %v864 = vpop.f32.mrb[0].mxu0
  %v865 = vadd.f32 %v391, %v864
  %v866 = vpop.f32.mrb[0].mxu0
  %v867 = vadd.f32 %v392, %v866
  %v868 = vpop.f32.mrb[0].mxu0
  %v869 = vadd.f32 %v393, %v868
  %870 = vmatprep.mubr.bf16.mxu0 0
  %871 = vmatmul.mubr.bf16.gmra.mrb[0].mxu0 %v731
  %v872 = vpop.f32.mrb[0].mxu0
  %v873 = vadd.f32 %v394, %v872
  %v874 = vpop.f32.mrb[0].mxu0
  %v875 = vadd.f32 %v395, %v874
  %v876 = vpop.f32.mrb[0].mxu0
  %v877 = vadd.f32 %v396, %v876
  %v878 = vpop.f32.mrb[0].mxu0
  %v879 = vadd.f32 %v397, %v878
  %880 = vmatprep.mubr.bf16.mxu0 0
  %881 = vmatmul.mubr.bf16.gmra.mrb[0].mxu0 %v734
  %v882 = vpop.f32.mrb[0].mxu0
  %v883 = vadd.f32 %v398, %v882
  %v884 = vpop.f32.mrb[0].mxu0
  %v885 = vadd.f32 %v399, %v884
  %v886 = vpop.f32.mrb[0].mxu0
  %v887 = vadd.f32 %v400, %v886
  %v888 = vpop.f32.mrb[0].mxu0
  %v889 = vadd.f32 %v401, %v888
  %890 = vmatprep.mubr.bf16.mxu0 0
  %891 = vmatmul.mubr.bf16.gmra.mrb[0].mxu0 %v737
  %v892 = vpop.f32.mrb[0].mxu0
  %v893 = vadd.f32 %v402, %v892
  %v894 = vpop.f32.mrb[0].mxu0
  %v895 = vadd.f32 %v403, %v894
  %v896 = vpop.f32.mrb[0].mxu0
  %v897 = vadd.f32 %v404, %v896
  %v898 = vpop.f32.mrb[0].mxu0
  %v899 = vadd.f32 %v405, %v898
  %900 = vmatprep.mubr.bf16.mxu0 0
  %901 = vmatmul.mubr.bf16.gmra.mrb[0].mxu0 %v740
  %v902 = vpop.f32.mrb[0].mxu0
  %v903 = vadd.f32 %v406, %v902
  %v904 = vpop.f32.mrb[0].mxu0
  %v905 = vadd.f32 %v407, %v904
  %v906 = vpop.f32.mrb[0].mxu0
  %v907 = vadd.f32 %v408, %v906
  %v908 = vpop.f32.mrb[0].mxu0
  %v909 = vadd.f32 %v409, %v908
  %910 = vmatprep.mubr.bf16.mxu0 0
  %911 = vmatmul.mubr.bf16.gmra.mrb[0].mxu0 %v743
  %v912 = vpop.f32.mrb[0].mxu0
  %v913 = vadd.f32 %v410, %v912
  %v914 = vpop.f32.mrb[0].mxu0
  %v915 = vadd.f32 %v411, %v914
  %v916 = vpop.f32.mrb[0].mxu0
  %v917 = vadd.f32 %v412, %v916
  %v918 = vpop.f32.mrb[0].mxu0
  %v919 = vadd.f32 %v413, %v918
  %920 = vdwg.mxu0
  %vm921 = vcmask 392192
  %v922 = vsel %vm921, %v573, -inf
  %v923 = vmax.f32 %v571, %v922
  %924 = vmax.xlane.f32.xlu0 %v923
  %v925 = vpop.xlane.xlu0 %924
  %v926 = vsel %vm921, %v577, -inf
  %v927 = vmax.f32 %v575, %v926
  %928 = vmax.xlane.f32.xlu0 %v927
  %v929 = vpop.xlane.xlu0 %928
  %v930 = vsel %vm921, %v583, -inf
  %v931 = vmax.f32 %v581, %v930
  %932 = vmax.xlane.f32.xlu0 %v931
  %v933 = vpop.xlane.xlu0 %932
  %v934 = vsel %vm921, %v587, -inf
  %v935 = vmax.f32 %v585, %v934
  %936 = vmax.xlane.f32.xlu0 %v935
  %v937 = vpop.xlane.xlu0 %936
  %v938 = vsel %vm921, %v593, -inf
  %v939 = vmax.f32 %v591, %v938
  %940 = vmax.xlane.f32.xlu0 %v939
  %v941 = vpop.xlane.xlu0 %940
  %v942 = vsel %vm921, %v597, -inf
  %v943 = vmax.f32 %v595, %v942
  %944 = vmax.xlane.f32.xlu0 %v943
  %v945 = vpop.xlane.xlu0 %944
  %v946 = vsel %vm921, %v603, -inf
  %v947 = vmax.f32 %v601, %v946
  %948 = vmax.xlane.f32.xlu0 %v947
  %v949 = vpop.xlane.xlu0 %948
  %v950 = vsel %vm921, %v607, -inf
  %v951 = vmax.f32 %v605, %v950
  %952 = vmax.xlane.f32.xlu0 %v951
  %v953 = vpop.xlane.xlu0 %952
  %v954 = vsel %vm921, %v613, -inf
  %v955 = vmax.f32 %v611, %v954
  %956 = vmax.xlane.f32.xlu0 %v955
  %v957 = vpop.xlane.xlu0 %956
  %v958 = vsel %vm921, %v617, -inf
  %v959 = vmax.f32 %v615, %v958
  %960 = vmax.xlane.f32.xlu0 %v959
  %v961 = vpop.xlane.xlu0 %960
  %v962 = vsel %vm921, %v623, -inf
  %v963 = vmax.f32 %v621, %v962
  %964 = vmax.xlane.f32.xlu0 %v963
  %v965 = vpop.xlane.xlu0 %964
  %v966 = vsel %vm921, %v627, -inf
  %v967 = vmax.f32 %v625, %v966
  %968 = vmax.xlane.f32.xlu0 %v967
  %v969 = vpop.xlane.xlu0 %968
  %v970 = vsel %vm921, %v633, -inf
  %v971 = vmax.f32 %v631, %v970
  %972 = vmax.xlane.f32.xlu0 %v971
  %v973 = vpop.xlane.xlu0 %972
  %v974 = vsel %vm921, %v637, -inf
  %v975 = vmax.f32 %v635, %v974
  %976 = vmax.xlane.f32.xlu0 %v975
  %v977 = vpop.xlane.xlu0 %976
  %v978 = vsel %vm921, %v643, -inf
  %v979 = vmax.f32 %v641, %v978
  %980 = vmax.xlane.f32.xlu0 %v979
  %v981 = vpop.xlane.xlu0 %980
  %v982 = vsel %vm921, %v647, -inf
  %v983 = vmax.f32 %v645, %v982
  %984 = vmax.xlane.f32.xlu0 %v983
  %v985 = vpop.xlane.xlu0 %984
  %v986 = vsel %vm921, %v653, -inf
  %v987 = vmax.f32 %v651, %v986
  %988 = vmax.xlane.f32.xlu0 %v987
  %v989 = vpop.xlane.xlu0 %988
  %v990 = vsel %vm921, %v657, -inf
  %v991 = vmax.f32 %v655, %v990
  %992 = vmax.xlane.f32.xlu0 %v991
  %v993 = vpop.xlane.xlu0 %992
  %v994 = vsel %vm921, %v663, -inf
  %v995 = vmax.f32 %v661, %v994
  %996 = vmax.xlane.f32.xlu0 %v995
  %v997 = vpop.xlane.xlu0 %996
  %v998 = vsel %vm921, %v667, -inf
  %v999 = vmax.f32 %v665, %v998
  %1000 = vmax.xlane.f32.xlu0 %v999
  %v1001 = vpop.xlane.xlu0 %1000
  %v1002 = vsel %vm921, %v673, -inf
  %v1003 = vmax.f32 %v671, %v1002
  %1004 = vmax.xlane.f32.xlu0 %v1003
  %v1005 = vpop.xlane.xlu0 %1004
  %v1006 = vsel %vm921, %v677, -inf
  %v1007 = vmax.f32 %v675, %v1006
  %1008 = vmax.xlane.f32.xlu0 %v1007
  %v1009 = vpop.xlane.xlu0 %1008
  %v1010 = vsel %vm921, %v815, -inf
  %v1011 = vmax.f32 %v813, %v1010
  %1012 = vmax.xlane.f32.xlu0 %v1011
  %v1013 = vpop.xlane.xlu0 %1012
  %v1014 = vsel %vm921, %v819, -inf
  %v1015 = vmax.f32 %v817, %v1014
  %1016 = vmax.xlane.f32.xlu0 %v1015
  %v1017 = vpop.xlane.xlu0 %1016
  %v1018 = vsel %vm921, %v825, -inf
  %v1019 = vmax.f32 %v823, %v1018
  %1020 = vmax.xlane.f32.xlu0 %v1019
  %v1021 = vpop.xlane.xlu0 %1020
  %v1022 = vsel %vm921, %v829, -inf
  %v1023 = vmax.f32 %v827, %v1022
  %1024 = vmax.xlane.f32.xlu0 %v1023
  %v1025 = vpop.xlane.xlu0 %1024
  %v1026 = vsel %vm921, %v835, -inf
  %v1027 = vmax.f32 %v833, %v1026
  %1028 = vmax.xlane.f32.xlu0 %v1027
  %v1029 = vpop.xlane.xlu0 %1028
  %v1030 = vsel %vm921, %v839, -inf
  %v1031 = vmax.f32 %v837, %v1030
  %1032 = vmax.xlane.f32.xlu0 %v1031
  %v1033 = vpop.xlane.xlu0 %1032
  %v1034 = vsel %vm921, %v845, -inf
  %v1035 = vmax.f32 %v843, %v1034
  %1036 = vmax.xlane.f32.xlu0 %v1035
  %v1037 = vpop.xlane.xlu0 %1036
  %v1038 = vsel %vm921, %v849, -inf
  %v1039 = vmax.f32 %v847, %v1038
  %1040 = vmax.xlane.f32.xlu0 %v1039
  %v1041 = vpop.xlane.xlu0 %1040
  %v1042 = vsel %vm921, %v855, -inf
  %v1043 = vmax.f32 %v853, %v1042
  %1044 = vmax.xlane.f32.xlu0 %v1043
  %v1045 = vpop.xlane.xlu0 %1044
  %v1046 = vsel %vm921, %v859, -inf
  %v1047 = vmax.f32 %v857, %v1046
  %1048 = vmax.xlane.f32.xlu0 %v1047
  %v1049 = vpop.xlane.xlu0 %1048
  %v1050 = vsel %vm921, %v865, -inf
  %v1051 = vmax.f32 %v863, %v1050
  %1052 = vmax.xlane.f32.xlu0 %v1051
  %v1053 = vpop.xlane.xlu0 %1052
  %v1054 = vsel %vm921, %v869, -inf
  %v1055 = vmax.f32 %v867, %v1054
  %1056 = vmax.xlane.f32.xlu0 %v1055
  %v1057 = vpop.xlane.xlu0 %1056
  %v1058 = vsel %vm921, %v875, -inf
  %v1059 = vmax.f32 %v873, %v1058
  %1060 = vmax.xlane.f32.xlu0 %v1059
  %v1061 = vpop.xlane.xlu0 %1060
  %v1062 = vsel %vm921, %v879, -inf
  %v1063 = vmax.f32 %v877, %v1062
  %1064 = vmax.xlane.f32.xlu0 %v1063
  %v1065 = vpop.xlane.xlu0 %1064
  %v1066 = vsel %vm921, %v885, -inf
  %v1067 = vmax.f32 %v883, %v1066
  %1068 = vmax.xlane.f32.xlu0 %v1067
  %v1069 = vpop.xlane.xlu0 %1068
  %v1070 = vsel %vm921, %v889, -inf
  %v1071 = vmax.f32 %v887, %v1070
  %1072 = vmax.xlane.f32.xlu0 %v1071
  %v1073 = vpop.xlane.xlu0 %1072
  %v1074 = vsel %vm921, %v895, -inf
  %v1075 = vmax.f32 %v893, %v1074
  %1076 = vmax.xlane.f32.xlu0 %v1075
  %v1077 = vpop.xlane.xlu0 %1076
  %v1078 = vsel %vm921, %v899, -inf
  %v1079 = vmax.f32 %v897, %v1078
  %1080 = vmax.xlane.f32.xlu0 %v1079
  %v1081 = vpop.xlane.xlu0 %1080
  %v1082 = vsel %vm921, %v905, -inf
  %v1083 = vmax.f32 %v903, %v1082
  %1084 = vmax.xlane.f32.xlu0 %v1083
  %v1085 = vpop.xlane.xlu0 %1084
  %v1086 = vsel %vm921, %v909, -inf
  %v1087 = vmax.f32 %v907, %v1086
  %1088 = vmax.xlane.f32.xlu0 %v1087
  %v1089 = vpop.xlane.xlu0 %1088
  %v1090 = vsel %vm921, %v915, -inf
  %v1091 = vmax.f32 %v913, %v1090
  %1092 = vmax.xlane.f32.xlu0 %v1091
  %v1093 = vpop.xlane.xlu0 %1092
  %v1094 = vsel %vm921, %v919, -inf
  %v1095 = vmax.f32 %v917, %v1094
  %1096 = vmax.xlane.f32.xlu0 %v1095
  %v1097 = vpop.xlane.xlu0 %1096
  %v1098 = vsub.f32 %v571, %v925
  %v1099 = vsub.f32 %v573, %v925
  %v1100 = vsub.f32 %v575, %v929
  %v1101 = vsub.f32 %v577, %v929
  %v1102 = vsub.f32 %v581, %v933
  %v1103 = vsub.f32 %v583, %v933
  %v1104 = vsub.f32 %v585, %v937
  %v1105 = vsub.f32 %v587, %v937
  %v1106 = vsub.f32 %v591, %v941
  %v1107 = vsub.f32 %v593, %v941
  %v1108 = vsub.f32 %v595, %v945
  %v1109 = vsub.f32 %v597, %v945
  %v1110 = vsub.f32 %v601, %v949
  %v1111 = vsub.f32 %v603, %v949
  %v1112 = vsub.f32 %v605, %v953
  %v1113 = vsub.f32 %v607, %v953
  %v1114 = vsub.f32 %v611, %v957
  %v1115 = vsub.f32 %v613, %v957
  %v1116 = vsub.f32 %v615, %v961
  %v1117 = vsub.f32 %v617, %v961
  %v1118 = vsub.f32 %v621, %v965
  %v1119 = vsub.f32 %v623, %v965
  %v1120 = vsub.f32 %v625, %v969
  %v1121 = vsub.f32 %v627, %v969
  %v1122 = vsub.f32 %v631, %v973
  %v1123 = vsub.f32 %v633, %v973
  %v1124 = vsub.f32 %v635, %v977
  %v1125 = vsub.f32 %v637, %v977
  %v1126 = vsub.f32 %v641, %v981
  %v1127 = vsub.f32 %v643, %v981
  %v1128 = vsub.f32 %v645, %v985
  %v1129 = vsub.f32 %v647, %v985
  %v1130 = vsub.f32 %v651, %v989
  %v1131 = vsub.f32 %v653, %v989
  %v1132 = vsub.f32 %v655, %v993
  %v1133 = vsub.f32 %v657, %v993
  %v1134 = vsub.f32 %v661, %v997
  %v1135 = vsub.f32 %v663, %v997
  %v1136 = vsub.f32 %v665, %v1001
  %v1137 = vsub.f32 %v667, %v1001
  %v1138 = vsub.f32 %v671, %v1005
  %v1139 = vsub.f32 %v673, %v1005
  %v1140 = vsub.f32 %v675, %v1009
  %v1141 = vsub.f32 %v677, %v1009
  %v1142 = vsub.f32 %v813, %v1013
  %v1143 = vsub.f32 %v815, %v1013
  %v1144 = vsub.f32 %v817, %v1017
  %v1145 = vsub.f32 %v819, %v1017
  %v1146 = vsub.f32 %v823, %v1021
  %v1147 = vsub.f32 %v825, %v1021
  %v1148 = vsub.f32 %v827, %v1025
  %v1149 = vsub.f32 %v829, %v1025
  %v1150 = vsub.f32 %v833, %v1029
  %v1151 = vsub.f32 %v835, %v1029
  %v1152 = vsub.f32 %v837, %v1033
  %v1153 = vsub.f32 %v839, %v1033
  %v1154 = vsub.f32 %v843, %v1037
  %v1155 = vsub.f32 %v845, %v1037
  %v1156 = vsub.f32 %v847, %v1041
  %v1157 = vsub.f32 %v849, %v1041
  %v1158 = vsub.f32 %v853, %v1045
  %v1159 = vsub.f32 %v855, %v1045
  %v1160 = vsub.f32 %v857, %v1049
  %v1161 = vsub.f32 %v859, %v1049
  %v1162 = vsub.f32 %v863, %v1053
  %v1163 = vsub.f32 %v865, %v1053
  %v1164 = vsub.f32 %v867, %v1057
  %v1165 = vsub.f32 %v869, %v1057
  %v1166 = vsub.f32 %v873, %v1061
  %v1167 = vsub.f32 %v875, %v1061
  %v1168 = vsub.f32 %v877, %v1065
  %v1169 = vsub.f32 %v879, %v1065
  %v1170 = vsub.f32 %v883, %v1069
  %v1171 = vsub.f32 %v885, %v1069
  %v1172 = vsub.f32 %v887, %v1073
  %v1173 = vsub.f32 %v889, %v1073
  %v1174 = vsub.f32 %v893, %v1077
  %v1175 = vsub.f32 %v895, %v1077
  %v1176 = vsub.f32 %v897, %v1081
  %v1177 = vsub.f32 %v899, %v1081
  %v1178 = vsub.f32 %v903, %v1085
  %v1179 = vsub.f32 %v905, %v1085
  %v1180 = vsub.f32 %v907, %v1089
  %v1181 = vsub.f32 %v909, %v1089
  %v1182 = vsub.f32 %v913, %v1093
  %v1183 = vsub.f32 %v915, %v1093
  %v1184 = vsub.f32 %v917, %v1097
  %v1185 = vsub.f32 %v919, %v1097
  %v1186 = vmul.f32 %v1098, 1.442695
  %v1187 = vpow.pop %v1186
  %v1188 = vmul.f32 %v1099, 1.442695
  %v1189 = vpow.pop %v1188
  %v1190 = vmul.f32 %v1100, 1.442695
  %v1191 = vpow.pop %v1190
  %v1192 = vmul.f32 %v1101, 1.442695
  %v1193 = vpow.pop %v1192
  %v1194 = vmul.f32 %v1102, 1.442695
  %v1195 = vpow.pop %v1194
  %v1196 = vmul.f32 %v1103, 1.442695
  %v1197 = vpow.pop %v1196
  %v1198 = vmul.f32 %v1104, 1.442695
  %v1199 = vpow.pop %v1198
  %v1200 = vmul.f32 %v1105, 1.442695
  %v1201 = vpow.pop %v1200
  %v1202 = vmul.f32 %v1106, 1.442695
  %v1203 = vpow.pop %v1202
  %v1204 = vmul.f32 %v1107, 1.442695
  %v1205 = vpow.pop %v1204
  %v1206 = vmul.f32 %v1108, 1.442695
  %v1207 = vpow.pop %v1206
  %v1208 = vmul.f32 %v1109, 1.442695
  %v1209 = vpow.pop %v1208
  %v1210 = vmul.f32 %v1110, 1.442695
  %v1211 = vpow.pop %v1210
  %v1212 = vmul.f32 %v1111, 1.442695
  %v1213 = vpow.pop %v1212
  %v1214 = vmul.f32 %v1112, 1.442695
  %v1215 = vpow.pop %v1214
  %v1216 = vmul.f32 %v1113, 1.442695
  %v1217 = vpow.pop %v1216
  %v1218 = vmul.f32 %v1114, 1.442695
  %v1219 = vpow.pop %v1218
  %v1220 = vmul.f32 %v1115, 1.442695
  %v1221 = vpow.pop %v1220
  %v1222 = vmul.f32 %v1116, 1.442695
  %v1223 = vpow.pop %v1222
  %v1224 = vmul.f32 %v1117, 1.442695
  %v1225 = vpow.pop %v1224
  %v1226 = vmul.f32 %v1118, 1.442695
  %v1227 = vpow.pop %v1226
  %v1228 = vmul.f32 %v1119, 1.442695
  %v1229 = vpow.pop %v1228
  %v1230 = vmul.f32 %v1120, 1.442695
  %v1231 = vpow.pop %v1230
  %v1232 = vmul.f32 %v1121, 1.442695
  %v1233 = vpow.pop %v1232
  %v1234 = vmul.f32 %v1122, 1.442695
  %v1235 = vpow.pop %v1234
  %v1236 = vmul.f32 %v1123, 1.442695
  %v1237 = vpow.pop %v1236
  %v1238 = vmul.f32 %v1124, 1.442695
  %v1239 = vpow.pop %v1238
  %v1240 = vmul.f32 %v1125, 1.442695
  %v1241 = vpow.pop %v1240
  %v1242 = vmul.f32 %v1126, 1.442695
  %v1243 = vpow.pop %v1242
  %v1244 = vmul.f32 %v1127, 1.442695
  %v1245 = vpow.pop %v1244
  %v1246 = vmul.f32 %v1128, 1.442695
  %v1247 = vpow.pop %v1246
  %v1248 = vmul.f32 %v1129, 1.442695
  %v1249 = vpow.pop %v1248
  %v1250 = vmul.f32 %v1130, 1.442695
  %v1251 = vpow.pop %v1250
  %v1252 = vmul.f32 %v1131, 1.442695
  %v1253 = vpow.pop %v1252
  %v1254 = vmul.f32 %v1132, 1.442695
  %v1255 = vpow.pop %v1254
  %v1256 = vmul.f32 %v1133, 1.442695
  %v1257 = vpow.pop %v1256
  %v1258 = vmul.f32 %v1134, 1.442695
  %v1259 = vpow.pop %v1258
  %v1260 = vmul.f32 %v1135, 1.442695
  %v1261 = vpow.pop %v1260
  %v1262 = vmul.f32 %v1136, 1.442695
  %v1263 = vpow.pop %v1262
  %v1264 = vmul.f32 %v1137, 1.442695
  %v1265 = vpow.pop %v1264
  %v1266 = vmul.f32 %v1138, 1.442695
  %v1267 = vpow.pop %v1266
  %v1268 = vmul.f32 %v1139, 1.442695
  %v1269 = vpow.pop %v1268
  %v1270 = vmul.f32 %v1140, 1.442695
  %v1271 = vpow.pop %v1270
  %v1272 = vmul.f32 %v1141, 1.442695
  %v1273 = vpow.pop %v1272
  %v1274 = vmul.f32 %v1142, 1.442695
  %v1275 = vpow.pop %v1274
  %v1276 = vmul.f32 %v1143, 1.442695
  %v1277 = vpow.pop %v1276
  %v1278 = vmul.f32 %v1144, 1.442695
  %v1279 = vpow.pop %v1278
  %v1280 = vmul.f32 %v1145, 1.442695
  %v1281 = vpow.pop %v1280
  %v1282 = vmul.f32 %v1146, 1.442695
  %v1283 = vpow.pop %v1282
  %v1284 = vmul.f32 %v1147, 1.442695
  %v1285 = vpow.pop %v1284
  %v1286 = vmul.f32 %v1148, 1.442695
  %v1287 = vpow.pop %v1286
  %v1288 = vmul.f32 %v1149, 1.442695
  %v1289 = vpow.pop %v1288
  %v1290 = vmul.f32 %v1150, 1.442695
  %v1291 = vpow.pop %v1290
  %v1292 = vmul.f32 %v1151, 1.442695
  %v1293 = vpow.pop %v1292
  %v1294 = vmul.f32 %v1152, 1.442695
  %v1295 = vpow.pop %v1294
  %v1296 = vmul.f32 %v1153, 1.442695
  %v1297 = vpow.pop %v1296
  %v1298 = vmul.f32 %v1154, 1.442695
  %v1299 = vpow.pop %v1298
  %v1300 = vmul.f32 %v1155, 1.442695
  %v1301 = vpow.pop %v1300
  %v1302 = vmul.f32 %v1156, 1.442695
  %v1303 = vpow.pop %v1302
  %v1304 = vmul.f32 %v1157, 1.442695
  %v1305 = vpow.pop %v1304
  %v1306 = vmul.f32 %v1158, 1.442695
  %v1307 = vpow.pop %v1306
  %v1308 = vmul.f32 %v1159, 1.442695
  %v1309 = vpow.pop %v1308
  %v1310 = vmul.f32 %v1160, 1.442695
  %v1311 = vpow.pop %v1310
  %v1312 = vmul.f32 %v1161, 1.442695
  %v1313 = vpow.pop %v1312
  %v1314 = vmul.f32 %v1162, 1.442695
  %v1315 = vpow.pop %v1314
  %v1316 = vmul.f32 %v1163, 1.442695
  %v1317 = vpow.pop %v1316
  %v1318 = vmul.f32 %v1164, 1.442695
  %v1319 = vpow.pop %v1318
  %v1320 = vmul.f32 %v1165, 1.442695
  %v1321 = vpow.pop %v1320
  %v1322 = vmul.f32 %v1166, 1.442695
  %v1323 = vpow.pop %v1322
  %v1324 = vmul.f32 %v1167, 1.442695
  %v1325 = vpow.pop %v1324
  %v1326 = vmul.f32 %v1168, 1.442695
  %v1327 = vpow.pop %v1326
  %v1328 = vmul.f32 %v1169, 1.442695
  %v1329 = vpow.pop %v1328
  %v1330 = vmul.f32 %v1170, 1.442695
  %v1331 = vpow.pop %v1330
  %v1332 = vmul.f32 %v1171, 1.442695
  %v1333 = vpow.pop %v1332
  %v1334 = vmul.f32 %v1172, 1.442695
  %v1335 = vpow.pop %v1334
  %v1336 = vmul.f32 %v1173, 1.442695
  %v1337 = vpow.pop %v1336
  %v1338 = vmul.f32 %v1174, 1.442695
  %v1339 = vpow.pop %v1338
  %v1340 = vmul.f32 %v1175, 1.442695
  %v1341 = vpow.pop %v1340
  %v1342 = vmul.f32 %v1176, 1.442695
  %v1343 = vpow.pop %v1342
  %v1344 = vmul.f32 %v1177, 1.442695
  %v1345 = vpow.pop %v1344
  %v1346 = vmul.f32 %v1178, 1.442695
  %v1347 = vpow.pop %v1346
  %v1348 = vmul.f32 %v1179, 1.442695
  %v1349 = vpow.pop %v1348
  %v1350 = vmul.f32 %v1180, 1.442695
  %v1351 = vpow.pop %v1350
  %v1352 = vmul.f32 %v1181, 1.442695
  %v1353 = vpow.pop %v1352
  %v1354 = vmul.f32 %v1182, 1.442695
  %v1355 = vpow.pop %v1354
  %v1356 = vmul.f32 %v1183, 1.442695
  %v1357 = vpow.pop %v1356
  %v1358 = vmul.f32 %v1184, 1.442695
  %v1359 = vpow.pop %v1358
  %v1360 = vmul.f32 %v1185, 1.442695
  %v1361 = vpow.pop %v1360
  %v1362 = vsel %vm921, %v1189, 0.0
  %v1363 = vadd.f32 %v1187, %v1362
  %1364 = vadd.xlane.f32.xlu0 %v1363
  %v1365 = vpop.xlane.xlu0 %1364
  %v1366 = vsel %vm921, %v1193, 0.0
  %v1367 = vadd.f32 %v1191, %v1366
  %1368 = vadd.xlane.f32.xlu0 %v1367
  %v1369 = vpop.xlane.xlu0 %1368
  %v1370 = vsel %vm921, %v1197, 0.0
  %v1371 = vadd.f32 %v1195, %v1370
  %1372 = vadd.xlane.f32.xlu0 %v1371
  %v1373 = vpop.xlane.xlu0 %1372
  %v1374 = vsel %vm921, %v1201, 0.0
  %v1375 = vadd.f32 %v1199, %v1374
  %1376 = vadd.xlane.f32.xlu0 %v1375
  %v1377 = vpop.xlane.xlu0 %1376
  %v1378 = vsel %vm921, %v1205, 0.0
  %v1379 = vadd.f32 %v1203, %v1378
  %1380 = vadd.xlane.f32.xlu0 %v1379
  %v1381 = vpop.xlane.xlu0 %1380
  %v1382 = vsel %vm921, %v1209, 0.0
  %v1383 = vadd.f32 %v1207, %v1382
  %1384 = vadd.xlane.f32.xlu0 %v1383
  %v1385 = vpop.xlane.xlu0 %1384
  %v1386 = vsel %vm921, %v1213, 0.0
  %v1387 = vadd.f32 %v1211, %v1386
  %1388 = vadd.xlane.f32.xlu0 %v1387
  %v1389 = vpop.xlane.xlu0 %1388
  %v1390 = vsel %vm921, %v1217, 0.0
  %v1391 = vadd.f32 %v1215, %v1390
  %1392 = vadd.xlane.f32.xlu0 %v1391
  %v1393 = vpop.xlane.xlu0 %1392
  %v1394 = vsel %vm921, %v1221, 0.0
  %v1395 = vadd.f32 %v1219, %v1394
  %1396 = vadd.xlane.f32.xlu0 %v1395
  %v1397 = vpop.xlane.xlu0 %1396
  %v1398 = vsel %vm921, %v1225, 0.0
  %v1399 = vadd.f32 %v1223, %v1398
  %1400 = vadd.xlane.f32.xlu0 %v1399
  %v1401 = vpop.xlane.xlu0 %1400
  %v1402 = vsel %vm921, %v1229, 0.0
  %v1403 = vadd.f32 %v1227, %v1402
  %1404 = vadd.xlane.f32.xlu0 %v1403
  %v1405 = vpop.xlane.xlu0 %1404
  %v1406 = vsel %vm921, %v1233, 0.0
  %v1407 = vadd.f32 %v1231, %v1406
  %1408 = vadd.xlane.f32.xlu0 %v1407
  %v1409 = vpop.xlane.xlu0 %1408
  %v1410 = vsel %vm921, %v1237, 0.0
  %v1411 = vadd.f32 %v1235, %v1410
  %1412 = vadd.xlane.f32.xlu0 %v1411
  %v1413 = vpop.xlane.xlu0 %1412
  %v1414 = vsel %vm921, %v1241, 0.0
  %v1415 = vadd.f32 %v1239, %v1414
  %1416 = vadd.xlane.f32.xlu0 %v1415
  %v1417 = vpop.xlane.xlu0 %1416
  %v1418 = vsel %vm921, %v1245, 0.0
  %v1419 = vadd.f32 %v1243, %v1418
  %1420 = vadd.xlane.f32.xlu0 %v1419
  %v1421 = vpop.xlane.xlu0 %1420
  %v1422 = vsel %vm921, %v1249, 0.0
  %v1423 = vadd.f32 %v1247, %v1422
  %1424 = vadd.xlane.f32.xlu0 %v1423
  %v1425 = vpop.xlane.xlu0 %1424
  %v1426 = vsel %vm921, %v1253, 0.0
  %v1427 = vadd.f32 %v1251, %v1426
  %1428 = vadd.xlane.f32.xlu0 %v1427
  %v1429 = vpop.xlane.xlu0 %1428
  %v1430 = vsel %vm921, %v1257, 0.0
  %v1431 = vadd.f32 %v1255, %v1430
  %1432 = vadd.xlane.f32.xlu0 %v1431
  %v1433 = vpop.xlane.xlu0 %1432
  %v1434 = vsel %vm921, %v1261, 0.0
  %v1435 = vadd.f32 %v1259, %v1434
  %1436 = vadd.xlane.f32.xlu0 %v1435
  %v1437 = vpop.xlane.xlu0 %1436
  %v1438 = vsel %vm921, %v1265, 0.0
  %v1439 = vadd.f32 %v1263, %v1438
  %1440 = vadd.xlane.f32.xlu0 %v1439
  %v1441 = vpop.xlane.xlu0 %1440
  %v1442 = vsel %vm921, %v1269, 0.0
  %v1443 = vadd.f32 %v1267, %v1442
  %1444 = vadd.xlane.f32.xlu0 %v1443
  %v1445 = vpop.xlane.xlu0 %1444
  %v1446 = vsel %vm921, %v1273, 0.0
  %v1447 = vadd.f32 %v1271, %v1446
  %1448 = vadd.xlane.f32.xlu0 %v1447
  %v1449 = vpop.xlane.xlu0 %1448
  %v1450 = vsel %vm921, %v1277, 0.0
  %v1451 = vadd.f32 %v1275, %v1450
  %1452 = vadd.xlane.f32.xlu0 %v1451
  %v1453 = vpop.xlane.xlu0 %1452
  %v1454 = vsel %vm921, %v1281, 0.0
  %v1455 = vadd.f32 %v1279, %v1454
  %1456 = vadd.xlane.f32.xlu0 %v1455
  %v1457 = vpop.xlane.xlu0 %1456
  %v1458 = vsel %vm921, %v1285, 0.0
  %v1459 = vadd.f32 %v1283, %v1458
  %1460 = vadd.xlane.f32.xlu0 %v1459
  %v1461 = vpop.xlane.xlu0 %1460
  %v1462 = vsel %vm921, %v1289, 0.0
  %v1463 = vadd.f32 %v1287, %v1462
  %1464 = vadd.xlane.f32.xlu0 %v1463
  %v1465 = vpop.xlane.xlu0 %1464
  %v1466 = vsel %vm921, %v1293, 0.0
  %v1467 = vadd.f32 %v1291, %v1466
  %1468 = vadd.xlane.f32.xlu0 %v1467
  %v1469 = vpop.xlane.xlu0 %1468
  %v1470 = vsel %vm921, %v1297, 0.0
  %v1471 = vadd.f32 %v1295, %v1470
  %1472 = vadd.xlane.f32.xlu0 %v1471
  %v1473 = vpop.xlane.xlu0 %1472
  %v1474 = vsel %vm921, %v1301, 0.0
  %v1475 = vadd.f32 %v1299, %v1474
  %1476 = vadd.xlane.f32.xlu0 %v1475
  %v1477 = vpop.xlane.xlu0 %1476
  %v1478 = vsel %vm921, %v1305, 0.0
  %v1479 = vadd.f32 %v1303, %v1478
  %1480 = vadd.xlane.f32.xlu0 %v1479
  %v1481 = vpop.xlane.xlu0 %1480
  %v1482 = vsel %vm921, %v1309, 0.0
  %v1483 = vadd.f32 %v1307, %v1482
  %1484 = vadd.xlane.f32.xlu0 %v1483
  %v1485 = vpop.xlane.xlu0 %1484
  %v1486 = vsel %vm921, %v1313, 0.0
  %v1487 = vadd.f32 %v1311, %v1486
  %1488 = vadd.xlane.f32.xlu0 %v1487
  %v1489 = vpop.xlane.xlu0 %1488
  %v1490 = vsel %vm921, %v1317, 0.0
  %v1491 = vadd.f32 %v1315, %v1490
  %1492 = vadd.xlane.f32.xlu0 %v1491
  %v1493 = vpop.xlane.xlu0 %1492
  %v1494 = vsel %vm921, %v1321, 0.0
  %v1495 = vadd.f32 %v1319, %v1494
  %1496 = vadd.xlane.f32.xlu0 %v1495
  %v1497 = vpop.xlane.xlu0 %1496
  %v1498 = vsel %vm921, %v1325, 0.0
  %v1499 = vadd.f32 %v1323, %v1498
  %1500 = vadd.xlane.f32.xlu0 %v1499
  %v1501 = vpop.xlane.xlu0 %1500
  %v1502 = vsel %vm921, %v1329, 0.0
  %v1503 = vadd.f32 %v1327, %v1502
  %1504 = vadd.xlane.f32.xlu0 %v1503
  %v1505 = vpop.xlane.xlu0 %1504
  %v1506 = vsel %vm921, %v1333, 0.0
  %v1507 = vadd.f32 %v1331, %v1506
  %1508 = vadd.xlane.f32.xlu0 %v1507
  %v1509 = vpop.xlane.xlu0 %1508
  %v1510 = vsel %vm921, %v1337, 0.0
  %v1511 = vadd.f32 %v1335, %v1510
  %1512 = vadd.xlane.f32.xlu0 %v1511
  %v1513 = vpop.xlane.xlu0 %1512
  %v1514 = vsel %vm921, %v1341, 0.0
  %v1515 = vadd.f32 %v1339, %v1514
  %1516 = vadd.xlane.f32.xlu0 %v1515
  %v1517 = vpop.xlane.xlu0 %1516
  %v1518 = vsel %vm921, %v1345, 0.0
  %v1519 = vadd.f32 %v1343, %v1518
  %1520 = vadd.xlane.f32.xlu0 %v1519
  %v1521 = vpop.xlane.xlu0 %1520
  %v1522 = vsel %vm921, %v1349, 0.0
  %v1523 = vadd.f32 %v1347, %v1522
  %1524 = vadd.xlane.f32.xlu0 %v1523
  %v1525 = vpop.xlane.xlu0 %1524
  %v1526 = vsel %vm921, %v1353, 0.0
  %v1527 = vadd.f32 %v1351, %v1526
  %1528 = vadd.xlane.f32.xlu0 %v1527
  %v1529 = vpop.xlane.xlu0 %1528
  %v1530 = vsel %vm921, %v1357, 0.0
  %v1531 = vadd.f32 %v1355, %v1530
  %1532 = vadd.xlane.f32.xlu0 %v1531
  %v1533 = vpop.xlane.xlu0 %1532
  %v1534 = vsel %vm921, %v1361, 0.0
  %v1535 = vadd.f32 %v1359, %v1534
  %1536 = vadd.xlane.f32.xlu0 %v1535
  %v1537 = vpop.xlane.xlu0 %1536
  %v1538 = vpack.c.bf16 %v1191, %v1187
  %v1539 = vpack.c.bf16 %v1193, %v1189
  %v1540 = vpack.c.bf16 %v1199, %v1195
  %v1541 = vpack.c.bf16 %v1201, %v1197
  %v1542 = vpack.c.bf16 %v1207, %v1203
  %v1543 = vpack.c.bf16 %v1209, %v1205
  %v1544 = vpack.c.bf16 %v1215, %v1211
  %v1545 = vpack.c.bf16 %v1217, %v1213
  %v1546 = vpack.c.bf16 %v1223, %v1219
  %v1547 = vpack.c.bf16 %v1225, %v1221
  %v1548 = vpack.c.bf16 %v1231, %v1227
  %v1549 = vpack.c.bf16 %v1233, %v1229
  %v1550 = vpack.c.bf16 %v1239, %v1235
  %v1551 = vpack.c.bf16 %v1241, %v1237
  %v1552 = vpack.c.bf16 %v1247, %v1243
  %v1553 = vpack.c.bf16 %v1249, %v1245
  %v1554 = vpack.c.bf16 %v1255, %v1251
  %v1555 = vpack.c.bf16 %v1257, %v1253
  %v1556 = vpack.c.bf16 %v1263, %v1259
  %v1557 = vpack.c.bf16 %v1265, %v1261
  %v1558 = vpack.c.bf16 %v1271, %v1267
  %v1559 = vpack.c.bf16 %v1273, %v1269
  %v1560 = vpack.c.bf16 %v1279, %v1275
  %v1561 = vpack.c.bf16 %v1281, %v1277
  %v1562 = vpack.c.bf16 %v1287, %v1283
  %v1563 = vpack.c.bf16 %v1289, %v1285
  %v1564 = vpack.c.bf16 %v1295, %v1291
  %v1565 = vpack.c.bf16 %v1297, %v1293
  %v1566 = vpack.c.bf16 %v1303, %v1299
  %v1567 = vpack.c.bf16 %v1305, %v1301
  %v1568 = vpack.c.bf16 %v1311, %v1307
  %v1569 = vpack.c.bf16 %v1313, %v1309
  %v1570 = vpack.c.bf16 %v1319, %v1315
  %v1571 = vpack.c.bf16 %v1321, %v1317
  %v1572 = vpack.c.bf16 %v1327, %v1323
  %v1573 = vpack.c.bf16 %v1329, %v1325
  %v1574 = vpack.c.bf16 %v1335, %v1331
  %v1575 = vpack.c.bf16 %v1337, %v1333
  %v1576 = vpack.c.bf16 %v1343, %v1339
  %v1577 = vpack.c.bf16 %v1345, %v1341
  %v1578 = vpack.c.bf16 %v1351, %v1347
  %v1579 = vpack.c.bf16 %v1353, %v1349
  %v1580 = vpack.c.bf16 %v1359, %v1355
  %v1581 = vpack.c.bf16 %v1361, %v1357
  %1582 = vrot.lane.b32.xlu0 %v414, 96
  %v1583 = vpop.permute.xlu0 %1582
  %1584 = vrot.lane.b32.xlu0 %v415, 96
  %v1585 = vpop.permute.xlu0 %1584
  %1586 = vrot.lane.b32.xlu0 %v416, 96
  %v1587 = vpop.permute.xlu0 %1586
  %1588 = vrot.lane.b32.xlu0 %v417, 96
  %v1589 = vpop.permute.xlu0 %1588
  %1590 = vrot.lane.b32.xlu0 %v418, 96
  %v1591 = vpop.permute.xlu0 %1590
  %1592 = vrot.lane.b32.xlu0 %v419, 96
  %v1593 = vpop.permute.xlu0 %1592
  %1594 = vrot.lane.b32.xlu0 %v420, 96
  %v1595 = vpop.permute.xlu0 %1594
  %1596 = vrot.lane.b32.xlu0 %v421, 96
  %v1597 = vpop.permute.xlu0 %1596
  %1598 = vrot.lane.b32.xlu0 %v422, 96
  %v1599 = vpop.permute.xlu0 %1598
  %1600 = vrot.lane.b32.xlu0 %v423, 96
  %v1601 = vpop.permute.xlu0 %1600
  %1602 = vrot.lane.b32.xlu0 %v424, 96
  %v1603 = vpop.permute.xlu0 %1602
  %v1616 = vsel %vm921, %v1539, 0
  %v1619 = vsel %vm921, %v1541, 0
  %v1622 = vsel %vm921, %v1543, 0
  %v1625 = vsel %vm921, %v1545, 0
  %v1628 = vsel %vm921, %v1547, 0
  %v1631 = vsel %vm921, %v1549, 0
  %v1634 = vsel %vm921, %v1551, 0
  %v1637 = vsel %vm921, %v1553, 0
  %v1640 = vsel %vm921, %v1555, 0
  %v1643 = vsel %vm921, %v1557, 0
  %v1646 = vsel %vm921, %v1559, 0
  %1648 = vmatprep.subr.bf16.mxu0 0
  %1649 = vmatpush1.bf16.msra.mxu0 %v1583
  %1650 = vmatprep.subr.bf16.mxu0 0
  %1651 = vmatpush1.bf16.msra.mxu0 %v1585
  %1652 = vmatprep.subr.bf16.mxu0 0
  %1653 = vmatpush1.bf16.msra.mxu0 %v1587
  %1654 = vmatprep.subr.bf16.mxu0 0
  %1655 = vmatpush1.bf16.msra.mxu0 %v1589
  %1656 = vmatprep.subr.bf16.mxu0 0
  %1657 = vmatpush1.bf16.msra.mxu0 %v1591
  %1658 = vmatprep.subr.bf16.mxu0 0
  %1659 = vmatpush1.bf16.msra.mxu0 %v1593
  %1660 = vmatprep.subr.bf16.mxu0 0
  %1661 = vmatpush1.bf16.msra.mxu0 %v1595
  %1662 = vmatprep.subr.bf16.mxu0 0
  %1663 = vmatpush1.bf16.msra.mxu0 %v1597
  %1664 = vmatprep.subr.bf16.mxu0 0
  %1665 = vmatpush1.bf16.msra.mxu0 %v1599
  %1666 = vmatprep.subr.bf16.mxu0 0
  %1667 = vmatpush1.bf16.msra.mxu0 %v1601
  %1668 = vmatprep.subr.bf16.mxu0 0
  %1669 = vmatpush1.bf16.msra.mxu0 %v1603
  %1670 = vmatprep.subr.bf16.mxu0 0
  %1671 = vmatpush1.bf16.msra.mxu0 0
  %1672 = vmatprep.subr.bf16.mxu0 0
  %1673 = vmatpush1.bf16.msra.mxu0 0
  %1674 = vmatprep.subr.bf16.mxu0 0
  %1675 = vmatpush1.bf16.msra.mxu0 0
  %1676 = vmatprep.subr.bf16.mxu0 0
  %1677 = vmatpush1.bf16.msra.mxu0 0
  %1678 = vmatprep.subr.bf16.mxu0 0
  %1679 = vmatpush1.bf16.msra.mxu0 0
  %1680 = vmatprep.mubr.bf16.mxu0 %v1616
  %1681 = vmatmul.mubr.bf16.gmra.mrb[0].mxu0 %v1538
  %v1682 = vpop.f32.mrb[0].mxu0
  %v1683 = vadd.f32 0.0, %v1682
  %v1684 = vpop.f32.mrb[0].mxu0
  %v1685 = vpop.f32.mrb[0].mxu0
  %v1686 = vadd.f32 0.0, %v1685
  %v1687 = vpop.f32.mrb[0].mxu0
  %1688 = vmatprep.mubr.bf16.mxu0 %v1619
  %1689 = vmatmul.mubr.bf16.gmra.mrb[0].mxu0 %v1540
  %v1690 = vpop.f32.mrb[0].mxu0
  %v1691 = vadd.f32 0.0, %v1690
  %v1692 = vpop.f32.mrb[0].mxu0
  %v1693 = vpop.f32.mrb[0].mxu0
  %v1694 = vadd.f32 0.0, %v1693
  %v1695 = vpop.f32.mrb[0].mxu0
  %1696 = vmatprep.mubr.bf16.mxu0 %v1622
  %1697 = vmatmul.mubr.bf16.gmra.mrb[0].mxu0 %v1542
  %v1698 = vpop.f32.mrb[0].mxu0
  %v1699 = vadd.f32 0.0, %v1698
  %v1700 = vpop.f32.mrb[0].mxu0
  %v1701 = vpop.f32.mrb[0].mxu0
  %v1702 = vadd.f32 0.0, %v1701
  %v1703 = vpop.f32.mrb[0].mxu0
  %1704 = vmatprep.mubr.bf16.mxu0 %v1625
  %1705 = vmatmul.mubr.bf16.gmra.mrb[0].mxu0 %v1544
  %v1706 = vpop.f32.mrb[0].mxu0
  %v1707 = vadd.f32 0.0, %v1706
  %v1708 = vpop.f32.mrb[0].mxu0
  %v1709 = vpop.f32.mrb[0].mxu0
  %v1710 = vadd.f32 0.0, %v1709
  %v1711 = vpop.f32.mrb[0].mxu0
  %1712 = vmatprep.mubr.bf16.mxu0 %v1628
  %1713 = vmatmul.mubr.bf16.gmra.mrb[0].mxu0 %v1546
  %v1714 = vpop.f32.mrb[0].mxu0
  %v1715 = vadd.f32 0.0, %v1714
  %v1716 = vpop.f32.mrb[0].mxu0
  %v1717 = vpop.f32.mrb[0].mxu0
  %v1718 = vadd.f32 0.0, %v1717
  %v1719 = vpop.f32.mrb[0].mxu0
  %1720 = vmatprep.mubr.bf16.mxu0 %v1631
  %1721 = vmatmul.mubr.bf16.gmra.mrb[0].mxu0 %v1548
  %v1722 = vpop.f32.mrb[0].mxu0
  %v1723 = vadd.f32 0.0, %v1722
  %v1724 = vpop.f32.mrb[0].mxu0
  %v1725 = vpop.f32.mrb[0].mxu0
  %v1726 = vadd.f32 0.0, %v1725
  %v1727 = vpop.f32.mrb[0].mxu0
  %1728 = vmatprep.mubr.bf16.mxu0 %v1634
  %1729 = vmatmul.mubr.bf16.gmra.mrb[0].mxu0 %v1550
  %v1730 = vpop.f32.mrb[0].mxu0
  %v1731 = vadd.f32 0.0, %v1730
  %v1732 = vpop.f32.mrb[0].mxu0
  %v1733 = vpop.f32.mrb[0].mxu0
  %v1734 = vadd.f32 0.0, %v1733
  %v1735 = vpop.f32.mrb[0].mxu0
  %1736 = vmatprep.mubr.bf16.mxu0 %v1637
  %1737 = vmatmul.mubr.bf16.gmra.mrb[0].mxu0 %v1552
  %v1738 = vpop.f32.mrb[0].mxu0
  %v1739 = vadd.f32 0.0, %v1738
  %v1740 = vpop.f32.mrb[0].mxu0
  %v1741 = vpop.f32.mrb[0].mxu0
  %v1742 = vadd.f32 0.0, %v1741
  %v1743 = vpop.f32.mrb[0].mxu0
  %1744 = vmatprep.mubr.bf16.mxu0 %v1640
  %1745 = vmatmul.mubr.bf16.gmra.mrb[0].mxu0 %v1554
  %v1746 = vpop.f32.mrb[0].mxu0
  %v1747 = vadd.f32 0.0, %v1746
  %v1748 = vpop.f32.mrb[0].mxu0
  %v1749 = vpop.f32.mrb[0].mxu0
  %v1750 = vadd.f32 0.0, %v1749
  %v1751 = vpop.f32.mrb[0].mxu0
  %1752 = vmatprep.mubr.bf16.mxu0 %v1643
  %1753 = vmatmul.mubr.bf16.gmra.mrb[0].mxu0 %v1556
  %v1754 = vpop.f32.mrb[0].mxu0
  %v1755 = vadd.f32 0.0, %v1754
  %v1756 = vpop.f32.mrb[0].mxu0
  %v1757 = vpop.f32.mrb[0].mxu0
  %v1758 = vadd.f32 0.0, %v1757
  %v1759 = vpop.f32.mrb[0].mxu0
  %1760 = vmatprep.mubr.bf16.mxu0 %v1646
  %1761 = vmatmul.mubr.bf16.gmra.mrb[0].mxu0 %v1558
  %v1762 = vpop.f32.mrb[0].mxu0
  %v1763 = vadd.f32 0.0, %v1762
  %v1764 = vpop.f32.mrb[0].mxu0
  %v1765 = vpop.f32.mrb[0].mxu0
  %v1766 = vadd.f32 0.0, %v1765
  %v1767 = vpop.f32.mrb[0].mxu0
  %1768 = vdwg.mxu0
  %1769 = vrot.lane.b32.xlu0 %v425, 96
  %v1770 = vpop.permute.xlu0 %1769
  %1771 = vrot.lane.b32.xlu0 %v426, 96
  %v1772 = vpop.permute.xlu0 %1771
  %1773 = vrot.lane.b32.xlu0 %v427, 96
  %v1774 = vpop.permute.xlu0 %1773
  %1775 = vrot.lane.b32.xlu0 %v428, 96
  %v1776 = vpop.permute.xlu0 %1775
  %1777 = vrot.lane.b32.xlu0 %v429, 96
  %v1778 = vpop.permute.xlu0 %1777
  %1779 = vrot.lane.b32.xlu0 %v430, 96
  %v1780 = vpop.permute.xlu0 %1779
  %1781 = vrot.lane.b32.xlu0 %v431, 96
  %v1782 = vpop.permute.xlu0 %1781
  %1783 = vrot.lane.b32.xlu0 %v432, 96
  %v1784 = vpop.permute.xlu0 %1783
  %1785 = vrot.lane.b32.xlu0 %v433, 96
  %v1786 = vpop.permute.xlu0 %1785
  %1787 = vrot.lane.b32.xlu0 %v434, 96
  %v1788 = vpop.permute.xlu0 %1787
  %1789 = vrot.lane.b32.xlu0 %v435, 96
  %v1790 = vpop.permute.xlu0 %1789
  %v1803 = vsel %vm921, %v1561, 0
  %v1806 = vsel %vm921, %v1563, 0
  %v1809 = vsel %vm921, %v1565, 0
  %v1812 = vsel %vm921, %v1567, 0
  %v1815 = vsel %vm921, %v1569, 0
  %v1818 = vsel %vm921, %v1571, 0
  %v1821 = vsel %vm921, %v1573, 0
  %v1824 = vsel %vm921, %v1575, 0
  %v1827 = vsel %vm921, %v1577, 0
  %v1830 = vsel %vm921, %v1579, 0
  %v1833 = vsel %vm921, %v1581, 0
  %1835 = vmatprep.subr.bf16.mxu0 0
  %1836 = vmatpush1.bf16.msra.mxu0 %v1770
  %1837 = vmatprep.subr.bf16.mxu0 0
  %1838 = vmatpush1.bf16.msra.mxu0 %v1772
  %1839 = vmatprep.subr.bf16.mxu0 0
  %1840 = vmatpush1.bf16.msra.mxu0 %v1774
  %1841 = vmatprep.subr.bf16.mxu0 0
  %1842 = vmatpush1.bf16.msra.mxu0 %v1776
  %1843 = vmatprep.subr.bf16.mxu0 0
  %1844 = vmatpush1.bf16.msra.mxu0 %v1778
  %1845 = vmatprep.subr.bf16.mxu0 0
  %1846 = vmatpush1.bf16.msra.mxu0 %v1780
  %1847 = vmatprep.subr.bf16.mxu0 0
  %1848 = vmatpush1.bf16.msra.mxu0 %v1782
  %1849 = vmatprep.subr.bf16.mxu0 0
  %1850 = vmatpush1.bf16.msra.mxu0 %v1784
  %1851 = vmatprep.subr.bf16.mxu0 0
  %1852 = vmatpush1.bf16.msra.mxu0 %v1786
  %1853 = vmatprep.subr.bf16.mxu0 0
  %1854 = vmatpush1.bf16.msra.mxu0 %v1788
  %1855 = vmatprep.subr.bf16.mxu0 0
  %1856 = vmatpush1.bf16.msra.mxu0 %v1790
  %1857 = vmatprep.subr.bf16.mxu0 0
  %1858 = vmatpush1.bf16.msra.mxu0 0
  %1859 = vmatprep.subr.bf16.mxu0 0
  %1860 = vmatpush1.bf16.msra.mxu0 0
  %1861 = vmatprep.subr.bf16.mxu0 0
  %1862 = vmatpush1.bf16.msra.mxu0 0
  %1863 = vmatprep.subr.bf16.mxu0 0
  %1864 = vmatpush1.bf16.msra.mxu0 0
  %1865 = vmatprep.subr.bf16.mxu0 0
  %1866 = vmatpush1.bf16.msra.mxu0 0
  %1867 = vmatprep.mubr.bf16.mxu0 %v1803
  %1868 = vmatmul.mubr.bf16.gmra.mrb[0].mxu0 %v1560
  %v1869 = vpop.f32.mrb[0].mxu0
  %v1870 = vadd.f32 0.0, %v1869
  %v1871 = vpop.f32.mrb[0].mxu0
  %v1872 = vpop.f32.mrb[0].mxu0
  %v1873 = vadd.f32 0.0, %v1872
  %v1874 = vpop.f32.mrb[0].mxu0
  %1875 = vmatprep.mubr.bf16.mxu0 %v1806
  %1876 = vmatmul.mubr.bf16.gmra.mrb[0].mxu0 %v1562
  %v1877 = vpop.f32.mrb[0].mxu0
  %v1878 = vadd.f32 0.0, %v1877
  %v1879 = vpop.f32.mrb[0].mxu0
  %v1880 = vpop.f32.mrb[0].mxu0
  %v1881 = vadd.f32 0.0, %v1880
  %v1882 = vpop.f32.mrb[0].mxu0
  %1883 = vmatprep.mubr.bf16.mxu0 %v1809
  %1884 = vmatmul.mubr.bf16.gmra.mrb[0].mxu0 %v1564
  %v1885 = vpop.f32.mrb[0].mxu0
  %v1886 = vadd.f32 0.0, %v1885
  %v1887 = vpop.f32.mrb[0].mxu0
  %v1888 = vpop.f32.mrb[0].mxu0
  %v1889 = vadd.f32 0.0, %v1888
  %v1890 = vpop.f32.mrb[0].mxu0
  %1891 = vmatprep.mubr.bf16.mxu0 %v1812
  %1892 = vmatmul.mubr.bf16.gmra.mrb[0].mxu0 %v1566
  %v1893 = vpop.f32.mrb[0].mxu0
  %v1894 = vadd.f32 0.0, %v1893
  %v1895 = vpop.f32.mrb[0].mxu0
  %v1896 = vpop.f32.mrb[0].mxu0
  %v1897 = vadd.f32 0.0, %v1896
  %v1898 = vpop.f32.mrb[0].mxu0
  %1899 = vmatprep.mubr.bf16.mxu0 %v1815
  %1900 = vmatmul.mubr.bf16.gmra.mrb[0].mxu0 %v1568
  %v1901 = vpop.f32.mrb[0].mxu0
  %v1902 = vadd.f32 0.0, %v1901
  %v1903 = vpop.f32.mrb[0].mxu0
  %v1904 = vpop.f32.mrb[0].mxu0
  %v1905 = vadd.f32 0.0, %v1904
  %v1906 = vpop.f32.mrb[0].mxu0
  %1907 = vmatprep.mubr.bf16.mxu0 %v1818
  %1908 = vmatmul.mubr.bf16.gmra.mrb[0].mxu0 %v1570
  %v1909 = vpop.f32.mrb[0].mxu0
  %v1910 = vadd.f32 0.0, %v1909
  %v1911 = vpop.f32.mrb[0].mxu0
  %v1912 = vpop.f32.mrb[0].mxu0
  %v1913 = vadd.f32 0.0, %v1912
  %v1914 = vpop.f32.mrb[0].mxu0
  %1915 = vmatprep.mubr.bf16.mxu0 %v1821
  %1916 = vmatmul.mubr.bf16.gmra.mrb[0].mxu0 %v1572
  %v1917 = vpop.f32.mrb[0].mxu0
  %v1918 = vadd.f32 0.0, %v1917
  %v1919 = vpop.f32.mrb[0].mxu0
  %v1920 = vpop.f32.mrb[0].mxu0
  %v1921 = vadd.f32 0.0, %v1920
  %v1922 = vpop.f32.mrb[0].mxu0
  %1923 = vmatprep.mubr.bf16.mxu0 %v1824
  %1924 = vmatmul.mubr.bf16.gmra.mrb[0].mxu0 %v1574
  %v1925 = vpop.f32.mrb[0].mxu0
  %v1926 = vadd.f32 0.0, %v1925
  %v1927 = vpop.f32.mrb[0].mxu0
  %v1928 = vpop.f32.mrb[0].mxu0
  %v1929 = vadd.f32 0.0, %v1928
  %v1930 = vpop.f32.mrb[0].mxu0
  %1931 = vmatprep.mubr.bf16.mxu0 %v1827
  %1932 = vmatmul.mubr.bf16.gmra.mrb[0].mxu0 %v1576
  %v1933 = vpop.f32.mrb[0].mxu0
  %v1934 = vadd.f32 0.0, %v1933
  %v1935 = vpop.f32.mrb[0].mxu0
  %v1936 = vpop.f32.mrb[0].mxu0
  %v1937 = vadd.f32 0.0, %v1936
  %v1938 = vpop.f32.mrb[0].mxu0
  %1939 = vmatprep.mubr.bf16.mxu0 %v1830
  %1940 = vmatmul.mubr.bf16.gmra.mrb[0].mxu0 %v1578
  %v1941 = vpop.f32.mrb[0].mxu0
  %v1942 = vadd.f32 0.0, %v1941
  %v1943 = vpop.f32.mrb[0].mxu0
  %v1944 = vpop.f32.mrb[0].mxu0
  %v1945 = vadd.f32 0.0, %v1944
  %v1946 = vpop.f32.mrb[0].mxu0
  %1947 = vmatprep.mubr.bf16.mxu0 %v1833
  %1948 = vmatmul.mubr.bf16.gmra.mrb[0].mxu0 %v1580
  %v1949 = vpop.f32.mrb[0].mxu0
  %v1950 = vadd.f32 0.0, %v1949
  %v1951 = vpop.f32.mrb[0].mxu0
  %v1952 = vpop.f32.mrb[0].mxu0
  %v1953 = vadd.f32 0.0, %v1952
  %v1954 = vpop.f32.mrb[0].mxu0
  %1955 = vdwg.mxu0
  %v1956 = vrcp.pop %v1365
  %v1957 = vrcp.pop %v1369
  %v1958 = vrcp.pop %v1373
  %v1959 = vrcp.pop %v1377
  %v1960 = vrcp.pop %v1381
  %v1961 = vrcp.pop %v1385
  %v1962 = vrcp.pop %v1389
  %v1963 = vrcp.pop %v1393
  %v1964 = vrcp.pop %v1397
  %v1965 = vrcp.pop %v1401
  %v1966 = vrcp.pop %v1405
  %v1967 = vrcp.pop %v1409
  %v1968 = vrcp.pop %v1413
  %v1969 = vrcp.pop %v1417
  %v1970 = vrcp.pop %v1421
  %v1971 = vrcp.pop %v1425
  %v1972 = vrcp.pop %v1429
  %v1973 = vrcp.pop %v1433
  %v1974 = vrcp.pop %v1437
  %v1975 = vrcp.pop %v1441
  %v1976 = vrcp.pop %v1445
  %v1977 = vrcp.pop %v1449
  %v1978 = vrcp.pop %v1453
  %v1979 = vrcp.pop %v1457
  %v1980 = vrcp.pop %v1461
  %v1981 = vrcp.pop %v1465
  %v1982 = vrcp.pop %v1469
  %v1983 = vrcp.pop %v1473
  %v1984 = vrcp.pop %v1477
  %v1985 = vrcp.pop %v1481
  %v1986 = vrcp.pop %v1485
  %v1987 = vrcp.pop %v1489
  %v1988 = vrcp.pop %v1493
  %v1989 = vrcp.pop %v1497
  %v1990 = vrcp.pop %v1501
  %v1991 = vrcp.pop %v1505
  %v1992 = vrcp.pop %v1509
  %v1993 = vrcp.pop %v1513
  %v1994 = vrcp.pop %v1517
  %v1995 = vrcp.pop %v1521
  %v1996 = vrcp.pop %v1525
  %v1997 = vrcp.pop %v1529
  %v1998 = vrcp.pop %v1533
  %v1999 = vrcp.pop %v1537
  %v2000 = vmul.f32 %v1683, %v1956
  %v2001 = vmul.f32 %v1686, %v1957
  %v2002 = vmul.f32 %v1691, %v1958
  %v2003 = vmul.f32 %v1694, %v1959
  %v2004 = vmul.f32 %v1699, %v1960
  %v2005 = vmul.f32 %v1702, %v1961
  %v2006 = vmul.f32 %v1707, %v1962
  %v2007 = vmul.f32 %v1710, %v1963
  %v2008 = vmul.f32 %v1715, %v1964
  %v2009 = vmul.f32 %v1718, %v1965
  %v2010 = vmul.f32 %v1723, %v1966
  %v2011 = vmul.f32 %v1726, %v1967
  %v2012 = vmul.f32 %v1731, %v1968
  %v2013 = vmul.f32 %v1734, %v1969
  %v2014 = vmul.f32 %v1739, %v1970
  %v2015 = vmul.f32 %v1742, %v1971
  %v2016 = vmul.f32 %v1747, %v1972
  %v2017 = vmul.f32 %v1750, %v1973
  %v2018 = vmul.f32 %v1755, %v1974
  %v2019 = vmul.f32 %v1758, %v1975
  %v2020 = vmul.f32 %v1763, %v1976
  %v2021 = vmul.f32 %v1766, %v1977
  %v2022 = vmul.f32 %v1870, %v1978
  %v2023 = vmul.f32 %v1873, %v1979
  %v2024 = vmul.f32 %v1878, %v1980
  %v2025 = vmul.f32 %v1881, %v1981
  %v2026 = vmul.f32 %v1886, %v1982
  %v2027 = vmul.f32 %v1889, %v1983
  %v2028 = vmul.f32 %v1894, %v1984
  %v2029 = vmul.f32 %v1897, %v1985
  %v2030 = vmul.f32 %v1902, %v1986
  %v2031 = vmul.f32 %v1905, %v1987
  %v2032 = vmul.f32 %v1910, %v1988
  %v2033 = vmul.f32 %v1913, %v1989
  %v2034 = vmul.f32 %v1918, %v1990
  %v2035 = vmul.f32 %v1921, %v1991
  %v2036 = vmul.f32 %v1926, %v1992
  %v2037 = vmul.f32 %v1929, %v1993
  %v2038 = vmul.f32 %v1934, %v1994
  %v2039 = vmul.f32 %v1937, %v1995
  %v2040 = vmul.f32 %v1942, %v1996
  %v2041 = vmul.f32 %v1945, %v1997
  %v2042 = vmul.f32 %v1950, %v1998
  %v2043 = vmul.f32 %v1953, %v1999
  %2044 = vst.msk [vmem:[%s4] sm:$0xff] %vm469, %v2000
  %2045 = vst.msk [vmem:[%s4 + $0x8] sm:$0xff] %vm469, %v2001
  %2046 = vst.msk [vmem:[%s4 + $0x10] sm:$0xff] %vm469, %v2002
  %2047 = vst.msk [vmem:[%s4 + $0x18] sm:$0xff] %vm469, %v2003
  %2048 = vst.msk [vmem:[%s4 + $0x20] sm:$0xff] %vm469, %v2004
  %2049 = vst.msk [vmem:[%s4 + $0x28] sm:$0xff] %vm469, %v2005
  %2050 = vst.msk [vmem:[%s4 + $0x30] sm:$0xff] %vm469, %v2006
  %2051 = vst.msk [vmem:[%s4 + $0x38] sm:$0xff] %vm469, %v2007
  %2052 = vst.msk [vmem:[%s4 + $0x40] sm:$0xff] %vm469, %v2008
  %2053 = vst.msk [vmem:[%s4 + $0x48] sm:$0xff] %vm469, %v2009
  %2054 = vst.msk [vmem:[%s4 + $0x50] sm:$0xff] %vm469, %v2010
  %2055 = vst.msk [vmem:[%s4 + $0x58] sm:$0xff] %vm469, %v2011
  %2056 = vst.msk [vmem:[%s4 + $0x60] sm:$0xff] %vm469, %v2012
  %2057 = vst.msk [vmem:[%s4 + $0x68] sm:$0xff] %vm469, %v2013
  %2058 = vst.msk [vmem:[%s4 + $0x70] sm:$0xff] %vm469, %v2014
  %2059 = vst.msk [vmem:[%s4 + $0x78] sm:$0xff] %vm469, %v2015
  %2060 = vst.msk [vmem:[%s4 + $0x80] sm:$0xff] %vm469, %v2016
  %2061 = vst.msk [vmem:[%s4 + $0x88] sm:$0xff] %vm469, %v2017
  %2062 = vst.msk [vmem:[%s4 + $0x90] sm:$0xff] %vm469, %v2018
  %2063 = vst.msk [vmem:[%s4 + $0x98] sm:$0xff] %vm469, %v2019
  %2064 = vst.msk [vmem:[%s4 + $0xa0] sm:$0xff] %vm469, %v2020
  %2065 = vst.msk [vmem:[%s4 + $0xa8] sm:$0xff] %vm469, %v2021
  %2066 = vst.msk [vmem:[%s4 + $0xb0] sm:$0xff] %vm469, %v2022
  %2067 = vst.msk [vmem:[%s4 + $0xb8] sm:$0xff] %vm469, %v2023
  %2068 = vst.msk [vmem:[%s4 + $0xc0] sm:$0xff] %vm469, %v2024
  %2069 = vst.msk [vmem:[%s4 + $0xc8] sm:$0xff] %vm469, %v2025
  %2070 = vst.msk [vmem:[%s4 + $0xd0] sm:$0xff] %vm469, %v2026
  %2071 = vst.msk [vmem:[%s4 + $0xd8] sm:$0xff] %vm469, %v2027
  %2072 = vst.msk [vmem:[%s4 + $0xe0] sm:$0xff] %vm469, %v2028
  %2073 = vst.msk [vmem:[%s4 + $0xe8] sm:$0xff] %vm469, %v2029
  %2074 = vst.msk [vmem:[%s4 + $0xf0] sm:$0xff] %vm469, %v2030
  %2075 = vst.msk [vmem:[%s4 + $0xf8] sm:$0xff] %vm469, %v2031
  %2076 = vst.msk [vmem:[%s4 + $0x100] sm:$0xff] %vm469, %v2032
  %2077 = vst.msk [vmem:[%s4 + $0x108] sm:$0xff] %vm469, %v2033
  %2078 = vst.msk [vmem:[%s4 + $0x110] sm:$0xff] %vm469, %v2034
  %2079 = vst.msk [vmem:[%s4 + $0x118] sm:$0xff] %vm469, %v2035
  %2080 = vst.msk [vmem:[%s4 + $0x120] sm:$0xff] %vm469, %v2036
  %2081 = vst.msk [vmem:[%s4 + $0x128] sm:$0xff] %vm469, %v2037
  %2082 = vst.msk [vmem:[%s4 + $0x130] sm:$0xff] %vm469, %v2038
  %2083 = vst.msk [vmem:[%s4 + $0x138] sm:$0xff] %vm469, %v2039
  %2084 = vst.msk [vmem:[%s4 + $0x140] sm:$0xff] %vm469, %v2040
  %2085 = vst.msk [vmem:[%s4 + $0x148] sm:$0xff] %vm469, %v2041
  %2086 = vst.msk [vmem:[%s4 + $0x150] sm:$0xff] %vm469, %v2042
  %2087 = vst.msk [vmem:[%s4 + $0x158] sm:$0xff] %vm469, %v2043
  %2088 = vrot.lane.b32.xlu0 %v414, 120
  %v2089 = vpop.permute.xlu0 %2088
  %2090 = vrot.lane.b32.xlu0 %v415, 120
  %v2091 = vpop.permute.xlu0 %2090
  %2092 = vrot.lane.b32.xlu0 %v416, 120
  %v2093 = vpop.permute.xlu0 %2092
  %2094 = vrot.lane.b32.xlu0 %v417, 120
  %v2095 = vpop.permute.xlu0 %2094
  %2096 = vrot.lane.b32.xlu0 %v418, 120
  %v2097 = vpop.permute.xlu0 %2096
  %2098 = vrot.lane.b32.xlu0 %v419, 120
  %v2099 = vpop.permute.xlu0 %2098
  %2100 = vrot.lane.b32.xlu0 %v420, 120
  %v2101 = vpop.permute.xlu0 %2100
  %2102 = vrot.lane.b32.xlu0 %v421, 120
  %v2103 = vpop.permute.xlu0 %2102
  %2104 = vrot.lane.b32.xlu0 %v422, 120
  %v2105 = vpop.permute.xlu0 %2104
  %2106 = vrot.lane.b32.xlu0 %v423, 120
  %v2107 = vpop.permute.xlu0 %2106
  %2108 = vrot.lane.b32.xlu0 %v424, 120
  %v2109 = vpop.permute.xlu0 %2108
  %2110 = vrot.lane.b32.xlu0 %v414, 104
  %v2111 = vpop.permute.xlu0 %2110
  %2112 = vrot.lane.b32.xlu0 %v415, 104
  %v2113 = vpop.permute.xlu0 %2112
  %2114 = vrot.lane.b32.xlu0 %v416, 104
  %v2115 = vpop.permute.xlu0 %2114
  %2116 = vrot.lane.b32.xlu0 %v417, 104
  %v2117 = vpop.permute.xlu0 %2116
  %2118 = vrot.lane.b32.xlu0 %v418, 104
  %v2119 = vpop.permute.xlu0 %2118
  %2120 = vrot.lane.b32.xlu0 %v419, 104
  %v2121 = vpop.permute.xlu0 %2120
  %2122 = vrot.lane.b32.xlu0 %v420, 104
  %v2123 = vpop.permute.xlu0 %2122
  %2124 = vrot.lane.b32.xlu0 %v421, 104
  %v2125 = vpop.permute.xlu0 %2124
  %2126 = vrot.lane.b32.xlu0 %v422, 104
  %v2127 = vpop.permute.xlu0 %2126
  %2128 = vrot.lane.b32.xlu0 %v423, 104
  %v2129 = vpop.permute.xlu0 %2128
  %2130 = vrot.lane.b32.xlu0 %v424, 104
  %v2131 = vpop.permute.xlu0 %2130
  %v2133 = vsel %vm469, %v2089, 0
  %v2136 = vsel %vm469, %v2091, 0
  %v2139 = vsel %vm469, %v2093, 0
  %v2142 = vsel %vm469, %v2095, 0
  %v2145 = vsel %vm469, %v2097, 0
  %v2148 = vsel %vm469, %v2099, 0
  %v2151 = vsel %vm469, %v2101, 0
  %v2154 = vsel %vm469, %v2103, 0
  %v2157 = vsel %vm469, %v2105, 0
  %v2160 = vsel %vm469, %v2107, 0
  %v2163 = vsel %vm469, %v2109, 0
  %v2166 = vsel %vm469, %v2111, 0
  %v2169 = vsel %vm469, %v2113, 0
  %v2172 = vsel %vm469, %v2115, 0
  %v2175 = vsel %vm469, %v2117, 0
  %v2178 = vsel %vm469, %v2119, 0
  %v2181 = vsel %vm469, %v2121, 0
  %v2184 = vsel %vm469, %v2123, 0
  %v2187 = vsel %vm469, %v2125, 0
  %v2190 = vsel %vm469, %v2127, 0
  %v2193 = vsel %vm469, %v2129, 0
  %v2196 = vsel %vm469, %v2131, 0
  %2198 = vmatprep.subr.bf16.mxu0 0
  %2199 = vmatpush1.bf16.xpose.msra.mxu0 %v2166
  %2200 = vmatprep.subr.bf16.mxu0 0
  %2201 = vmatpush1.bf16.xpose.msra.mxu0 %v2169
  %2202 = vmatprep.subr.bf16.mxu0 0
  %2203 = vmatpush1.bf16.xpose.msra.mxu0 %v2172
  %2204 = vmatprep.subr.bf16.mxu0 0
  %2205 = vmatpush1.bf16.xpose.msra.mxu0 %v2175
  %2206 = vmatprep.subr.bf16.mxu0 0
  %2207 = vmatpush1.bf16.xpose.msra.mxu0 %v2178
  %2208 = vmatprep.subr.bf16.mxu0 0
  %2209 = vmatpush1.bf16.xpose.msra.mxu0 %v2181
  %2210 = vmatprep.subr.bf16.mxu0 0
  %2211 = vmatpush1.bf16.xpose.msra.mxu0 %v2184
  %2212 = vmatprep.subr.bf16.mxu0 0
  %2213 = vmatpush1.bf16.xpose.msra.mxu0 %v2187
  %2214 = vmatprep.subr.bf16.mxu0 0
  %2215 = vmatpush1.bf16.xpose.msra.mxu0 %v2190
  %2216 = vmatprep.subr.bf16.mxu0 0
  %2217 = vmatpush1.bf16.xpose.msra.mxu0 %v2193
  %2218 = vmatprep.subr.bf16.mxu0 0
  %2219 = vmatpush1.bf16.xpose.msra.mxu0 %v2196
  %2220 = vmatprep.subr.bf16.mxu0 0
  %2221 = vmatpush1.bf16.xpose.msra.mxu0 0
  %2222 = vmatprep.subr.bf16.mxu0 0
  %2223 = vmatpush1.bf16.xpose.msra.mxu0 0
  %2224 = vmatprep.subr.bf16.mxu0 0
  %2225 = vmatpush1.bf16.xpose.msra.mxu0 0
  %2226 = vmatprep.subr.bf16.mxu0 0
  %2227 = vmatpush1.bf16.xpose.msra.mxu0 0
  %2228 = vmatprep.subr.bf16.mxu0 0
  %2229 = vmatpush1.bf16.xpose.msra.mxu0 0
  %2230 = vmatprep.mubr.bf16.mxu0 0
  %2231 = vmatmul.mubr.bf16.gmra.mrb[0].mxu0 %v2133
  %v2232 = vpop.f32.mrb[0].mxu0
  %v2233 = vadd.f32 %v370, %v2232
  %v2234 = vpop.f32.mrb[0].mxu0
  %v2235 = vadd.f32 %v371, %v2234
  %v2236 = vpop.f32.mrb[0].mxu0
  %v2237 = vadd.f32 %v372, %v2236
  %v2238 = vpop.f32.mrb[0].mxu0
  %v2239 = vadd.f32 %v373, %v2238
  %2240 = vmatprep.mubr.bf16.mxu0 0
  %2241 = vmatmul.mubr.bf16.gmra.mrb[0].mxu0 %v2136
  %v2242 = vpop.f32.mrb[0].mxu0
  %v2243 = vadd.f32 %v374, %v2242
  %v2244 = vpop.f32.mrb[0].mxu0
  %v2245 = vadd.f32 %v375, %v2244
  %v2246 = vpop.f32.mrb[0].mxu0
  %v2247 = vadd.f32 %v376, %v2246
  %v2248 = vpop.f32.mrb[0].mxu0
  %v2249 = vadd.f32 %v377, %v2248
  %2250 = vmatprep.mubr.bf16.mxu0 0
  %2251 = vmatmul.mubr.bf16.gmra.mrb[0].mxu0 %v2139
  %v2252 = vpop.f32.mrb[0].mxu0
  %v2253 = vadd.f32 %v378, %v2252
  %v2254 = vpop.f32.mrb[0].mxu0
  %v2255 = vadd.f32 %v379, %v2254
  %v2256 = vpop.f32.mrb[0].mxu0
  %v2257 = vadd.f32 %v380, %v2256
  %v2258 = vpop.f32.mrb[0].mxu0
  %v2259 = vadd.f32 %v381, %v2258
  %2260 = vmatprep.mubr.bf16.mxu0 0
  %2261 = vmatmul.mubr.bf16.gmra.mrb[0].mxu0 %v2142
  %v2262 = vpop.f32.mrb[0].mxu0
  %v2263 = vadd.f32 %v382, %v2262
  %v2264 = vpop.f32.mrb[0].mxu0
  %v2265 = vadd.f32 %v383, %v2264
  %v2266 = vpop.f32.mrb[0].mxu0
  %v2267 = vadd.f32 %v384, %v2266
  %v2268 = vpop.f32.mrb[0].mxu0
  %v2269 = vadd.f32 %v385, %v2268
  %2270 = vmatprep.mubr.bf16.mxu0 0
  %2271 = vmatmul.mubr.bf16.gmra.mrb[0].mxu0 %v2145
  %v2272 = vpop.f32.mrb[0].mxu0
  %v2273 = vadd.f32 %v386, %v2272
  %v2274 = vpop.f32.mrb[0].mxu0
  %v2275 = vadd.f32 %v387, %v2274
  %v2276 = vpop.f32.mrb[0].mxu0
  %v2277 = vadd.f32 %v388, %v2276
  %v2278 = vpop.f32.mrb[0].mxu0
  %v2279 = vadd.f32 %v389, %v2278
  %2280 = vmatprep.mubr.bf16.mxu0 0
  %2281 = vmatmul.mubr.bf16.gmra.mrb[0].mxu0 %v2148
  %v2282 = vpop.f32.mrb[0].mxu0
  %v2283 = vadd.f32 %v390, %v2282
  %v2284 = vpop.f32.mrb[0].mxu0
  %v2285 = vadd.f32 %v391, %v2284
  %v2286 = vpop.f32.mrb[0].mxu0
  %v2287 = vadd.f32 %v392, %v2286
  %v2288 = vpop.f32.mrb[0].mxu0
  %v2289 = vadd.f32 %v393, %v2288
  %2290 = vmatprep.mubr.bf16.mxu0 0
  %2291 = vmatmul.mubr.bf16.gmra.mrb[0].mxu0 %v2151
  %v2292 = vpop.f32.mrb[0].mxu0
  %v2293 = vadd.f32 %v394, %v2292
  %v2294 = vpop.f32.mrb[0].mxu0
  %v2295 = vadd.f32 %v395, %v2294
  %v2296 = vpop.f32.mrb[0].mxu0
  %v2297 = vadd.f32 %v396, %v2296
  %v2298 = vpop.f32.mrb[0].mxu0
  %v2299 = vadd.f32 %v397, %v2298
  %2300 = vmatprep.mubr.bf16.mxu0 0
  %2301 = vmatmul.mubr.bf16.gmra.mrb[0].mxu0 %v2154
  %v2302 = vpop.f32.mrb[0].mxu0
  %v2303 = vadd.f32 %v398, %v2302
  %v2304 = vpop.f32.mrb[0].mxu0
  %v2305 = vadd.f32 %v399, %v2304
  %v2306 = vpop.f32.mrb[0].mxu0
  %v2307 = vadd.f32 %v400, %v2306
  %v2308 = vpop.f32.mrb[0].mxu0
  %v2309 = vadd.f32 %v401, %v2308
  %2310 = vmatprep.mubr.bf16.mxu0 0
  %2311 = vmatmul.mubr.bf16.gmra.mrb[0].mxu0 %v2157
  %v2312 = vpop.f32.mrb[0].mxu0
  %v2313 = vadd.f32 %v402, %v2312
  %v2314 = vpop.f32.mrb[0].mxu0
  %v2315 = vadd.f32 %v403, %v2314
  %v2316 = vpop.f32.mrb[0].mxu0
  %v2317 = vadd.f32 %v404, %v2316
  %v2318 = vpop.f32.mrb[0].mxu0
  %v2319 = vadd.f32 %v405, %v2318
  %2320 = vmatprep.mubr.bf16.mxu0 0
  %2321 = vmatmul.mubr.bf16.gmra.mrb[0].mxu0 %v2160
  %v2322 = vpop.f32.mrb[0].mxu0
  %v2323 = vadd.f32 %v406, %v2322
  %v2324 = vpop.f32.mrb[0].mxu0
  %v2325 = vadd.f32 %v407, %v2324
  %v2326 = vpop.f32.mrb[0].mxu0
  %v2327 = vadd.f32 %v408, %v2326
  %v2328 = vpop.f32.mrb[0].mxu0
  %v2329 = vadd.f32 %v409, %v2328
  %2330 = vmatprep.mubr.bf16.mxu0 0
  %2331 = vmatmul.mubr.bf16.gmra.mrb[0].mxu0 %v2163
  %v2332 = vpop.f32.mrb[0].mxu0
  %v2333 = vadd.f32 %v410, %v2332
  %v2334 = vpop.f32.mrb[0].mxu0
  %v2335 = vadd.f32 %v411, %v2334
  %v2336 = vpop.f32.mrb[0].mxu0
  %v2337 = vadd.f32 %v412, %v2336
  %v2338 = vpop.f32.mrb[0].mxu0
  %v2339 = vadd.f32 %v413, %v2338
  %2340 = vdwg.mxu0
  %2341 = vrot.lane.b32.xlu0 %v425, 120
  %v2342 = vpop.permute.xlu0 %2341
  %2343 = vrot.lane.b32.xlu0 %v426, 120
  %v2344 = vpop.permute.xlu0 %2343
  %2345 = vrot.lane.b32.xlu0 %v427, 120
  %v2346 = vpop.permute.xlu0 %2345
  %2347 = vrot.lane.b32.xlu0 %v428, 120
  %v2348 = vpop.permute.xlu0 %2347
  %2349 = vrot.lane.b32.xlu0 %v429, 120
  %v2350 = vpop.permute.xlu0 %2349
  %2351 = vrot.lane.b32.xlu0 %v430, 120
  %v2352 = vpop.permute.xlu0 %2351
  %2353 = vrot.lane.b32.xlu0 %v431, 120
  %v2354 = vpop.permute.xlu0 %2353
  %2355 = vrot.lane.b32.xlu0 %v432, 120
  %v2356 = vpop.permute.xlu0 %2355
  %2357 = vrot.lane.b32.xlu0 %v433, 120
  %v2358 = vpop.permute.xlu0 %2357
  %2359 = vrot.lane.b32.xlu0 %v434, 120
  %v2360 = vpop.permute.xlu0 %2359
  %2361 = vrot.lane.b32.xlu0 %v435, 120
  %v2362 = vpop.permute.xlu0 %2361
  %2363 = vrot.lane.b32.xlu0 %v425, 104
  %v2364 = vpop.permute.xlu0 %2363
  %2365 = vrot.lane.b32.xlu0 %v426, 104
  %v2366 = vpop.permute.xlu0 %2365
  %2367 = vrot.lane.b32.xlu0 %v427, 104
  %v2368 = vpop.permute.xlu0 %2367
  %2369 = vrot.lane.b32.xlu0 %v428, 104
  %v2370 = vpop.permute.xlu0 %2369
  %2371 = vrot.lane.b32.xlu0 %v429, 104
  %v2372 = vpop.permute.xlu0 %2371
  %2373 = vrot.lane.b32.xlu0 %v430, 104
  %v2374 = vpop.permute.xlu0 %2373
  %2375 = vrot.lane.b32.xlu0 %v431, 104
  %v2376 = vpop.permute.xlu0 %2375
  %2377 = vrot.lane.b32.xlu0 %v432, 104
  %v2378 = vpop.permute.xlu0 %2377
  %2379 = vrot.lane.b32.xlu0 %v433, 104
  %v2380 = vpop.permute.xlu0 %2379
  %2381 = vrot.lane.b32.xlu0 %v434, 104
  %v2382 = vpop.permute.xlu0 %2381
  %2383 = vrot.lane.b32.xlu0 %v435, 104
  %v2384 = vpop.permute.xlu0 %2383
  %v2386 = vsel %vm469, %v2342, 0
  %v2389 = vsel %vm469, %v2344, 0
  %v2392 = vsel %vm469, %v2346, 0
  %v2395 = vsel %vm469, %v2348, 0
  %v2398 = vsel %vm469, %v2350, 0
  %v2401 = vsel %vm469, %v2352, 0
  %v2404 = vsel %vm469, %v2354, 0
  %v2407 = vsel %vm469, %v2356, 0
  %v2410 = vsel %vm469, %v2358, 0
  %v2413 = vsel %vm469, %v2360, 0
  %v2416 = vsel %vm469, %v2362, 0
  %v2419 = vsel %vm469, %v2364, 0
  %v2422 = vsel %vm469, %v2366, 0
  %v2425 = vsel %vm469, %v2368, 0
  %v2428 = vsel %vm469, %v2370, 0
  %v2431 = vsel %vm469, %v2372, 0
  %v2434 = vsel %vm469, %v2374, 0
  %v2437 = vsel %vm469, %v2376, 0
  %v2440 = vsel %vm469, %v2378, 0
  %v2443 = vsel %vm469, %v2380, 0
  %v2446 = vsel %vm469, %v2382, 0
  %v2449 = vsel %vm469, %v2384, 0
  %2451 = vmatprep.subr.bf16.mxu0 0
  %2452 = vmatpush1.bf16.xpose.msra.mxu0 %v2419
  %2453 = vmatprep.subr.bf16.mxu0 0
  %2454 = vmatpush1.bf16.xpose.msra.mxu0 %v2422
  %2455 = vmatprep.subr.bf16.mxu0 0
  %2456 = vmatpush1.bf16.xpose.msra.mxu0 %v2425
  %2457 = vmatprep.subr.bf16.mxu0 0
  %2458 = vmatpush1.bf16.xpose.msra.mxu0 %v2428
  %2459 = vmatprep.subr.bf16.mxu0 0
  %2460 = vmatpush1.bf16.xpose.msra.mxu0 %v2431
  %2461 = vmatprep.subr.bf16.mxu0 0
  %2462 = vmatpush1.bf16.xpose.msra.mxu0 %v2434
  %2463 = vmatprep.subr.bf16.mxu0 0
  %2464 = vmatpush1.bf16.xpose.msra.mxu0 %v2437
  %2465 = vmatprep.subr.bf16.mxu0 0
  %2466 = vmatpush1.bf16.xpose.msra.mxu0 %v2440
  %2467 = vmatprep.subr.bf16.mxu0 0
  %2468 = vmatpush1.bf16.xpose.msra.mxu0 %v2443
  %2469 = vmatprep.subr.bf16.mxu0 0
  %2470 = vmatpush1.bf16.xpose.msra.mxu0 %v2446
  %2471 = vmatprep.subr.bf16.mxu0 0
  %2472 = vmatpush1.bf16.xpose.msra.mxu0 %v2449
  %2473 = vmatprep.subr.bf16.mxu0 0
  %2474 = vmatpush1.bf16.xpose.msra.mxu0 0
  %2475 = vmatprep.subr.bf16.mxu0 0
  %2476 = vmatpush1.bf16.xpose.msra.mxu0 0
  %2477 = vmatprep.subr.bf16.mxu0 0
  %2478 = vmatpush1.bf16.xpose.msra.mxu0 0
  %2479 = vmatprep.subr.bf16.mxu0 0
  %2480 = vmatpush1.bf16.xpose.msra.mxu0 0
  %2481 = vmatprep.subr.bf16.mxu0 0
  %2482 = vmatpush1.bf16.xpose.msra.mxu0 0
  %2483 = vmatprep.mubr.bf16.mxu0 0
  %2484 = vmatmul.mubr.bf16.gmra.mrb[0].mxu0 %v2386
  %v2485 = vpop.f32.mrb[0].mxu0
  %v2486 = vadd.f32 %v370, %v2485
  %v2487 = vpop.f32.mrb[0].mxu0
  %v2488 = vadd.f32 %v371, %v2487
  %v2489 = vpop.f32.mrb[0].mxu0
  %v2490 = vadd.f32 %v372, %v2489
  %v2491 = vpop.f32.mrb[0].mxu0
  %v2492 = vadd.f32 %v373, %v2491
  %2493 = vmatprep.mubr.bf16.mxu0 0
  %2494 = vmatmul.mubr.bf16.gmra.mrb[0].mxu0 %v2389
  %v2495 = vpop.f32.mrb[0].mxu0
  %v2496 = vadd.f32 %v374, %v2495
  %v2497 = vpop.f32.mrb[0].mxu0
  %v2498 = vadd.f32 %v375, %v2497
  %v2499 = vpop.f32.mrb[0].mxu0
  %v2500 = vadd.f32 %v376, %v2499
  %v2501 = vpop.f32.mrb[0].mxu0
  %v2502 = vadd.f32 %v377, %v2501
  %2503 = vmatprep.mubr.bf16.mxu0 0
  %2504 = vmatmul.mubr.bf16.gmra.mrb[0].mxu0 %v2392
  %v2505 = vpop.f32.mrb[0].mxu0
  %v2506 = vadd.f32 %v378, %v2505
  %v2507 = vpop.f32.mrb[0].mxu0
  %v2508 = vadd.f32 %v379, %v2507
  %v2509 = vpop.f32.mrb[0].mxu0
  %v2510 = vadd.f32 %v380, %v2509
  %v2511 = vpop.f32.mrb[0].mxu0
  %v2512 = vadd.f32 %v381, %v2511
  %2513 = vmatprep.mubr.bf16.mxu0 0
  %2514 = vmatmul.mubr.bf16.gmra.mrb[0].mxu0 %v2395
  %v2515 = vpop.f32.mrb[0].mxu0
  %v2516 = vadd.f32 %v382, %v2515
  %v2517 = vpop.f32.mrb[0].mxu0
  %v2518 = vadd.f32 %v383, %v2517
  %v2519 = vpop.f32.mrb[0].mxu0
  %v2520 = vadd.f32 %v384, %v2519
  %v2521 = vpop.f32.mrb[0].mxu0
  %v2522 = vadd.f32 %v385, %v2521
  %2523 = vmatprep.mubr.bf16.mxu0 0
  %2524 = vmatmul.mubr.bf16.gmra.mrb[0].mxu0 %v2398
  %v2525 = vpop.f32.mrb[0].mxu0
  %v2526 = vadd.f32 %v386, %v2525
  %v2527 = vpop.f32.mrb[0].mxu0
  %v2528 = vadd.f32 %v387, %v2527
  %v2529 = vpop.f32.mrb[0].mxu0
  %v2530 = vadd.f32 %v388, %v2529
  %v2531 = vpop.f32.mrb[0].mxu0
  %v2532 = vadd.f32 %v389, %v2531
  %2533 = vmatprep.mubr.bf16.mxu0 0
  %2534 = vmatmul.mubr.bf16.gmra.mrb[0].mxu0 %v2401
  %v2535 = vpop.f32.mrb[0].mxu0
  %v2536 = vadd.f32 %v390, %v2535
  %v2537 = vpop.f32.mrb[0].mxu0
  %v2538 = vadd.f32 %v391, %v2537
  %v2539 = vpop.f32.mrb[0].mxu0
  %v2540 = vadd.f32 %v392, %v2539
  %v2541 = vpop.f32.mrb[0].mxu0
  %v2542 = vadd.f32 %v393, %v2541
  %2543 = vmatprep.mubr.bf16.mxu0 0
  %2544 = vmatmul.mubr.bf16.gmra.mrb[0].mxu0 %v2404
  %v2545 = vpop.f32.mrb[0].mxu0
  %v2546 = vadd.f32 %v394, %v2545
  %v2547 = vpop.f32.mrb[0].mxu0
  %v2548 = vadd.f32 %v395, %v2547
  %v2549 = vpop.f32.mrb[0].mxu0
  %v2550 = vadd.f32 %v396, %v2549
  %v2551 = vpop.f32.mrb[0].mxu0
  %v2552 = vadd.f32 %v397, %v2551
  %2553 = vmatprep.mubr.bf16.mxu0 0
  %2554 = vmatmul.mubr.bf16.gmra.mrb[0].mxu0 %v2407
  %v2555 = vpop.f32.mrb[0].mxu0
  %v2556 = vadd.f32 %v398, %v2555
  %v2557 = vpop.f32.mrb[0].mxu0
  %v2558 = vadd.f32 %v399, %v2557
  %v2559 = vpop.f32.mrb[0].mxu0
  %v2560 = vadd.f32 %v400, %v2559
  %v2561 = vpop.f32.mrb[0].mxu0
  %v2562 = vadd.f32 %v401, %v2561
  %2563 = vmatprep.mubr.bf16.mxu0 0
  %2564 = vmatmul.mubr.bf16.gmra.mrb[0].mxu0 %v2410
  %v2565 = vpop.f32.mrb[0].mxu0
  %v2566 = vadd.f32 %v402, %v2565
  %v2567 = vpop.f32.mrb[0].mxu0
  %v2568 = vadd.f32 %v403, %v2567
  %v2569 = vpop.f32.mrb[0].mxu0
  %v2570 = vadd.f32 %v404, %v2569
  %v2571 = vpop.f32.mrb[0].mxu0
  %v2572 = vadd.f32 %v405, %v2571
  %2573 = vmatprep.mubr.bf16.mxu0 0
  %2574 = vmatmul.mubr.bf16.gmra.mrb[0].mxu0 %v2413
  %v2575 = vpop.f32.mrb[0].mxu0
  %v2576 = vadd.f32 %v406, %v2575
  %v2577 = vpop.f32.mrb[0].mxu0
  %v2578 = vadd.f32 %v407, %v2577
  %v2579 = vpop.f32.mrb[0].mxu0
  %v2580 = vadd.f32 %v408, %v2579
  %v2581 = vpop.f32.mrb[0].mxu0
  %v2582 = vadd.f32 %v409, %v2581
  %2583 = vmatprep.mubr.bf16.mxu0 0
  %2584 = vmatmul.mubr.bf16.gmra.mrb[0].mxu0 %v2416
  %v2585 = vpop.f32.mrb[0].mxu0
  %v2586 = vadd.f32 %v410, %v2585
  %v2587 = vpop.f32.mrb[0].mxu0
  %v2588 = vadd.f32 %v411, %v2587
  %v2589 = vpop.f32.mrb[0].mxu0
  %v2590 = vadd.f32 %v412, %v2589
  %v2591 = vpop.f32.mrb[0].mxu0
  %v2592 = vadd.f32 %v413, %v2591
  %2593 = vdwg.mxu0
  %v2594 = vsel %vm921, %v2235, -inf
  %v2595 = vmax.f32 %v2233, %v2594
  %2596 = vmax.xlane.f32.xlu0 %v2595
  %v2597 = vpop.xlane.xlu0 %2596
  %v2598 = vsel %vm921, %v2239, -inf
  %v2599 = vmax.f32 %v2237, %v2598
  %2600 = vmax.xlane.f32.xlu0 %v2599
  %v2601 = vpop.xlane.xlu0 %2600
  %v2602 = vsel %vm921, %v2245, -inf
  %v2603 = vmax.f32 %v2243, %v2602
  %2604 = vmax.xlane.f32.xlu0 %v2603
  %v2605 = vpop.xlane.xlu0 %2604
  %v2606 = vsel %vm921, %v2249, -inf
  %v2607 = vmax.f32 %v2247, %v2606
  %2608 = vmax.xlane.f32.xlu0 %v2607
  %v2609 = vpop.xlane.xlu0 %2608
  %v2610 = vsel %vm921, %v2255, -inf
  %v2611 = vmax.f32 %v2253, %v2610
  %2612 = vmax.xlane.f32.xlu0 %v2611
  %v2613 = vpop.xlane.xlu0 %2612
  %v2614 = vsel %vm921, %v2259, -inf
  %v2615 = vmax.f32 %v2257, %v2614
  %2616 = vmax.xlane.f32.xlu0 %v2615
  %v2617 = vpop.xlane.xlu0 %2616
  %v2618 = vsel %vm921, %v2265, -inf
  %v2619 = vmax.f32 %v2263, %v2618
  %2620 = vmax.xlane.f32.xlu0 %v2619
  %v2621 = vpop.xlane.xlu0 %2620
  %v2622 = vsel %vm921, %v2269, -inf
  %v2623 = vmax.f32 %v2267, %v2622
  %2624 = vmax.xlane.f32.xlu0 %v2623
  %v2625 = vpop.xlane.xlu0 %2624
  %v2626 = vsel %vm921, %v2275, -inf
  %v2627 = vmax.f32 %v2273, %v2626
  %2628 = vmax.xlane.f32.xlu0 %v2627
  %v2629 = vpop.xlane.xlu0 %2628
  %v2630 = vsel %vm921, %v2279, -inf
  %v2631 = vmax.f32 %v2277, %v2630
  %2632 = vmax.xlane.f32.xlu0 %v2631
  %v2633 = vpop.xlane.xlu0 %2632
  %v2634 = vsel %vm921, %v2285, -inf
  %v2635 = vmax.f32 %v2283, %v2634
  %2636 = vmax.xlane.f32.xlu0 %v2635
  %v2637 = vpop.xlane.xlu0 %2636
  %v2638 = vsel %vm921, %v2289, -inf
  %v2639 = vmax.f32 %v2287, %v2638
  %2640 = vmax.xlane.f32.xlu0 %v2639
  %v2641 = vpop.xlane.xlu0 %2640
  %v2642 = vsel %vm921, %v2295, -inf
  %v2643 = vmax.f32 %v2293, %v2642
  %2644 = vmax.xlane.f32.xlu0 %v2643
  %v2645 = vpop.xlane.xlu0 %2644
  %v2646 = vsel %vm921, %v2299, -inf
  %v2647 = vmax.f32 %v2297, %v2646
  %2648 = vmax.xlane.f32.xlu0 %v2647
  %v2649 = vpop.xlane.xlu0 %2648
  %v2650 = vsel %vm921, %v2305, -inf
  %v2651 = vmax.f32 %v2303, %v2650
  %2652 = vmax.xlane.f32.xlu0 %v2651
  %v2653 = vpop.xlane.xlu0 %2652
  %v2654 = vsel %vm921, %v2309, -inf
  %v2655 = vmax.f32 %v2307, %v2654
  %2656 = vmax.xlane.f32.xlu0 %v2655
  %v2657 = vpop.xlane.xlu0 %2656
  %v2658 = vsel %vm921, %v2315, -inf
  %v2659 = vmax.f32 %v2313, %v2658
  %2660 = vmax.xlane.f32.xlu0 %v2659
  %v2661 = vpop.xlane.xlu0 %2660
  %v2662 = vsel %vm921, %v2319, -inf
  %v2663 = vmax.f32 %v2317, %v2662
  %2664 = vmax.xlane.f32.xlu0 %v2663
  %v2665 = vpop.xlane.xlu0 %2664
  %v2666 = vsel %vm921, %v2325, -inf
  %v2667 = vmax.f32 %v2323, %v2666
  %2668 = vmax.xlane.f32.xlu0 %v2667
  %v2669 = vpop.xlane.xlu0 %2668
  %v2670 = vsel %vm921, %v2329, -inf
  %v2671 = vmax.f32 %v2327, %v2670
  %2672 = vmax.xlane.f32.xlu0 %v2671
  %v2673 = vpop.xlane.xlu0 %2672
  %v2674 = vsel %vm921, %v2335, -inf
  %v2675 = vmax.f32 %v2333, %v2674
  %2676 = vmax.xlane.f32.xlu0 %v2675
  %v2677 = vpop.xlane.xlu0 %2676
  %v2678 = vsel %vm921, %v2339, -inf
  %v2679 = vmax.f32 %v2337, %v2678
  %2680 = vmax.xlane.f32.xlu0 %v2679
  %v2681 = vpop.xlane.xlu0 %2680
  %v2682 = vsel %vm921, %v2488, -inf
  %v2683 = vmax.f32 %v2486, %v2682
  %2684 = vmax.xlane.f32.xlu0 %v2683
  %v2685 = vpop.xlane.xlu0 %2684
  %v2686 = vsel %vm921, %v2492, -inf
  %v2687 = vmax.f32 %v2490, %v2686
  %2688 = vmax.xlane.f32.xlu0 %v2687
  %v2689 = vpop.xlane.xlu0 %2688
  %v2690 = vsel %vm921, %v2498, -inf
  %v2691 = vmax.f32 %v2496, %v2690
  %2692 = vmax.xlane.f32.xlu0 %v2691
  %v2693 = vpop.xlane.xlu0 %2692
  %v2694 = vsel %vm921, %v2502, -inf
  %v2695 = vmax.f32 %v2500, %v2694
  %2696 = vmax.xlane.f32.xlu0 %v2695
  %v2697 = vpop.xlane.xlu0 %2696
  %v2698 = vsel %vm921, %v2508, -inf
  %v2699 = vmax.f32 %v2506, %v2698
  %2700 = vmax.xlane.f32.xlu0 %v2699
  %v2701 = vpop.xlane.xlu0 %2700
  %v2702 = vsel %vm921, %v2512, -inf
  %v2703 = vmax.f32 %v2510, %v2702
  %2704 = vmax.xlane.f32.xlu0 %v2703
  %v2705 = vpop.xlane.xlu0 %2704
  %v2706 = vsel %vm921, %v2518, -inf
  %v2707 = vmax.f32 %v2516, %v2706
  %2708 = vmax.xlane.f32.xlu0 %v2707
  %v2709 = vpop.xlane.xlu0 %2708
  %v2710 = vsel %vm921, %v2522, -inf
  %v2711 = vmax.f32 %v2520, %v2710
  %2712 = vmax.xlane.f32.xlu0 %v2711
  %v2713 = vpop.xlane.xlu0 %2712
  %v2714 = vsel %vm921, %v2528, -inf
  %v2715 = vmax.f32 %v2526, %v2714
  %2716 = vmax.xlane.f32.xlu0 %v2715
  %v2717 = vpop.xlane.xlu0 %2716
  %v2718 = vsel %vm921, %v2532, -inf
  %v2719 = vmax.f32 %v2530, %v2718
  %2720 = vmax.xlane.f32.xlu0 %v2719
  %v2721 = vpop.xlane.xlu0 %2720
  %v2722 = vsel %vm921, %v2538, -inf
  %v2723 = vmax.f32 %v2536, %v2722
  %2724 = vmax.xlane.f32.xlu0 %v2723
  %v2725 = vpop.xlane.xlu0 %2724
  %v2726 = vsel %vm921, %v2542, -inf
  %v2727 = vmax.f32 %v2540, %v2726
  %2728 = vmax.xlane.f32.xlu0 %v2727
  %v2729 = vpop.xlane.xlu0 %2728
  %v2730 = vsel %vm921, %v2548, -inf
  %v2731 = vmax.f32 %v2546, %v2730
  %2732 = vmax.xlane.f32.xlu0 %v2731
  %v2733 = vpop.xlane.xlu0 %2732
  %v2734 = vsel %vm921, %v2552, -inf
  %v2735 = vmax.f32 %v2550, %v2734
  %2736 = vmax.xlane.f32.xlu0 %v2735
  %v2737 = vpop.xlane.xlu0 %2736
  %v2738 = vsel %vm921, %v2558, -inf
  %v2739 = vmax.f32 %v2556, %v2738
  %2740 = vmax.xlane.f32.xlu0 %v2739
  %v2741 = vpop.xlane.xlu0 %2740
  %v2742 = vsel %vm921, %v2562, -inf
  %v2743 = vmax.f32 %v2560, %v2742
  %2744 = vmax.xlane.f32.xlu0 %v2743
  %v2745 = vpop.xlane.xlu0 %2744
  %v2746 = vsel %vm921, %v2568, -inf
  %v2747 = vmax.f32 %v2566, %v2746
  %2748 = vmax.xlane.f32.xlu0 %v2747
  %v2749 = vpop.xlane.xlu0 %2748
  %v2750 = vsel %vm921, %v2572, -inf
  %v2751 = vmax.f32 %v2570, %v2750
  %2752 = vmax.xlane.f32.xlu0 %v2751
  %v2753 = vpop.xlane.xlu0 %2752
  %v2754 = vsel %vm921, %v2578, -inf
  %v2755 = vmax.f32 %v2576, %v2754
  %2756 = vmax.xlane.f32.xlu0 %v2755
  %v2757 = vpop.xlane.xlu0 %2756
  %v2758 = vsel %vm921, %v2582, -inf
  %v2759 = vmax.f32 %v2580, %v2758
  %2760 = vmax.xlane.f32.xlu0 %v2759
  %v2761 = vpop.xlane.xlu0 %2760
  %v2762 = vsel %vm921, %v2588, -inf
  %v2763 = vmax.f32 %v2586, %v2762
  %2764 = vmax.xlane.f32.xlu0 %v2763
  %v2765 = vpop.xlane.xlu0 %2764
  %v2766 = vsel %vm921, %v2592, -inf
  %v2767 = vmax.f32 %v2590, %v2766
  %2768 = vmax.xlane.f32.xlu0 %v2767
  %v2769 = vpop.xlane.xlu0 %2768
  %v2770 = vsub.f32 %v2233, %v2597
  %v2771 = vsub.f32 %v2235, %v2597
  %v2772 = vsub.f32 %v2237, %v2601
  %v2773 = vsub.f32 %v2239, %v2601
  %v2774 = vsub.f32 %v2243, %v2605
  %v2775 = vsub.f32 %v2245, %v2605
  %v2776 = vsub.f32 %v2247, %v2609
  %v2777 = vsub.f32 %v2249, %v2609
  %v2778 = vsub.f32 %v2253, %v2613
  %v2779 = vsub.f32 %v2255, %v2613
  %v2780 = vsub.f32 %v2257, %v2617
  %v2781 = vsub.f32 %v2259, %v2617
  %v2782 = vsub.f32 %v2263, %v2621
  %v2783 = vsub.f32 %v2265, %v2621
  %v2784 = vsub.f32 %v2267, %v2625
  %v2785 = vsub.f32 %v2269, %v2625
  %v2786 = vsub.f32 %v2273, %v2629
  %v2787 = vsub.f32 %v2275, %v2629
  %v2788 = vsub.f32 %v2277, %v2633
  %v2789 = vsub.f32 %v2279, %v2633
  %v2790 = vsub.f32 %v2283, %v2637
  %v2791 = vsub.f32 %v2285, %v2637
  %v2792 = vsub.f32 %v2287, %v2641
  %v2793 = vsub.f32 %v2289, %v2641
  %v2794 = vsub.f32 %v2293, %v2645
  %v2795 = vsub.f32 %v2295, %v2645
  %v2796 = vsub.f32 %v2297, %v2649
  %v2797 = vsub.f32 %v2299, %v2649
  %v2798 = vsub.f32 %v2303, %v2653
  %v2799 = vsub.f32 %v2305, %v2653
  %v2800 = vsub.f32 %v2307, %v2657
  %v2801 = vsub.f32 %v2309, %v2657
  %v2802 = vsub.f32 %v2313, %v2661
  %v2803 = vsub.f32 %v2315, %v2661
  %v2804 = vsub.f32 %v2317, %v2665
  %v2805 = vsub.f32 %v2319, %v2665
  %v2806 = vsub.f32 %v2323, %v2669
  %v2807 = vsub.f32 %v2325, %v2669
  %v2808 = vsub.f32 %v2327, %v2673
  %v2809 = vsub.f32 %v2329, %v2673
  %v2810 = vsub.f32 %v2333, %v2677
  %v2811 = vsub.f32 %v2335, %v2677
  %v2812 = vsub.f32 %v2337, %v2681
  %v2813 = vsub.f32 %v2339, %v2681
  %v2814 = vsub.f32 %v2486, %v2685
  %v2815 = vsub.f32 %v2488, %v2685
  %v2816 = vsub.f32 %v2490, %v2689
  %v2817 = vsub.f32 %v2492, %v2689
  %v2818 = vsub.f32 %v2496, %v2693
  %v2819 = vsub.f32 %v2498, %v2693
  %v2820 = vsub.f32 %v2500, %v2697
  %v2821 = vsub.f32 %v2502, %v2697
  %v2822 = vsub.f32 %v2506, %v2701
  %v2823 = vsub.f32 %v2508, %v2701
  %v2824 = vsub.f32 %v2510, %v2705
  %v2825 = vsub.f32 %v2512, %v2705
  %v2826 = vsub.f32 %v2516, %v2709
  %v2827 = vsub.f32 %v2518, %v2709
  %v2828 = vsub.f32 %v2520, %v2713
  %v2829 = vsub.f32 %v2522, %v2713
  %v2830 = vsub.f32 %v2526, %v2717
  %v2831 = vsub.f32 %v2528, %v2717
  %v2832 = vsub.f32 %v2530, %v2721
  %v2833 = vsub.f32 %v2532, %v2721
  %v2834 = vsub.f32 %v2536, %v2725
  %v2835 = vsub.f32 %v2538, %v2725
  %v2836 = vsub.f32 %v2540, %v2729
  %v2837 = vsub.f32 %v2542, %v2729
  %v2838 = vsub.f32 %v2546, %v2733
  %v2839 = vsub.f32 %v2548, %v2733
  %v2840 = vsub.f32 %v2550, %v2737
  %v2841 = vsub.f32 %v2552, %v2737
  %v2842 = vsub.f32 %v2556, %v2741
  %v2843 = vsub.f32 %v2558, %v2741
  %v2844 = vsub.f32 %v2560, %v2745
  %v2845 = vsub.f32 %v2562, %v2745
  %v2846 = vsub.f32 %v2566, %v2749
  %v2847 = vsub.f32 %v2568, %v2749
  %v2848 = vsub.f32 %v2570, %v2753
  %v2849 = vsub.f32 %v2572, %v2753
  %v2850 = vsub.f32 %v2576, %v2757
  %v2851 = vsub.f32 %v2578, %v2757
  %v2852 = vsub.f32 %v2580, %v2761
  %v2853 = vsub.f32 %v2582, %v2761
  %v2854 = vsub.f32 %v2586, %v2765
  %v2855 = vsub.f32 %v2588, %v2765
  %v2856 = vsub.f32 %v2590, %v2769
  %v2857 = vsub.f32 %v2592, %v2769
  %v2858 = vmul.f32 %v2770, 1.442695
  %v2859 = vpow.pop %v2858
  %v2860 = vmul.f32 %v2771, 1.442695
  %v2861 = vpow.pop %v2860
  %v2862 = vmul.f32 %v2772, 1.442695
  %v2863 = vpow.pop %v2862
  %v2864 = vmul.f32 %v2773, 1.442695
  %v2865 = vpow.pop %v2864
  %v2866 = vmul.f32 %v2774, 1.442695
  %v2867 = vpow.pop %v2866
  %v2868 = vmul.f32 %v2775, 1.442695
  %v2869 = vpow.pop %v2868
  %v2870 = vmul.f32 %v2776, 1.442695
  %v2871 = vpow.pop %v2870
  %v2872 = vmul.f32 %v2777, 1.442695
  %v2873 = vpow.pop %v2872
  %v2874 = vmul.f32 %v2778, 1.442695
  %v2875 = vpow.pop %v2874
  %v2876 = vmul.f32 %v2779, 1.442695
  %v2877 = vpow.pop %v2876
  %v2878 = vmul.f32 %v2780, 1.442695
  %v2879 = vpow.pop %v2878
  %v2880 = vmul.f32 %v2781, 1.442695
  %v2881 = vpow.pop %v2880
  %v2882 = vmul.f32 %v2782, 1.442695
  %v2883 = vpow.pop %v2882
  %v2884 = vmul.f32 %v2783, 1.442695
  %v2885 = vpow.pop %v2884
  %v2886 = vmul.f32 %v2784, 1.442695
  %v2887 = vpow.pop %v2886
  %v2888 = vmul.f32 %v2785, 1.442695
  %v2889 = vpow.pop %v2888
  %v2890 = vmul.f32 %v2786, 1.442695
  %v2891 = vpow.pop %v2890
  %v2892 = vmul.f32 %v2787, 1.442695
  %v2893 = vpow.pop %v2892
  %v2894 = vmul.f32 %v2788, 1.442695
  %v2895 = vpow.pop %v2894
  %v2896 = vmul.f32 %v2789, 1.442695
  %v2897 = vpow.pop %v2896
  %v2898 = vmul.f32 %v2790, 1.442695
  %v2899 = vpow.pop %v2898
  %v2900 = vmul.f32 %v2791, 1.442695
  %v2901 = vpow.pop %v2900
  %v2902 = vmul.f32 %v2792, 1.442695
  %v2903 = vpow.pop %v2902
  %v2904 = vmul.f32 %v2793, 1.442695
  %v2905 = vpow.pop %v2904
  %v2906 = vmul.f32 %v2794, 1.442695
  %v2907 = vpow.pop %v2906
  %v2908 = vmul.f32 %v2795, 1.442695
  %v2909 = vpow.pop %v2908
  %v2910 = vmul.f32 %v2796, 1.442695
  %v2911 = vpow.pop %v2910
  %v2912 = vmul.f32 %v2797, 1.442695
  %v2913 = vpow.pop %v2912
  %v2914 = vmul.f32 %v2798, 1.442695
  %v2915 = vpow.pop %v2914
  %v2916 = vmul.f32 %v2799, 1.442695
  %v2917 = vpow.pop %v2916
  %v2918 = vmul.f32 %v2800, 1.442695
  %v2919 = vpow.pop %v2918
  %v2920 = vmul.f32 %v2801, 1.442695
  %v2921 = vpow.pop %v2920
  %v2922 = vmul.f32 %v2802, 1.442695
  %v2923 = vpow.pop %v2922
  %v2924 = vmul.f32 %v2803, 1.442695
  %v2925 = vpow.pop %v2924
  %v2926 = vmul.f32 %v2804, 1.442695
  %v2927 = vpow.pop %v2926
  %v2928 = vmul.f32 %v2805, 1.442695
  %v2929 = vpow.pop %v2928
  %v2930 = vmul.f32 %v2806, 1.442695
  %v2931 = vpow.pop %v2930
  %v2932 = vmul.f32 %v2807, 1.442695
  %v2933 = vpow.pop %v2932
  %v2934 = vmul.f32 %v2808, 1.442695
  %v2935 = vpow.pop %v2934
  %v2936 = vmul.f32 %v2809, 1.442695
  %v2937 = vpow.pop %v2936
  %v2938 = vmul.f32 %v2810, 1.442695
  %v2939 = vpow.pop %v2938
  %v2940 = vmul.f32 %v2811, 1.442695
  %v2941 = vpow.pop %v2940
  %v2942 = vmul.f32 %v2812, 1.442695
  %v2943 = vpow.pop %v2942
  %v2944 = vmul.f32 %v2813, 1.442695
  %v2945 = vpow.pop %v2944
  %v2946 = vmul.f32 %v2814, 1.442695
  %v2947 = vpow.pop %v2946
  %v2948 = vmul.f32 %v2815, 1.442695
  %v2949 = vpow.pop %v2948
  %v2950 = vmul.f32 %v2816, 1.442695
  %v2951 = vpow.pop %v2950
  %v2952 = vmul.f32 %v2817, 1.442695
  %v2953 = vpow.pop %v2952
  %v2954 = vmul.f32 %v2818, 1.442695
  %v2955 = vpow.pop %v2954
  %v2956 = vmul.f32 %v2819, 1.442695
  %v2957 = vpow.pop %v2956
  %v2958 = vmul.f32 %v2820, 1.442695
  %v2959 = vpow.pop %v2958
  %v2960 = vmul.f32 %v2821, 1.442695
  %v2961 = vpow.pop %v2960
  %v2962 = vmul.f32 %v2822, 1.442695
  %v2963 = vpow.pop %v2962
  %v2964 = vmul.f32 %v2823, 1.442695
  %v2965 = vpow.pop %v2964
  %v2966 = vmul.f32 %v2824, 1.442695
  %v2967 = vpow.pop %v2966
  %v2968 = vmul.f32 %v2825, 1.442695
  %v2969 = vpow.pop %v2968
  %v2970 = vmul.f32 %v2826, 1.442695
  %v2971 = vpow.pop %v2970
  %v2972 = vmul.f32 %v2827, 1.442695
  %v2973 = vpow.pop %v2972
  %v2974 = vmul.f32 %v2828, 1.442695
  %v2975 = vpow.pop %v2974
  %v2976 = vmul.f32 %v2829, 1.442695
  %v2977 = vpow.pop %v2976
  %v2978 = vmul.f32 %v2830, 1.442695
  %v2979 = vpow.pop %v2978
  %v2980 = vmul.f32 %v2831, 1.442695
  %v2981 = vpow.pop %v2980
  %v2982 = vmul.f32 %v2832, 1.442695
  %v2983 = vpow.pop %v2982
  %v2984 = vmul.f32 %v2833, 1.442695
  %v2985 = vpow.pop %v2984
  %v2986 = vmul.f32 %v2834, 1.442695
  %v2987 = vpow.pop %v2986
  %v2988 = vmul.f32 %v2835, 1.442695
  %v2989 = vpow.pop %v2988
  %v2990 = vmul.f32 %v2836, 1.442695
  %v2991 = vpow.pop %v2990
  %v2992 = vmul.f32 %v2837, 1.442695
  %v2993 = vpow.pop %v2992
  %v2994 = vmul.f32 %v2838, 1.442695
  %v2995 = vpow.pop %v2994
  %v2996 = vmul.f32 %v2839, 1.442695
  %v2997 = vpow.pop %v2996
  %v2998 = vmul.f32 %v2840, 1.442695
  %v2999 = vpow.pop %v2998
  %v3000 = vmul.f32 %v2841, 1.442695
  %v3001 = vpow.pop %v3000
  %v3002 = vmul.f32 %v2842, 1.442695
  %v3003 = vpow.pop %v3002
  %v3004 = vmul.f32 %v2843, 1.442695
  %v3005 = vpow.pop %v3004
  %v3006 = vmul.f32 %v2844, 1.442695
  %v3007 = vpow.pop %v3006
  %v3008 = vmul.f32 %v2845, 1.442695
  %v3009 = vpow.pop %v3008
  %v3010 = vmul.f32 %v2846, 1.442695
  %v3011 = vpow.pop %v3010
  %v3012 = vmul.f32 %v2847, 1.442695
  %v3013 = vpow.pop %v3012
  %v3014 = vmul.f32 %v2848, 1.442695
  %v3015 = vpow.pop %v3014
  %v3016 = vmul.f32 %v2849, 1.442695
  %v3017 = vpow.pop %v3016
  %v3018 = vmul.f32 %v2850, 1.442695
  %v3019 = vpow.pop %v3018
  %v3020 = vmul.f32 %v2851, 1.442695
  %v3021 = vpow.pop %v3020
  %v3022 = vmul.f32 %v2852, 1.442695
  %v3023 = vpow.pop %v3022
  %v3024 = vmul.f32 %v2853, 1.442695
  %v3025 = vpow.pop %v3024
  %v3026 = vmul.f32 %v2854, 1.442695
  %v3027 = vpow.pop %v3026
  %v3028 = vmul.f32 %v2855, 1.442695
  %v3029 = vpow.pop %v3028
  %v3030 = vmul.f32 %v2856, 1.442695
  %v3031 = vpow.pop %v3030
  %v3032 = vmul.f32 %v2857, 1.442695
  %v3033 = vpow.pop %v3032
  %v3034 = vsel %vm921, %v2861, 0.0
  %v3035 = vadd.f32 %v2859, %v3034
  %3036 = vadd.xlane.f32.xlu0 %v3035
  %v3037 = vpop.xlane.xlu0 %3036
  %v3038 = vsel %vm921, %v2865, 0.0
  %v3039 = vadd.f32 %v2863, %v3038
  %3040 = vadd.xlane.f32.xlu0 %v3039
  %v3041 = vpop.xlane.xlu0 %3040
  %v3042 = vsel %vm921, %v2869, 0.0
  %v3043 = vadd.f32 %v2867, %v3042
  %3044 = vadd.xlane.f32.xlu0 %v3043
  %v3045 = vpop.xlane.xlu0 %3044
  %v3046 = vsel %vm921, %v2873, 0.0
  %v3047 = vadd.f32 %v2871, %v3046
  %3048 = vadd.xlane.f32.xlu0 %v3047
  %v3049 = vpop.xlane.xlu0 %3048
  %v3050 = vsel %vm921, %v2877, 0.0
  %v3051 = vadd.f32 %v2875, %v3050
  %3052 = vadd.xlane.f32.xlu0 %v3051
  %v3053 = vpop.xlane.xlu0 %3052
  %v3054 = vsel %vm921, %v2881, 0.0
  %v3055 = vadd.f32 %v2879, %v3054
  %3056 = vadd.xlane.f32.xlu0 %v3055
  %v3057 = vpop.xlane.xlu0 %3056
  %v3058 = vsel %vm921, %v2885, 0.0
  %v3059 = vadd.f32 %v2883, %v3058
  %3060 = vadd.xlane.f32.xlu0 %v3059
  %v3061 = vpop.xlane.xlu0 %3060
  %v3062 = vsel %vm921, %v2889, 0.0
  %v3063 = vadd.f32 %v2887, %v3062
  %3064 = vadd.xlane.f32.xlu0 %v3063
  %v3065 = vpop.xlane.xlu0 %3064
  %v3066 = vsel %vm921, %v2893, 0.0
  %v3067 = vadd.f32 %v2891, %v3066
  %3068 = vadd.xlane.f32.xlu0 %v3067
  %v3069 = vpop.xlane.xlu0 %3068
  %v3070 = vsel %vm921, %v2897, 0.0
  %v3071 = vadd.f32 %v2895, %v3070
  %3072 = vadd.xlane.f32.xlu0 %v3071
  %v3073 = vpop.xlane.xlu0 %3072
  %v3074 = vsel %vm921, %v2901, 0.0
  %v3075 = vadd.f32 %v2899, %v3074
  %3076 = vadd.xlane.f32.xlu0 %v3075
  %v3077 = vpop.xlane.xlu0 %3076
  %v3078 = vsel %vm921, %v2905, 0.0
  %v3079 = vadd.f32 %v2903, %v3078
  %3080 = vadd.xlane.f32.xlu0 %v3079
  %v3081 = vpop.xlane.xlu0 %3080
  %v3082 = vsel %vm921, %v2909, 0.0
  %v3083 = vadd.f32 %v2907, %v3082
  %3084 = vadd.xlane.f32.xlu0 %v3083
  %v3085 = vpop.xlane.xlu0 %3084
  %v3086 = vsel %vm921, %v2913, 0.0
  %v3087 = vadd.f32 %v2911, %v3086
  %3088 = vadd.xlane.f32.xlu0 %v3087
  %v3089 = vpop.xlane.xlu0 %3088
  %v3090 = vsel %vm921, %v2917, 0.0
  %v3091 = vadd.f32 %v2915, %v3090
  %3092 = vadd.xlane.f32.xlu0 %v3091
  %v3093 = vpop.xlane.xlu0 %3092
  %v3094 = vsel %vm921, %v2921, 0.0
  %v3095 = vadd.f32 %v2919, %v3094
  %3096 = vadd.xlane.f32.xlu0 %v3095
  %v3097 = vpop.xlane.xlu0 %3096
  %v3098 = vsel %vm921, %v2925, 0.0
  %v3099 = vadd.f32 %v2923, %v3098
  %3100 = vadd.xlane.f32.xlu0 %v3099
  %v3101 = vpop.xlane.xlu0 %3100
  %v3102 = vsel %vm921, %v2929, 0.0
  %v3103 = vadd.f32 %v2927, %v3102
  %3104 = vadd.xlane.f32.xlu0 %v3103
  %v3105 = vpop.xlane.xlu0 %3104
  %v3106 = vsel %vm921, %v2933, 0.0
  %v3107 = vadd.f32 %v2931, %v3106
  %3108 = vadd.xlane.f32.xlu0 %v3107
  %v3109 = vpop.xlane.xlu0 %3108
  %v3110 = vsel %vm921, %v2937, 0.0
  %v3111 = vadd.f32 %v2935, %v3110
  %3112 = vadd.xlane.f32.xlu0 %v3111
  %v3113 = vpop.xlane.xlu0 %3112
  %v3114 = vsel %vm921, %v2941, 0.0
  %v3115 = vadd.f32 %v2939, %v3114
  %3116 = vadd.xlane.f32.xlu0 %v3115
  %v3117 = vpop.xlane.xlu0 %3116
  %v3118 = vsel %vm921, %v2945, 0.0
  %v3119 = vadd.f32 %v2943, %v3118
  %3120 = vadd.xlane.f32.xlu0 %v3119
  %v3121 = vpop.xlane.xlu0 %3120
  %v3122 = vsel %vm921, %v2949, 0.0
  %v3123 = vadd.f32 %v2947, %v3122
  %3124 = vadd.xlane.f32.xlu0 %v3123
  %v3125 = vpop.xlane.xlu0 %3124
  %v3126 = vsel %vm921, %v2953, 0.0
  %v3127 = vadd.f32 %v2951, %v3126
  %3128 = vadd.xlane.f32.xlu0 %v3127
  %v3129 = vpop.xlane.xlu0 %3128
  %v3130 = vsel %vm921, %v2957, 0.0
  %v3131 = vadd.f32 %v2955, %v3130
  %3132 = vadd.xlane.f32.xlu0 %v3131
  %v3133 = vpop.xlane.xlu0 %3132
  %v3134 = vsel %vm921, %v2961, 0.0
  %v3135 = vadd.f32 %v2959, %v3134
  %3136 = vadd.xlane.f32.xlu0 %v3135
  %v3137 = vpop.xlane.xlu0 %3136
  %v3138 = vsel %vm921, %v2965, 0.0
  %v3139 = vadd.f32 %v2963, %v3138
  %3140 = vadd.xlane.f32.xlu0 %v3139
  %v3141 = vpop.xlane.xlu0 %3140
  %v3142 = vsel %vm921, %v2969, 0.0
  %v3143 = vadd.f32 %v2967, %v3142
  %3144 = vadd.xlane.f32.xlu0 %v3143
  %v3145 = vpop.xlane.xlu0 %3144
  %v3146 = vsel %vm921, %v2973, 0.0
  %v3147 = vadd.f32 %v2971, %v3146
  %3148 = vadd.xlane.f32.xlu0 %v3147
  %v3149 = vpop.xlane.xlu0 %3148
  %v3150 = vsel %vm921, %v2977, 0.0
  %v3151 = vadd.f32 %v2975, %v3150
  %3152 = vadd.xlane.f32.xlu0 %v3151
  %v3153 = vpop.xlane.xlu0 %3152
  %v3154 = vsel %vm921, %v2981, 0.0
  %v3155 = vadd.f32 %v2979, %v3154
  %3156 = vadd.xlane.f32.xlu0 %v3155
  %v3157 = vpop.xlane.xlu0 %3156
  %v3158 = vsel %vm921, %v2985, 0.0
  %v3159 = vadd.f32 %v2983, %v3158
  %3160 = vadd.xlane.f32.xlu0 %v3159
  %v3161 = vpop.xlane.xlu0 %3160
  %v3162 = vsel %vm921, %v2989, 0.0
  %v3163 = vadd.f32 %v2987, %v3162
  %3164 = vadd.xlane.f32.xlu0 %v3163
  %v3165 = vpop.xlane.xlu0 %3164
  %v3166 = vsel %vm921, %v2993, 0.0
  %v3167 = vadd.f32 %v2991, %v3166
  %3168 = vadd.xlane.f32.xlu0 %v3167
  %v3169 = vpop.xlane.xlu0 %3168
  %v3170 = vsel %vm921, %v2997, 0.0
  %v3171 = vadd.f32 %v2995, %v3170
  %3172 = vadd.xlane.f32.xlu0 %v3171
  %v3173 = vpop.xlane.xlu0 %3172
  %v3174 = vsel %vm921, %v3001, 0.0
  %v3175 = vadd.f32 %v2999, %v3174
  %3176 = vadd.xlane.f32.xlu0 %v3175
  %v3177 = vpop.xlane.xlu0 %3176
  %v3178 = vsel %vm921, %v3005, 0.0
  %v3179 = vadd.f32 %v3003, %v3178
  %3180 = vadd.xlane.f32.xlu0 %v3179
  %v3181 = vpop.xlane.xlu0 %3180
  %v3182 = vsel %vm921, %v3009, 0.0
  %v3183 = vadd.f32 %v3007, %v3182
  %3184 = vadd.xlane.f32.xlu0 %v3183
  %v3185 = vpop.xlane.xlu0 %3184
  %v3186 = vsel %vm921, %v3013, 0.0
  %v3187 = vadd.f32 %v3011, %v3186
  %3188 = vadd.xlane.f32.xlu0 %v3187
  %v3189 = vpop.xlane.xlu0 %3188
  %v3190 = vsel %vm921, %v3017, 0.0
  %v3191 = vadd.f32 %v3015, %v3190
  %3192 = vadd.xlane.f32.xlu0 %v3191
  %v3193 = vpop.xlane.xlu0 %3192
  %v3194 = vsel %vm921, %v3021, 0.0
  %v3195 = vadd.f32 %v3019, %v3194
  %3196 = vadd.xlane.f32.xlu0 %v3195
  %v3197 = vpop.xlane.xlu0 %3196
  %v3198 = vsel %vm921, %v3025, 0.0
  %v3199 = vadd.f32 %v3023, %v3198
  %3200 = vadd.xlane.f32.xlu0 %v3199
  %v3201 = vpop.xlane.xlu0 %3200
  %v3202 = vsel %vm921, %v3029, 0.0
  %v3203 = vadd.f32 %v3027, %v3202
  %3204 = vadd.xlane.f32.xlu0 %v3203
  %v3205 = vpop.xlane.xlu0 %3204
  %v3206 = vsel %vm921, %v3033, 0.0
  %v3207 = vadd.f32 %v3031, %v3206
  %3208 = vadd.xlane.f32.xlu0 %v3207
  %v3209 = vpop.xlane.xlu0 %3208
  %v3210 = vpack.c.bf16 %v2863, %v2859
  %v3211 = vpack.c.bf16 %v2865, %v2861
  %v3212 = vpack.c.bf16 %v2871, %v2867
  %v3213 = vpack.c.bf16 %v2873, %v2869
  %v3214 = vpack.c.bf16 %v2879, %v2875
  %v3215 = vpack.c.bf16 %v2881, %v2877
  %v3216 = vpack.c.bf16 %v2887, %v2883
  %v3217 = vpack.c.bf16 %v2889, %v2885
  %v3218 = vpack.c.bf16 %v2895, %v2891
  %v3219 = vpack.c.bf16 %v2897, %v2893
  %v3220 = vpack.c.bf16 %v2903, %v2899
  %v3221 = vpack.c.bf16 %v2905, %v2901
  %v3222 = vpack.c.bf16 %v2911, %v2907
  %v3223 = vpack.c.bf16 %v2913, %v2909
  %v3224 = vpack.c.bf16 %v2919, %v2915
  %v3225 = vpack.c.bf16 %v2921, %v2917
  %v3226 = vpack.c.bf16 %v2927, %v2923
  %v3227 = vpack.c.bf16 %v2929, %v2925
  %v3228 = vpack.c.bf16 %v2935, %v2931
  %v3229 = vpack.c.bf16 %v2937, %v2933
  %v3230 = vpack.c.bf16 %v2943, %v2939
  %v3231 = vpack.c.bf16 %v2945, %v2941
  %v3232 = vpack.c.bf16 %v2951, %v2947
  %v3233 = vpack.c.bf16 %v2953, %v2949
  %v3234 = vpack.c.bf16 %v2959, %v2955
  %v3235 = vpack.c.bf16 %v2961, %v2957
  %v3236 = vpack.c.bf16 %v2967, %v2963
  %v3237 = vpack.c.bf16 %v2969, %v2965
  %v3238 = vpack.c.bf16 %v2975, %v2971
  %v3239 = vpack.c.bf16 %v2977, %v2973
  %v3240 = vpack.c.bf16 %v2983, %v2979
  %v3241 = vpack.c.bf16 %v2985, %v2981
  %v3242 = vpack.c.bf16 %v2991, %v2987
  %v3243 = vpack.c.bf16 %v2993, %v2989
  %v3244 = vpack.c.bf16 %v2999, %v2995
  %v3245 = vpack.c.bf16 %v3001, %v2997
  %v3246 = vpack.c.bf16 %v3007, %v3003
  %v3247 = vpack.c.bf16 %v3009, %v3005
  %v3248 = vpack.c.bf16 %v3015, %v3011
  %v3249 = vpack.c.bf16 %v3017, %v3013
  %v3250 = vpack.c.bf16 %v3023, %v3019
  %v3251 = vpack.c.bf16 %v3025, %v3021
  %v3252 = vpack.c.bf16 %v3031, %v3027
  %v3253 = vpack.c.bf16 %v3033, %v3029
  %3254 = vrot.lane.b32.xlu0 %v414, 88
  %v3255 = vpop.permute.xlu0 %3254
  %3256 = vrot.lane.b32.xlu0 %v415, 88
  %v3257 = vpop.permute.xlu0 %3256
  %3258 = vrot.lane.b32.xlu0 %v416, 88
  %v3259 = vpop.permute.xlu0 %3258
  %3260 = vrot.lane.b32.xlu0 %v417, 88
  %v3261 = vpop.permute.xlu0 %3260
  %3262 = vrot.lane.b32.xlu0 %v418, 88
  %v3263 = vpop.permute.xlu0 %3262
  %3264 = vrot.lane.b32.xlu0 %v419, 88
  %v3265 = vpop.permute.xlu0 %3264
  %3266 = vrot.lane.b32.xlu0 %v420, 88
  %v3267 = vpop.permute.xlu0 %3266
  %3268 = vrot.lane.b32.xlu0 %v421, 88
  %v3269 = vpop.permute.xlu0 %3268
  %3270 = vrot.lane.b32.xlu0 %v422, 88
  %v3271 = vpop.permute.xlu0 %3270
  %3272 = vrot.lane.b32.xlu0 %v423, 88
  %v3273 = vpop.permute.xlu0 %3272
  %3274 = vrot.lane.b32.xlu0 %v424, 88
  %v3275 = vpop.permute.xlu0 %3274
  %v3288 = vsel %vm921, %v3211, 0
  %v3291 = vsel %vm921, %v3213, 0
  %v3294 = vsel %vm921, %v3215, 0
  %v3297 = vsel %vm921, %v3217, 0
  %v3300 = vsel %vm921, %v3219, 0
  %v3303 = vsel %vm921, %v3221, 0
  %v3306 = vsel %vm921, %v3223, 0
  %v3309 = vsel %vm921, %v3225, 0
  %v3312 = vsel %vm921, %v3227, 0
  %v3315 = vsel %vm921, %v3229, 0
  %v3318 = vsel %vm921, %v3231, 0
  %3320 = vmatprep.subr.bf16.mxu0 0
  %3321 = vmatpush1.bf16.msra.mxu0 %v3255
  %3322 = vmatprep.subr.bf16.mxu0 0
  %3323 = vmatpush1.bf16.msra.mxu0 %v3257
  %3324 = vmatprep.subr.bf16.mxu0 0
  %3325 = vmatpush1.bf16.msra.mxu0 %v3259
  %3326 = vmatprep.subr.bf16.mxu0 0
  %3327 = vmatpush1.bf16.msra.mxu0 %v3261
  %3328 = vmatprep.subr.bf16.mxu0 0
  %3329 = vmatpush1.bf16.msra.mxu0 %v3263
  %3330 = vmatprep.subr.bf16.mxu0 0
  %3331 = vmatpush1.bf16.msra.mxu0 %v3265
  %3332 = vmatprep.subr.bf16.mxu0 0
  %3333 = vmatpush1.bf16.msra.mxu0 %v3267
  %3334 = vmatprep.subr.bf16.mxu0 0
  %3335 = vmatpush1.bf16.msra.mxu0 %v3269
  %3336 = vmatprep.subr.bf16.mxu0 0
  %3337 = vmatpush1.bf16.msra.mxu0 %v3271
  %3338 = vmatprep.subr.bf16.mxu0 0
  %3339 = vmatpush1.bf16.msra.mxu0 %v3273
  %3340 = vmatprep.subr.bf16.mxu0 0
  %3341 = vmatpush1.bf16.msra.mxu0 %v3275
  %3342 = vmatprep.subr.bf16.mxu0 0
  %3343 = vmatpush1.bf16.msra.mxu0 0
  %3344 = vmatprep.subr.bf16.mxu0 0
  %3345 = vmatpush1.bf16.msra.mxu0 0
  %3346 = vmatprep.subr.bf16.mxu0 0
  %3347 = vmatpush1.bf16.msra.mxu0 0
  %3348 = vmatprep.subr.bf16.mxu0 0
  %3349 = vmatpush1.bf16.msra.mxu0 0
  %3350 = vmatprep.subr.bf16.mxu0 0
  %3351 = vmatpush1.bf16.msra.mxu0 0
  %3352 = vmatprep.mubr.bf16.mxu0 %v3288
  %3353 = vmatmul.mubr.bf16.gmra.mrb[0].mxu0 %v3210
  %v3354 = vpop.f32.mrb[0].mxu0
  %v3355 = vadd.f32 0.0, %v3354
  %v3356 = vpop.f32.mrb[0].mxu0
  %v3357 = vpop.f32.mrb[0].mxu0
  %v3358 = vadd.f32 0.0, %v3357
  %v3359 = vpop.f32.mrb[0].mxu0
  %3360 = vmatprep.mubr.bf16.mxu0 %v3291
  %3361 = vmatmul.mubr.bf16.gmra.mrb[0].mxu0 %v3212
  %v3362 = vpop.f32.mrb[0].mxu0
  %v3363 = vadd.f32 0.0, %v3362
  %v3364 = vpop.f32.mrb[0].mxu0
  %v3365 = vpop.f32.mrb[0].mxu0
  %v3366 = vadd.f32 0.0, %v3365
  %v3367 = vpop.f32.mrb[0].mxu0
  %3368 = vmatprep.mubr.bf16.mxu0 %v3294
  %3369 = vmatmul.mubr.bf16.gmra.mrb[0].mxu0 %v3214
  %v3370 = vpop.f32.mrb[0].mxu0
  %v3371 = vadd.f32 0.0, %v3370
  %v3372 = vpop.f32.mrb[0].mxu0
  %v3373 = vpop.f32.mrb[0].mxu0
  %v3374 = vadd.f32 0.0, %v3373
  %v3375 = vpop.f32.mrb[0].mxu0
  %3376 = vmatprep.mubr.bf16.mxu0 %v3297
  %3377 = vmatmul.mubr.bf16.gmra.mrb[0].mxu0 %v3216
  %v3378 = vpop.f32.mrb[0].mxu0
  %v3379 = vadd.f32 0.0, %v3378
  %v3380 = vpop.f32.mrb[0].mxu0
  %v3381 = vpop.f32.mrb[0].mxu0
  %v3382 = vadd.f32 0.0, %v3381
  %v3383 = vpop.f32.mrb[0].mxu0
  %3384 = vmatprep.mubr.bf16.mxu0 %v3300
  %3385 = vmatmul.mubr.bf16.gmra.mrb[0].mxu0 %v3218
  %v3386 = vpop.f32.mrb[0].mxu0
  %v3387 = vadd.f32 0.0, %v3386
  %v3388 = vpop.f32.mrb[0].mxu0
  %v3389 = vpop.f32.mrb[0].mxu0
  %v3390 = vadd.f32 0.0, %v3389
  %v3391 = vpop.f32.mrb[0].mxu0
  %3392 = vmatprep.mubr.bf16.mxu0 %v3303
  %3393 = vmatmul.mubr.bf16.gmra.mrb[0].mxu0 %v3220
  %v3394 = vpop.f32.mrb[0].mxu0
  %v3395 = vadd.f32 0.0, %v3394
  %v3396 = vpop.f32.mrb[0].mxu0
  %v3397 = vpop.f32.mrb[0].mxu0
  %v3398 = vadd.f32 0.0, %v3397
  %v3399 = vpop.f32.mrb[0].mxu0
  %3400 = vmatprep.mubr.bf16.mxu0 %v3306
  %3401 = vmatmul.mubr.bf16.gmra.mrb[0].mxu0 %v3222
  %v3402 = vpop.f32.mrb[0].mxu0
  %v3403 = vadd.f32 0.0, %v3402
  %v3404 = vpop.f32.mrb[0].mxu0
  %v3405 = vpop.f32.mrb[0].mxu0
  %v3406 = vadd.f32 0.0, %v3405
  %v3407 = vpop.f32.mrb[0].mxu0
  %3408 = vmatprep.mubr.bf16.mxu0 %v3309
  %3409 = vmatmul.mubr.bf16.gmra.mrb[0].mxu0 %v3224
  %v3410 = vpop.f32.mrb[0].mxu0
  %v3411 = vadd.f32 0.0, %v3410
  %v3412 = vpop.f32.mrb[0].mxu0
  %v3413 = vpop.f32.mrb[0].mxu0
  %v3414 = vadd.f32 0.0, %v3413
  %v3415 = vpop.f32.mrb[0].mxu0
  %3416 = vmatprep.mubr.bf16.mxu0 %v3312
  %3417 = vmatmul.mubr.bf16.gmra.mrb[0].mxu0 %v3226
  %v3418 = vpop.f32.mrb[0].mxu0
  %v3419 = vadd.f32 0.0, %v3418
  %v3420 = vpop.f32.mrb[0].mxu0
  %v3421 = vpop.f32.mrb[0].mxu0
  %v3422 = vadd.f32 0.0, %v3421
  %v3423 = vpop.f32.mrb[0].mxu0
  %3424 = vmatprep.mubr.bf16.mxu0 %v3315
  %3425 = vmatmul.mubr.bf16.gmra.mrb[0].mxu0 %v3228
  %v3426 = vpop.f32.mrb[0].mxu0
  %v3427 = vadd.f32 0.0, %v3426
  %v3428 = vpop.f32.mrb[0].mxu0
  %v3429 = vpop.f32.mrb[0].mxu0
  %v3430 = vadd.f32 0.0, %v3429
  %v3431 = vpop.f32.mrb[0].mxu0
  %3432 = vmatprep.mubr.bf16.mxu0 %v3318
  %3433 = vmatmul.mubr.bf16.gmra.mrb[0].mxu0 %v3230
  %v3434 = vpop.f32.mrb[0].mxu0
  %v3435 = vadd.f32 0.0, %v3434
  %v3436 = vpop.f32.mrb[0].mxu0
  %v3437 = vpop.f32.mrb[0].mxu0
  %v3438 = vadd.f32 0.0, %v3437
  %v3439 = vpop.f32.mrb[0].mxu0
  %3440 = vdwg.mxu0
  %3441 = vrot.lane.b32.xlu0 %v425, 88
  %v3442 = vpop.permute.xlu0 %3441
  %3443 = vrot.lane.b32.xlu0 %v426, 88
  %v3444 = vpop.permute.xlu0 %3443
  %3445 = vrot.lane.b32.xlu0 %v427, 88
  %v3446 = vpop.permute.xlu0 %3445
  %3447 = vrot.lane.b32.xlu0 %v428, 88
  %v3448 = vpop.permute.xlu0 %3447
  %3449 = vrot.lane.b32.xlu0 %v429, 88
  %v3450 = vpop.permute.xlu0 %3449
  %3451 = vrot.lane.b32.xlu0 %v430, 88
  %v3452 = vpop.permute.xlu0 %3451
  %3453 = vrot.lane.b32.xlu0 %v431, 88
  %v3454 = vpop.permute.xlu0 %3453
  %3455 = vrot.lane.b32.xlu0 %v432, 88
  %v3456 = vpop.permute.xlu0 %3455
  %3457 = vrot.lane.b32.xlu0 %v433, 88
  %v3458 = vpop.permute.xlu0 %3457
  %3459 = vrot.lane.b32.xlu0 %v434, 88
  %v3460 = vpop.permute.xlu0 %3459
  %3461 = vrot.lane.b32.xlu0 %v435, 88
  %v3462 = vpop.permute.xlu0 %3461
  %v3475 = vsel %vm921, %v3233, 0
  %v3478 = vsel %vm921, %v3235, 0
  %v3481 = vsel %vm921, %v3237, 0
  %v3484 = vsel %vm921, %v3239, 0
  %v3487 = vsel %vm921, %v3241, 0
  %v3490 = vsel %vm921, %v3243, 0
  %v3493 = vsel %vm921, %v3245, 0
  %v3496 = vsel %vm921, %v3247, 0
  %v3499 = vsel %vm921, %v3249, 0
  %v3502 = vsel %vm921, %v3251, 0
  %v3505 = vsel %vm921, %v3253, 0
  %3507 = vmatprep.subr.bf16.mxu0 0
  %3508 = vmatpush1.bf16.msra.mxu0 %v3442
  %3509 = vmatprep.subr.bf16.mxu0 0
  %3510 = vmatpush1.bf16.msra.mxu0 %v3444
  %3511 = vmatprep.subr.bf16.mxu0 0
  %3512 = vmatpush1.bf16.msra.mxu0 %v3446
  %3513 = vmatprep.subr.bf16.mxu0 0
  %3514 = vmatpush1.bf16.msra.mxu0 %v3448
  %3515 = vmatprep.subr.bf16.mxu0 0
  %3516 = vmatpush1.bf16.msra.mxu0 %v3450
  %3517 = vmatprep.subr.bf16.mxu0 0
  %3518 = vmatpush1.bf16.msra.mxu0 %v3452
  %3519 = vmatprep.subr.bf16.mxu0 0
  %3520 = vmatpush1.bf16.msra.mxu0 %v3454
  %3521 = vmatprep.subr.bf16.mxu0 0
  %3522 = vmatpush1.bf16.msra.mxu0 %v3456
  %3523 = vmatprep.subr.bf16.mxu0 0
  %3524 = vmatpush1.bf16.msra.mxu0 %v3458
  %3525 = vmatprep.subr.bf16.mxu0 0
  %3526 = vmatpush1.bf16.msra.mxu0 %v3460
  %3527 = vmatprep.subr.bf16.mxu0 0
  %3528 = vmatpush1.bf16.msra.mxu0 %v3462
  %3529 = vmatprep.subr.bf16.mxu0 0
  %3530 = vmatpush1.bf16.msra.mxu0 0
  %3531 = vmatprep.subr.bf16.mxu0 0
  %3532 = vmatpush1.bf16.msra.mxu0 0
  %3533 = vmatprep.subr.bf16.mxu0 0
  %3534 = vmatpush1.bf16.msra.mxu0 0
  %3535 = vmatprep.subr.bf16.mxu0 0
  %3536 = vmatpush1.bf16.msra.mxu0 0
  %3537 = vmatprep.subr.bf16.mxu0 0
  %3538 = vmatpush1.bf16.msra.mxu0 0
  %3539 = vmatprep.mubr.bf16.mxu0 %v3475
  %3540 = vmatmul.mubr.bf16.gmra.mrb[0].mxu0 %v3232
  %v3541 = vpop.f32.mrb[0].mxu0
  %v3542 = vadd.f32 0.0, %v3541
  %v3543 = vpop.f32.mrb[0].mxu0
  %v3544 = vpop.f32.mrb[0].mxu0
  %v3545 = vadd.f32 0.0, %v3544
  %v3546 = vpop.f32.mrb[0].mxu0
  %3547 = vmatprep.mubr.bf16.mxu0 %v3478
  %3548 = vmatmul.mubr.bf16.gmra.mrb[0].mxu0 %v3234
  %v3549 = vpop.f32.mrb[0].mxu0
  %v3550 = vadd.f32 0.0, %v3549
  %v3551 = vpop.f32.mrb[0].mxu0
  %v3552 = vpop.f32.mrb[0].mxu0
  %v3553 = vadd.f32 0.0, %v3552
  %v3554 = vpop.f32.mrb[0].mxu0
  %3555 = vmatprep.mubr.bf16.mxu0 %v3481
  %3556 = vmatmul.mubr.bf16.gmra.mrb[0].mxu0 %v3236
  %v3557 = vpop.f32.mrb[0].mxu0
  %v3558 = vadd.f32 0.0, %v3557
  %v3559 = vpop.f32.mrb[0].mxu0
  %v3560 = vpop.f32.mrb[0].mxu0
  %v3561 = vadd.f32 0.0, %v3560
  %v3562 = vpop.f32.mrb[0].mxu0
  %3563 = vmatprep.mubr.bf16.mxu0 %v3484
  %3564 = vmatmul.mubr.bf16.gmra.mrb[0].mxu0 %v3238
  %v3565 = vpop.f32.mrb[0].mxu0
  %v3566 = vadd.f32 0.0, %v3565
  %v3567 = vpop.f32.mrb[0].mxu0
  %v3568 = vpop.f32.mrb[0].mxu0
  %v3569 = vadd.f32 0.0, %v3568
  %v3570 = vpop.f32.mrb[0].mxu0
  %3571 = vmatprep.mubr.bf16.mxu0 %v3487
  %3572 = vmatmul.mubr.bf16.gmra.mrb[0].mxu0 %v3240
  %v3573 = vpop.f32.mrb[0].mxu0
  %v3574 = vadd.f32 0.0, %v3573
  %v3575 = vpop.f32.mrb[0].mxu0
  %v3576 = vpop.f32.mrb[0].mxu0
  %v3577 = vadd.f32 0.0, %v3576
  %v3578 = vpop.f32.mrb[0].mxu0
  %3579 = vmatprep.mubr.bf16.mxu0 %v3490
  %3580 = vmatmul.mubr.bf16.gmra.mrb[0].mxu0 %v3242
  %v3581 = vpop.f32.mrb[0].mxu0
  %v3582 = vadd.f32 0.0, %v3581
  %v3583 = vpop.f32.mrb[0].mxu0
  %v3584 = vpop.f32.mrb[0].mxu0
  %v3585 = vadd.f32 0.0, %v3584
  %v3586 = vpop.f32.mrb[0].mxu0
  %3587 = vmatprep.mubr.bf16.mxu0 %v3493
  %3588 = vmatmul.mubr.bf16.gmra.mrb[0].mxu0 %v3244
  %v3589 = vpop.f32.mrb[0].mxu0
  %v3590 = vadd.f32 0.0, %v3589
  %v3591 = vpop.f32.mrb[0].mxu0
  %v3592 = vpop.f32.mrb[0].mxu0
  %v3593 = vadd.f32 0.0, %v3592
  %v3594 = vpop.f32.mrb[0].mxu0
  %3595 = vmatprep.mubr.bf16.mxu0 %v3496
  %3596 = vmatmul.mubr.bf16.gmra.mrb[0].mxu0 %v3246
  %v3597 = vpop.f32.mrb[0].mxu0
  %v3598 = vadd.f32 0.0, %v3597
  %v3599 = vpop.f32.mrb[0].mxu0
  %v3600 = vpop.f32.mrb[0].mxu0
  %v3601 = vadd.f32 0.0, %v3600
  %v3602 = vpop.f32.mrb[0].mxu0
  %3603 = vmatprep.mubr.bf16.mxu0 %v3499
  %3604 = vmatmul.mubr.bf16.gmra.mrb[0].mxu0 %v3248
  %v3605 = vpop.f32.mrb[0].mxu0
  %v3606 = vadd.f32 0.0, %v3605
  %v3607 = vpop.f32.mrb[0].mxu0
  %v3608 = vpop.f32.mrb[0].mxu0
  %v3609 = vadd.f32 0.0, %v3608
  %v3610 = vpop.f32.mrb[0].mxu0
  %3611 = vmatprep.mubr.bf16.mxu0 %v3502
  %3612 = vmatmul.mubr.bf16.gmra.mrb[0].mxu0 %v3250
  %v3613 = vpop.f32.mrb[0].mxu0
  %v3614 = vadd.f32 0.0, %v3613
  %v3615 = vpop.f32.mrb[0].mxu0
  %v3616 = vpop.f32.mrb[0].mxu0
  %v3617 = vadd.f32 0.0, %v3616
  %v3618 = vpop.f32.mrb[0].mxu0
  %3619 = vmatprep.mubr.bf16.mxu0 %v3505
  %3620 = vmatmul.mubr.bf16.gmra.mrb[0].mxu0 %v3252
  %v3621 = vpop.f32.mrb[0].mxu0
  %v3622 = vadd.f32 0.0, %v3621
  %v3623 = vpop.f32.mrb[0].mxu0
  %v3624 = vpop.f32.mrb[0].mxu0
  %v3625 = vadd.f32 0.0, %v3624
  %v3626 = vpop.f32.mrb[0].mxu0
  %3627 = vdwg.mxu0
  %v3628 = vrcp.pop %v3037
  %v3629 = vrcp.pop %v3041
  %v3630 = vrcp.pop %v3045
  %v3631 = vrcp.pop %v3049
  %v3632 = vrcp.pop %v3053
  %v3633 = vrcp.pop %v3057
  %v3634 = vrcp.pop %v3061
  %v3635 = vrcp.pop %v3065
  %v3636 = vrcp.pop %v3069
  %v3637 = vrcp.pop %v3073
  %v3638 = vrcp.pop %v3077
  %v3639 = vrcp.pop %v3081
  %v3640 = vrcp.pop %v3085
  %v3641 = vrcp.pop %v3089
  %v3642 = vrcp.pop %v3093
  %v3643 = vrcp.pop %v3097
  %v3644 = vrcp.pop %v3101
  %v3645 = vrcp.pop %v3105
  %v3646 = vrcp.pop %v3109
  %v3647 = vrcp.pop %v3113
  %v3648 = vrcp.pop %v3117
  %v3649 = vrcp.pop %v3121
  %v3650 = vrcp.pop %v3125
  %v3651 = vrcp.pop %v3129
  %v3652 = vrcp.pop %v3133
  %v3653 = vrcp.pop %v3137
  %v3654 = vrcp.pop %v3141
  %v3655 = vrcp.pop %v3145
  %v3656 = vrcp.pop %v3149
  %v3657 = vrcp.pop %v3153
  %v3658 = vrcp.pop %v3157
  %v3659 = vrcp.pop %v3161
  %v3660 = vrcp.pop %v3165
  %v3661 = vrcp.pop %v3169
  %v3662 = vrcp.pop %v3173
  %v3663 = vrcp.pop %v3177
  %v3664 = vrcp.pop %v3181
  %v3665 = vrcp.pop %v3185
  %v3666 = vrcp.pop %v3189
  %v3667 = vrcp.pop %v3193
  %v3668 = vrcp.pop %v3197
  %v3669 = vrcp.pop %v3201
  %v3670 = vrcp.pop %v3205
  %v3671 = vrcp.pop %v3209
  %v3672 = vmul.f32 %v3355, %v3628
  %v3673 = vmul.f32 %v3358, %v3629
  %v3674 = vmul.f32 %v3363, %v3630
  %v3675 = vmul.f32 %v3366, %v3631
  %v3676 = vmul.f32 %v3371, %v3632
  %v3677 = vmul.f32 %v3374, %v3633
  %v3678 = vmul.f32 %v3379, %v3634
  %v3679 = vmul.f32 %v3382, %v3635
  %v3680 = vmul.f32 %v3387, %v3636
  %v3681 = vmul.f32 %v3390, %v3637
  %v3682 = vmul.f32 %v3395, %v3638
  %v3683 = vmul.f32 %v3398, %v3639
  %v3684 = vmul.f32 %v3403, %v3640
  %v3685 = vmul.f32 %v3406, %v3641
  %v3686 = vmul.f32 %v3411, %v3642
  %v3687 = vmul.f32 %v3414, %v3643
  %v3688 = vmul.f32 %v3419, %v3644
  %v3689 = vmul.f32 %v3422, %v3645
  %v3690 = vmul.f32 %v3427, %v3646
  %v3691 = vmul.f32 %v3430, %v3647
  %v3692 = vmul.f32 %v3435, %v3648
  %v3693 = vmul.f32 %v3438, %v3649
  %v3694 = vmul.f32 %v3542, %v3650
  %v3695 = vmul.f32 %v3545, %v3651
  %v3696 = vmul.f32 %v3550, %v3652
  %v3697 = vmul.f32 %v3553, %v3653
  %v3698 = vmul.f32 %v3558, %v3654
  %v3699 = vmul.f32 %v3561, %v3655
  %v3700 = vmul.f32 %v3566, %v3656
  %v3701 = vmul.f32 %v3569, %v3657
  %v3702 = vmul.f32 %v3574, %v3658
  %v3703 = vmul.f32 %v3577, %v3659
  %v3704 = vmul.f32 %v3582, %v3660
  %v3705 = vmul.f32 %v3585, %v3661
  %v3706 = vmul.f32 %v3590, %v3662
  %v3707 = vmul.f32 %v3593, %v3663
  %v3708 = vmul.f32 %v3598, %v3664
  %v3709 = vmul.f32 %v3601, %v3665
  %v3710 = vmul.f32 %v3606, %v3666
  %v3711 = vmul.f32 %v3609, %v3667
  %v3712 = vmul.f32 %v3614, %v3668
  %v3713 = vmul.f32 %v3617, %v3669
  %v3714 = vmul.f32 %v3622, %v3670
  %v3715 = vmul.f32 %v3625, %v3671
  %3760 = vrot.lane.b32.xlu0 %v3672, 8
  %v3761 = vpop.permute.xlu0 %3760
  %3762 = vrot.lane.b32.xlu0 %v3673, 8
  %v3763 = vpop.permute.xlu0 %3762
  %3764 = vrot.lane.b32.xlu0 %v3674, 8
  %v3765 = vpop.permute.xlu0 %3764
  %3766 = vrot.lane.b32.xlu0 %v3675, 8
  %v3767 = vpop.permute.xlu0 %3766
  %3768 = vrot.lane.b32.xlu0 %v3676, 8
  %v3769 = vpop.permute.xlu0 %3768
  %3770 = vrot.lane.b32.xlu0 %v3677, 8
  %v3771 = vpop.permute.xlu0 %3770
  %3772 = vrot.lane.b32.xlu0 %v3678, 8
  %v3773 = vpop.permute.xlu0 %3772
  %3774 = vrot.lane.b32.xlu0 %v3679, 8
  %v3775 = vpop.permute.xlu0 %3774
  %3776 = vrot.lane.b32.xlu0 %v3680, 8
  %v3777 = vpop.permute.xlu0 %3776
  %3778 = vrot.lane.b32.xlu0 %v3681, 8
  %v3779 = vpop.permute.xlu0 %3778
  %3780 = vrot.lane.b32.xlu0 %v3682, 8
  %v3781 = vpop.permute.xlu0 %3780
  %3782 = vrot.lane.b32.xlu0 %v3683, 8
  %v3783 = vpop.permute.xlu0 %3782
  %3784 = vrot.lane.b32.xlu0 %v3684, 8
  %v3785 = vpop.permute.xlu0 %3784
  %3786 = vrot.lane.b32.xlu0 %v3685, 8
  %v3787 = vpop.permute.xlu0 %3786
  %3788 = vrot.lane.b32.xlu0 %v3686, 8
  %v3789 = vpop.permute.xlu0 %3788
  %3790 = vrot.lane.b32.xlu0 %v3687, 8
  %v3791 = vpop.permute.xlu0 %3790
  %3792 = vrot.lane.b32.xlu0 %v3688, 8
  %v3793 = vpop.permute.xlu0 %3792
  %3794 = vrot.lane.b32.xlu0 %v3689, 8
  %v3795 = vpop.permute.xlu0 %3794
  %3796 = vrot.lane.b32.xlu0 %v3690, 8
  %v3797 = vpop.permute.xlu0 %3796
  %3798 = vrot.lane.b32.xlu0 %v3691, 8
  %v3799 = vpop.permute.xlu0 %3798
  %3800 = vrot.lane.b32.xlu0 %v3692, 8
  %v3801 = vpop.permute.xlu0 %3800
  %3802 = vrot.lane.b32.xlu0 %v3693, 8
  %v3803 = vpop.permute.xlu0 %3802
  %3804 = vrot.lane.b32.xlu0 %v3694, 8
  %v3805 = vpop.permute.xlu0 %3804
  %3806 = vrot.lane.b32.xlu0 %v3695, 8
  %v3807 = vpop.permute.xlu0 %3806
  %3808 = vrot.lane.b32.xlu0 %v3696, 8
  %v3809 = vpop.permute.xlu0 %3808
  %3810 = vrot.lane.b32.xlu0 %v3697, 8
  %v3811 = vpop.permute.xlu0 %3810
  %3812 = vrot.lane.b32.xlu0 %v3698, 8
  %v3813 = vpop.permute.xlu0 %3812
  %3814 = vrot.lane.b32.xlu0 %v3699, 8
  %v3815 = vpop.permute.xlu0 %3814
  %3816 = vrot.lane.b32.xlu0 %v3700, 8
  %v3817 = vpop.permute.xlu0 %3816
  %3818 = vrot.lane.b32.xlu0 %v3701, 8
  %v3819 = vpop.permute.xlu0 %3818
  %3820 = vrot.lane.b32.xlu0 %v3702, 8
  %v3821 = vpop.permute.xlu0 %3820
  %3822 = vrot.lane.b32.xlu0 %v3703, 8
  %v3823 = vpop.permute.xlu0 %3822
  %3824 = vrot.lane.b32.xlu0 %v3704, 8
  %v3825 = vpop.permute.xlu0 %3824
  %3826 = vrot.lane.b32.xlu0 %v3705, 8
  %v3827 = vpop.permute.xlu0 %3826
  %3828 = vrot.lane.b32.xlu0 %v3706, 8
  %v3829 = vpop.permute.xlu0 %3828
  %3830 = vrot.lane.b32.xlu0 %v3707, 8
  %v3831 = vpop.permute.xlu0 %3830
  %3832 = vrot.lane.b32.xlu0 %v3708, 8
  %v3833 = vpop.permute.xlu0 %3832
  %3834 = vrot.lane.b32.xlu0 %v3709, 8
  %v3835 = vpop.permute.xlu0 %3834
  %3836 = vrot.lane.b32.xlu0 %v3710, 8
  %v3837 = vpop.permute.xlu0 %3836
  %3838 = vrot.lane.b32.xlu0 %v3711, 8
  %v3839 = vpop.permute.xlu0 %3838
  %3840 = vrot.lane.b32.xlu0 %v3712, 8
  %v3841 = vpop.permute.xlu0 %3840
  %3842 = vrot.lane.b32.xlu0 %v3713, 8
  %v3843 = vpop.permute.xlu0 %3842
  %3844 = vrot.lane.b32.xlu0 %v3714, 8
  %v3845 = vpop.permute.xlu0 %3844
  %3846 = vrot.lane.b32.xlu0 %v3715, 8
  %v3847 = vpop.permute.xlu0 %3846
  %vm3892 = vcmask 130112
  %3893 = vst.msk [vmem:[%s4] sm:$0xff] %vm3892, %v3761
  %3894 = vst.msk [vmem:[%s4 + $0x8] sm:$0xff] %vm3892, %v3763
  %3895 = vst.msk [vmem:[%s4 + $0x10] sm:$0xff] %vm3892, %v3765
  %3896 = vst.msk [vmem:[%s4 + $0x18] sm:$0xff] %vm3892, %v3767
  %3897 = vst.msk [vmem:[%s4 + $0x20] sm:$0xff] %vm3892, %v3769
  %3898 = vst.msk [vmem:[%s4 + $0x28] sm:$0xff] %vm3892, %v3771
  %3899 = vst.msk [vmem:[%s4 + $0x30] sm:$0xff] %vm3892, %v3773
  %3900 = vst.msk [vmem:[%s4 + $0x38] sm:$0xff] %vm3892, %v3775
  %3901 = vst.msk [vmem:[%s4 + $0x40] sm:$0xff] %vm3892, %v3777
  %3902 = vst.msk [vmem:[%s4 + $0x48] sm:$0xff] %vm3892, %v3779
  %3903 = vst.msk [vmem:[%s4 + $0x50] sm:$0xff] %vm3892, %v3781
  %3904 = vst.msk [vmem:[%s4 + $0x58] sm:$0xff] %vm3892, %v3783
  %3905 = vst.msk [vmem:[%s4 + $0x60] sm:$0xff] %vm3892, %v3785
  %3906 = vst.msk [vmem:[%s4 + $0x68] sm:$0xff] %vm3892, %v3787
  %3907 = vst.msk [vmem:[%s4 + $0x70] sm:$0xff] %vm3892, %v3789
  %3908 = vst.msk [vmem:[%s4 + $0x78] sm:$0xff] %vm3892, %v3791
  %3909 = vst.msk [vmem:[%s4 + $0x80] sm:$0xff] %vm3892, %v3793
  %3910 = vst.msk [vmem:[%s4 + $0x88] sm:$0xff] %vm3892, %v3795
  %3911 = vst.msk [vmem:[%s4 + $0x90] sm:$0xff] %vm3892, %v3797
  %3912 = vst.msk [vmem:[%s4 + $0x98] sm:$0xff] %vm3892, %v3799
  %3913 = vst.msk [vmem:[%s4 + $0xa0] sm:$0xff] %vm3892, %v3801
  %3914 = vst.msk [vmem:[%s4 + $0xa8] sm:$0xff] %vm3892, %v3803
  %3915 = vst.msk [vmem:[%s4 + $0xb0] sm:$0xff] %vm3892, %v3805
  %3916 = vst.msk [vmem:[%s4 + $0xb8] sm:$0xff] %vm3892, %v3807
  %3917 = vst.msk [vmem:[%s4 + $0xc0] sm:$0xff] %vm3892, %v3809
  %3918 = vst.msk [vmem:[%s4 + $0xc8] sm:$0xff] %vm3892, %v3811
  %3919 = vst.msk [vmem:[%s4 + $0xd0] sm:$0xff] %vm3892, %v3813
  %3920 = vst.msk [vmem:[%s4 + $0xd8] sm:$0xff] %vm3892, %v3815
  %3921 = vst.msk [vmem:[%s4 + $0xe0] sm:$0xff] %vm3892, %v3817
  %3922 = vst.msk [vmem:[%s4 + $0xe8] sm:$0xff] %vm3892, %v3819
  %3923 = vst.msk [vmem:[%s4 + $0xf0] sm:$0xff] %vm3892, %v3821
  %3924 = vst.msk [vmem:[%s4 + $0xf8] sm:$0xff] %vm3892, %v3823
  %3925 = vst.msk [vmem:[%s4 + $0x100] sm:$0xff] %vm3892, %v3825
  %3926 = vst.msk [vmem:[%s4 + $0x108] sm:$0xff] %vm3892, %v3827
  %3927 = vst.msk [vmem:[%s4 + $0x110] sm:$0xff] %vm3892, %v3829
  %3928 = vst.msk [vmem:[%s4 + $0x118] sm:$0xff] %vm3892, %v3831
  %3929 = vst.msk [vmem:[%s4 + $0x120] sm:$0xff] %vm3892, %v3833
  %3930 = vst.msk [vmem:[%s4 + $0x128] sm:$0xff] %vm3892, %v3835
  %3931 = vst.msk [vmem:[%s4 + $0x130] sm:$0xff] %vm3892, %v3837
  %3932 = vst.msk [vmem:[%s4 + $0x138] sm:$0xff] %vm3892, %v3839
  %3933 = vst.msk [vmem:[%s4 + $0x140] sm:$0xff] %vm3892, %v3841
  %3934 = vst.msk [vmem:[%s4 + $0x148] sm:$0xff] %vm3892, %v3843
  %3935 = vst.msk [vmem:[%s4 + $0x150] sm:$0xff] %vm3892, %v3845
  %3936 = vst.msk [vmem:[%s4 + $0x158] sm:$0xff] %vm3892, %v3847
  // Predicated region
  $region18: #{tpu_custom_call.1} parent=0 // pred_check
    _
  $region19: #{tpu_custom_call.1} parent=0 // pred_check_branch
    %3938 = sbr.rel (0) target = $region21
  $region20: #{tpu_custom_call.1} parent=0 // pred_region
    _
  $region21: #{tpu_custom_call.1} parent=0 // pred_fallthru
    _
  // Predicated region
  $region22: #{tpu_custom_call.1} parent=0 // pred_check
    _
  $region23: #{tpu_custom_call.1} parent=0 // pred_check_branch
    %3940 = sbr.rel (0) target = $region25
  $region24: #{tpu_custom_call.1} parent=0 // pred_region
    _
  $region25: #{tpu_custom_call.1} parent=0 // pred_fallthru
    _

</llo_original>
